<compile_context>
chip_gen: v6e
topology: v6e:2x2x1
jax: 0.10.0
libtpu: 0.0.40
codegen_flags: <defaults>
</compile_context>

<pallas_src>
import math

import jax
import jax.numpy as jnp
from jax.experimental import pallas as pl
from jax.experimental.pallas import tpu as pltpu


# --------------------------------------------------------------------------------------
# Banded weight construction (trace-time, tiny).  Folds the kw (width) taps and the
# implicit W zero padding into a (W_in*Cin, W_out*Cout) matrix so every kh tap becomes
# one contiguous lane-dense 2-D matmul inside the kernel (no im2col in HBM).
# --------------------------------------------------------------------------------------

def _band_conv3_weight(w_oihw, ow, dtype):
    """w: (Cout, Cin, 3, 3) -> B: (3, ow*Cin, ow*Cout); pad=1 folded into the band."""
    cout, cin, kh, kw = w_oihw.shape
    j = jnp.arange(ow * cin)
    src_col, src_ci = j // cin, j % cin
    ocol = jnp.arange(ow)
    ks = jnp.arange(kw)
    sel = (src_col[None, :, None] == (ocol[None, None, :] + ks[:, None, None] - 1))
    wg = w_oihw[:, src_ci, :, :]                                  # (Cout, J, KH, KW)
    b = jnp.einsum("cjhk,kjw->hjwc", wg, sel.astype(jnp.float32))
    return b.reshape(kh, ow * cin, ow * cout).astype(dtype)


# ConvTranspose2d(k=4, s=2, p=1) phase decomposition: kernel tap used per (phase, shift).
_KTAP = ((3, 1), (2, 0))


def _band_deconv_weight(w_iohw, win, dtype):
    """w: (Cin, Cout, 4, 4) -> B: (4, win*Cin, 2*win*Cout); W output phases folded in."""
    cin, cout, kh, kw = w_iohw.shape
    ow = 2 * win
    j = jnp.arange(win * cin)
    iw, ci = j // cin, j % cin
    oc = jnp.arange(ow)
    pw, k = oc % 2, oc // 2
    dw = iw[:, None] - k[None, :] - pw[None, :] + 1               # (J, OW)
    valid = (dw == 0) | (dw == 1)
    ktab = jnp.asarray(_KTAP)
    kwsel = ktab[pw[None, :], jnp.clip(dw, 0, 1)]                 # (J, OW)
    onehot = (jnp.arange(kw)[None, None, :] == kwsel[:, :, None]) & valid[:, :, None]
    wg = w_iohw[ci, :, :, :]                                      # (J, Cout, KH, KW)
    b = jnp.einsum("jchk,jwk->hjwc", wg, onehot.astype(jnp.float32))
    return b.reshape(kh, win * cin, ow * cout).astype(dtype)


# --------------------------------------------------------------------------------------
# In-kernel helper: 3x3 (pad=1) conv of one H-phase-separated source.
#   s0_* : even-row slabs   s0_lo = rows[0:Hin],   s0_hi = rows[1:Hin]+zero
#   s1_* : odd-row  slabs   s1_lo = zero+rows[0:Hin-1], s1_hi = rows[0:Hin]
#   even output row 2k   uses in[2k-1], in[2k],   in[2k+1]
#   odd  output row 2k+1 uses in[2k],   in[2k+1], in[2k+2]
# --------------------------------------------------------------------------------------

def _conv3_pair(s0_lo, s0_hi, s1_lo, s1_hi, w_ref):
    f32 = jnp.float32
    ev = (jnp.dot(s1_lo, w_ref[0], preferred_element_type=f32)
          + jnp.dot(s0_lo, w_ref[1], preferred_element_type=f32)
          + jnp.dot(s1_hi, w_ref[2], preferred_element_type=f32))
    od = (jnp.dot(s0_lo, w_ref[0], preferred_element_type=f32)
          + jnp.dot(s1_hi, w_ref[1], preferred_element_type=f32)
          + jnp.dot(s0_hi, w_ref[2], preferred_element_type=f32))
    return ev, od


# --------------------------------------------------------------------------------------
# Kernel A: fused ConvTranspose2d + conv1 (+bias) + BN1 batch statistics (one image/step)
# --------------------------------------------------------------------------------------

def _deconv_conv1_kernel(xp_ref, yp0_ref, yp1_ref, bdec_ref, bw1t_ref, bw1y_ref,
                         bt_ref, b1_ref, c1_ref, s_ref, q_ref, tp0, tp1):
    hin = c1_ref.shape[2]
    owc = c1_ref.shape[3]
    f32, bf16 = jnp.float32, jnp.bfloat16

    # ---- transposed conv (k=4, s=2, p=1): H phases separate, W phases in the band ----
    # even output rows 2h use input rows h-1 (tap 3) and h (tap 1); odd rows 2h+1 use
    # rows h (tap 2) and h+1 (tap 0)   [taps per _KTAP; xp is row-zero-padded by 1]
    t0 = (jnp.dot(xp_ref[0, 0:hin, :], bdec_ref[3], preferred_element_type=f32)
          + jnp.dot(xp_ref[0, 1:hin + 1, :], bdec_ref[1], preferred_element_type=f32)
          + bt_ref[...])
    t1 = (jnp.dot(xp_ref[0, 1:hin + 1, :], bdec_ref[2], preferred_element_type=f32)
          + jnp.dot(xp_ref[0, 2:hin + 2, :], bdec_ref[0], preferred_element_type=f32)
          + bt_ref[...])

    # stage the two phase slabs + their single zero pad row in VMEM (t never hits HBM)
    tp0[0:hin, :] = t0
    tp0[hin:hin + 1, :] = jnp.zeros((1, owc), f32)
    tp1[0:1, :] = jnp.zeros((1, owc), f32)
    tp1[1:hin + 1, :] = t1

    # ---- conv1 over the *virtual* concat([t, y]): contraction split, no concat -------
    ev, od = _conv3_pair(tp0[0:hin, :].astype(bf16), tp0[1:hin + 1, :].astype(bf16),
                         tp1[0:hin, :].astype(bf16), tp1[1:hin + 1, :].astype(bf16),
                         bw1t_ref)
    ev_y, od_y = _conv3_pair(yp0_ref[0, 0:hin, :], yp0_ref[0, 1:hin + 1, :],
                             yp1_ref[0, 0:hin, :], yp1_ref[0, 1:hin + 1, :],
                             bw1y_ref)
    ev = ev + ev_y + b1_ref[...]
    od = od + od_y + b1_ref[...]

    # BN1 batch statistics from the f32 accumulators; intermediate stored bf16
    s_ref[0] = jnp.sum(ev, axis=0, keepdims=True) + jnp.sum(od, axis=0, keepdims=True)
    q_ref[0] = (jnp.sum(ev * ev, axis=0, keepdims=True)
                + jnp.sum(od * od, axis=0, keepdims=True))
    c1_ref[0, 0] = ev.astype(c1_ref.dtype)
    c1_ref[0, 1] = od.astype(c1_ref.dtype)


# --------------------------------------------------------------------------------------
# Kernel B: BN1-apply+ReLU (fused on input) + conv2 (+bias) + BN2 batch statistics
# --------------------------------------------------------------------------------------

def _conv2_kernel(c1_ref, sc_ref, sh_ref, bw2_ref, b2_ref,
                  c2_ref, s_ref, q_ref, a0, a1):
    hin = c2_ref.shape[2]
    owc = c2_ref.shape[3]
    f32, bf16 = jnp.float32, jnp.bfloat16

    a_ev = jnp.maximum(c1_ref[0, 0].astype(f32) * sc_ref[...] + sh_ref[...], 0.0)
    a_od = jnp.maximum(c1_ref[0, 1].astype(f32) * sc_ref[...] + sh_ref[...], 0.0)
    # write activation once; zero only the single pad row per phase
    a0[0:hin, :] = a_ev
    a0[hin:hin + 1, :] = jnp.zeros((1, owc), f32)
    a1[0:1, :] = jnp.zeros((1, owc), f32)
    a1[1:hin + 1, :] = a_od

    ev, od = _conv3_pair(a0[0:hin, :].astype(bf16), a0[1:hin + 1, :].astype(bf16),
                         a1[0:hin, :].astype(bf16), a1[1:hin + 1, :].astype(bf16),
                         bw2_ref)
    ev = ev + b2_ref[...]
    od = od + b2_ref[...]

    s_ref[0] = jnp.sum(ev, axis=0, keepdims=True) + jnp.sum(od, axis=0, keepdims=True)
    q_ref[0] = (jnp.sum(ev * ev, axis=0, keepdims=True)
                + jnp.sum(od * od, axis=0, keepdims=True))
    c2_ref[0, 0] = ev.astype(c2_ref.dtype)
    c2_ref[0, 1] = od.astype(c2_ref.dtype)


# --------------------------------------------------------------------------------------
# Kernel C: BN2 apply + ReLU (row-tiled, lane-dense)
# --------------------------------------------------------------------------------------

def _bn_relu_kernel(x_ref, sc_ref, sh_ref, o_ref):
    o_ref[...] = jnp.maximum(
        x_ref[...].astype(jnp.float32) * sc_ref[...] + sh_ref[...], 0.0)


# --------------------------------------------------------------------------------------
# Forward wrapper (NCHW in / NCHW out, like PyTorch)
# --------------------------------------------------------------------------------------

def _finalize_bn(s, q, count, gamma, beta, cout, eps):
    # NOTE: E[x^2]-E[x]^2 in f32; adequate for normalized activations at 5e-2 tolerance.
    ssum = s.sum(axis=(0, 1)).reshape(-1, cout).sum(axis=0)
    sqs = q.sum(axis=(0, 1)).reshape(-1, cout).sum(axis=0)
    mean = ssum / count
    var = sqs / count - mean * mean
    scale = gamma * jax.lax.rsqrt(var + eps)
    shift = beta - mean * scale
    return scale, shift


def _choose_lane(owc, nrows, max_lane=512):
    """Lane width that is a multiple of both 128 (unmasked stores) and owc."""
    f = 128 // math.gcd(owc, 128)
    if nrows % f != 0:
        return owc, 1                      # fallback (masked stores, still correct)
    while f * 2 * owc <= max_lane and nrows % (f * 2) == 0:
        f *= 2
    return f * owc, f


def upsample_block_forward(params, x_nchw, y_nchw, eps=1e-5):
    N, Cin, Hin, Win = x_nchw.shape
    Cy = y_nchw.shape[1]
    Cout = params["wt"].shape[1]
    OH, OW = 2 * Hin, 2 * Win
    owc = OW * Cout
    oyc = OW * Cy
    f32, bf16 = jnp.float32, jnp.bfloat16
    cparams = pltpu.CompilerParams(dimension_semantics=("parallel",),
                                   vmem_limit_bytes=64 * 1024 * 1024)

    # ---- layout: NHWC with W*C flattened into lanes; H split into even/odd phases ----
    xp = jnp.transpose(x_nchw, (0, 2, 3, 1)).reshape(N, Hin, Win * Cin)
    xp = jnp.pad(xp, ((0, 0), (1, 1), (0, 0))).astype(bf16)       # (N, Hin+2, Win*Cin)

    yh = jnp.transpose(y_nchw, (0, 2, 3, 1)).reshape(N, Hin, 2, oyc)
    zrow = jnp.zeros((N, 1, oyc), y_nchw.dtype)
    yp0 = jnp.concatenate([yh[:, :, 0, :], zrow], axis=1).astype(bf16)  # even + pad
    yp1 = jnp.concatenate([zrow, yh[:, :, 1, :]], axis=1).astype(bf16)  # pad + odd

    # ---- banded weights (kw taps + W zero-pad + deconv W phases folded in) -----------
    bdec = _band_deconv_weight(params["wt"], Win, bf16)           # (4, Win*Cin, owc)
    bw1t = _band_conv3_weight(params["w1"][:, :Cout], OW, bf16)   # (3, owc,  owc)
    bw1y = _band_conv3_weight(params["w1"][:, Cout:], OW, bf16)   # (3, oyc,  owc)
    bw2 = _band_conv3_weight(params["w2"], OW, bf16)              # (3, owc,  owc)

    bias_t = jnp.tile(params["bt"], OW)[None, :].astype(f32)      # (1, owc)
    bias_1 = jnp.tile(params["b1"], OW)[None, :].astype(f32)
    bias_2 = jnp.tile(params["b2"], OW)[None, :].astype(f32)

    # ---- fused transposed-conv + conv1 (+bias) + BN1 batch stats ----------------------
    c1, s1, q1 = pl.pallas_call(
        _deconv_conv1_kernel,
        out_shape=(jax.ShapeDtypeStruct((N, 2, Hin, owc), bf16),
                   jax.ShapeDtypeStruct((N, 1, owc), f32),
                   jax.ShapeDtypeStruct((N, 1, owc), f32)),
        grid_spec=pltpu.PrefetchScalarGridSpec(
            num_scalar_prefetch=0, grid=(N,),
            in_specs=[
                pl.BlockSpec((1, Hin + 2, Win * Cin), lambda i: (i, 0, 0)),
                pl.BlockSpec((1, Hin + 1, oyc), lambda i: (i, 0, 0)),
                pl.BlockSpec((1, Hin + 1, oyc), lambda i: (i, 0, 0)),
                pl.BlockSpec((4, Win * Cin, owc), lambda i: (0, 0, 0)),
                pl.BlockSpec((3, owc, owc), lambda i: (0, 0, 0)),
                pl.BlockSpec((3, oyc, owc), lambda i: (0, 0, 0)),
                pl.BlockSpec((1, owc), lambda i: (0, 0)),
                pl.BlockSpec((1, owc), lambda i: (0, 0)),
            ],
            out_specs=(pl.BlockSpec((1, 2, Hin, owc), lambda i: (i, 0, 0, 0)),
                       pl.BlockSpec((1, 1, owc), lambda i: (i, 0, 0)),
                       pl.BlockSpec((1, 1, owc), lambda i: (i, 0, 0))),
            scratch_shapes=[pltpu.VMEM((Hin + 1, owc), f32),
                            pltpu.VMEM((Hin + 1, owc), f32)]),
        compiler_params=cparams,
    )(xp, yp0, yp1, bdec, bw1t, bw1y, bias_t, bias_1)

    cnt = float(N * OH * OW)
    sc1, sh1 = _finalize_bn(s1, q1, cnt, params["g1"], params["be1"], Cout, eps)
    sc1_t = jnp.tile(sc1, OW)[None, :]
    sh1_t = jnp.tile(sh1, OW)[None, :]

    # ---- conv2 (+bias): BN1-apply+ReLU fused on input, BN2 stats fused on output ------
    c2, s2, q2 = pl.pallas_call(
        _conv2_kernel,
        out_shape=(jax.ShapeDtypeStruct((N, 2, Hin, owc), bf16),
                   jax.ShapeDtypeStruct((N, 1, owc), f32),
                   jax.ShapeDtypeStruct((N, 1, owc), f32)),
        grid_spec=pltpu.PrefetchScalarGridSpec(
            num_scalar_prefetch=0, grid=(N,),
            in_specs=[
                pl.BlockSpec((1, 2, Hin, owc), lambda i: (i, 0, 0, 0)),
                pl.BlockSpec((1, owc), lambda i: (0, 0)),
                pl.BlockSpec((1, owc), lambda i: (0, 0)),
                pl.BlockSpec((3, owc, owc), lambda i: (0, 0, 0)),
                pl.BlockSpec((1, owc), lambda i: (0, 0)),
            ],
            out_specs=(pl.BlockSpec((1, 2, Hin, owc), lambda i: (i, 0, 0, 0)),
                       pl.BlockSpec((1, 1, owc), lambda i: (i, 0, 0)),
                       pl.BlockSpec((1, 1, owc), lambda i: (i, 0, 0))),
            scratch_shapes=[pltpu.VMEM((Hin + 1, owc), f32),
                            pltpu.VMEM((Hin + 1, owc), f32)]),
        compiler_params=cparams,
    )(c1, sc1_t, sh1_t, bw2, bias_2)

    sc2, sh2 = _finalize_bn(s2, q2, cnt, params["g2"], params["be2"], Cout, eps)

    # ---- final BN2 apply + ReLU: row-tiled, lane-dense, "parallel" ---------------------
    nrows = N * 2 * Hin
    lane, fold = _choose_lane(owc, nrows)
    rows = nrows // fold
    x2 = c2.reshape(rows, lane)
    sc2_t = jnp.tile(sc2, lane // Cout)[None, :]
    sh2_t = jnp.tile(sh2, lane // Cout)[None, :]
    br = rows if rows <= 256 else 256

    out = pl.pallas_call(
        _bn_relu_kernel,
        out_shape=jax.ShapeDtypeStruct((rows, lane), f32),
        grid_spec=pltpu.PrefetchScalarGridSpec(
            num_scalar_prefetch=0, grid=(pl.cdiv(rows, br),),
            in_specs=[pl.BlockSpec((br, lane), lambda i: (i, 0)),
                      pl.BlockSpec((1, lane), lambda i: (0, 0)),
                      pl.BlockSpec((1, lane), lambda i: (0, 0))],
            out_specs=pl.BlockSpec((br, lane), lambda i: (i, 0)),
        ),
        compiler_params=pltpu.CompilerParams(dimension_semantics=("parallel",),
                                             vmem_limit_bytes=64 * 1024 * 1024),
    )(x2, sc2_t, sh2_t)

    # phase-separated NHWC -> NCHW (single layout pass over the final tensor)
    out = out.reshape(N, 2, Hin, OW, Cout)
    out = jnp.transpose(out, (0, 4, 2, 1, 3)).reshape(N, Cout, OH, OW)
    return out


# --------------------------------------------------------------------------------------
# pure-JAX reference (matches PyTorch semantics)
# --------------------------------------------------------------------------------------

def reference_forward(params, x, y, eps=1e-5):
    dn = ("NCHW", "OIHW", "NCHW")

    def conv(xx, w, b, pad):
        o = jax.lax.conv_general_dilated(xx, w, (1, 1), [(pad, pad), (pad, pad)],
                                         dimension_numbers=dn)
        return o + b.reshape(1, -1, 1, 1)

    def bnrelu(xx, g, be):
        mean = xx.mean(axis=(0, 2, 3), keepdims=True)
        var = xx.var(axis=(0, 2, 3), keepdims=True)
        o = (xx - mean) / jnp.sqrt(var + eps) * g.reshape(1, -1, 1, 1) + be.reshape(1, -1, 1, 1)
        return jnp.maximum(o, 0.0)

    w_t = params["wt"]
    w_conv = jnp.flip(w_t, axis=(2, 3)).transpose(1, 0, 2, 3)      # OIHW
    t = jax.lax.conv_general_dilated(x, w_conv, (1, 1), [(2, 2), (2, 2)],
                                     lhs_dilation=(2, 2), dimension_numbers=dn)
    t = t + params["bt"].reshape(1, -1, 1, 1)
    h = jnp.concatenate([t, y], axis=1)
    h = bnrelu(conv(h, params["w1"], params["b1"], 1), params["g1"], params["be1"])
    h = bnrelu(conv(h, params["w2"], params["b2"], 1), params["g2"], params["be2"])
    return h


# --------------------------------------------------------------------------------------

if __name__ == "__main__":
    Cin, Cout = 8, 4        # in_channels, out_channels
    N, H, W = 2, 8, 8       # x spatial; y is the 2x-resolution skip

    key = jax.random.PRNGKey(0)
    ks = jax.random.split(key, 12)
    params = {
        "wt": 0.1 * jax.random.normal(ks[0], (Cin, Cout, 4, 4), jnp.float32),
        "bt": 0.1 * jax.random.normal(ks[1], (Cout,), jnp.float32),
        "w1": 0.1 * jax.random.normal(ks[2], (Cout, Cin, 3, 3), jnp.float32),
        "b1": 0.1 * jax.random.normal(ks[3], (Cout,), jnp.float32),
        "g1": 1.0 + 0.1 * jax.random.normal(ks[4], (Cout,), jnp.float32),
        "be1": 0.1 * jax.random.normal(ks[5], (Cout,), jnp.float32),
        "w2": 0.1 * jax.random.normal(ks[6], (Cout, Cout, 3, 3), jnp.float32),
        "b2": 0.1 * jax.random.normal(ks[7], (Cout,), jnp.float32),
        "g2": 1.0 + 0.1 * jax.random.normal(ks[8], (Cout,), jnp.float32),
        "be2": 0.1 * jax.random.normal(ks[9], (Cout,), jnp.float32),
    }

    x = jax.random.normal(ks[10], (N, Cin, H, W), jnp.float32)
    y = jax.random.normal(ks[11], (N, Cin - Cout, 2 * H, 2 * W), jnp.float32)

    fwd = jax.jit(upsample_block_forward)
    out = jax.block_until_ready(fwd(params, x, y))

    assert out.shape == (N, Cout, 2 * H, 2 * W), out.shape

    ref = jax.block_until_ready(reference_forward(params, x, y))
    err = float(jnp.max(jnp.abs(out - ref)))
    assert jnp.allclose(out, ref, atol=5e-2, rtol=5e-2), err

    print("KERNEL_OK")
</pallas_src>

<mosaic_0001>
module attributes {stable_mosaic.version = 11 : i64} {
  func.func @_deconv_conv1_kernel(%arg0: i32, %arg1: memref<1x10x64xbf16, #tpu.memory_space<vmem>>, %arg2: memref<1x9x64xbf16, #tpu.memory_space<vmem>>, %arg3: memref<1x9x64xbf16, #tpu.memory_space<vmem>>, %arg4: memref<4x64x64xbf16, #tpu.memory_space<vmem>>, %arg5: memref<3x64x64xbf16, #tpu.memory_space<vmem>>, %arg6: memref<3x64x64xbf16, #tpu.memory_space<vmem>>, %arg7: memref<1x64xf32, #tpu.memory_space<vmem>>, %arg8: memref<1x64xf32, #tpu.memory_space<vmem>>, %arg9: memref<1x2x8x64xbf16, #tpu.memory_space<vmem>>, %arg10: memref<1x1x64xf32, #tpu.memory_space<vmem>>, %arg11: memref<1x1x64xf32, #tpu.memory_space<vmem>>, %arg12: memref<9x64xf32, #tpu.memory_space<vmem>>, %arg13: memref<9x64xf32, #tpu.memory_space<vmem>>) attributes {dimension_semantics = [#tpu.dimension_semantics<parallel>], iteration_bounds = array<i64: 2>, scalar_prefetch = 0 : i64, scratch_operands = 2 : i64, tpu.core_type = #tpu.core_type<tc>, window_params = [{transform_indices = @transform_0, window_bounds = array<i64: 1, 10, 64>}, {transform_indices = @transform_1, window_bounds = array<i64: 1, 9, 64>}, {transform_indices = @transform_2, window_bounds = array<i64: 1, 9, 64>}, {pipeline_mode = #tpu.pipeline_mode<synchronous>, transform_indices = @transform_3, window_bounds = array<i64: 4, 64, 64>}, {pipeline_mode = #tpu.pipeline_mode<synchronous>, transform_indices = @transform_4, window_bounds = array<i64: 3, 64, 64>}, {pipeline_mode = #tpu.pipeline_mode<synchronous>, transform_indices = @transform_5, window_bounds = array<i64: 3, 64, 64>}, {pipeline_mode = #tpu.pipeline_mode<synchronous>, transform_indices = @transform_6, window_bounds = array<i64: 1, 64>}, {pipeline_mode = #tpu.pipeline_mode<synchronous>, transform_indices = @transform_7, window_bounds = array<i64: 1, 64>}, {transform_indices = @transform_8, window_bounds = array<i64: 1, 2, 8, 64>}, {transform_indices = @transform_9, window_bounds = array<i64: 1, 1, 64>}, {transform_indices = @transform_10, window_bounds = array<i64: 1, 1, 64>}]} {
    %c0 = arith.constant 0 : index
    %c0_0 = arith.constant 0 : index
    %c0_1 = arith.constant 0 : index
    %0 = vector.load %arg1[%c0, %c0_0, %c0_1] : memref<1x10x64xbf16, #tpu.memory_space<vmem>>, vector<1x8x64xbf16>
    %1 = vector.shape_cast %0 : vector<1x8x64xbf16> to vector<8x64xbf16>
    %c3 = arith.constant 3 : index
    %c0_2 = arith.constant 0 : index
    %c0_3 = arith.constant 0 : index
    %2 = vector.load %arg4[%c3, %c0_2, %c0_3] : memref<4x64x64xbf16, #tpu.memory_space<vmem>>, vector<1x64x64xbf16>
    %3 = vector.shape_cast %2 : vector<1x64x64xbf16> to vector<64x64xbf16>
    %cst = arith.constant dense<0.000000e+00> : vector<8x64xf32>
    %4 = tpu.matmul %1, %3, %cst {dimension_numbers = #tpu.dot_dimension_numbers<[1], [0], [0], [1], [0, 0, 1, 1], [], []>} : vector<8x64xbf16>, vector<64x64xbf16>, vector<8x64xf32> -> vector<8x64xf32>
    %c0_4 = arith.constant 0 : index
    %c1 = arith.constant 1 : index
    %c0_5 = arith.constant 0 : index
    %5 = vector.load %arg1[%c0_4, %c1, %c0_5] : memref<1x10x64xbf16, #tpu.memory_space<vmem>>, vector<1x8x64xbf16>
    %6 = vector.shape_cast %5 : vector<1x8x64xbf16> to vector<8x64xbf16>
    %c1_6 = arith.constant 1 : index
    %c0_7 = arith.constant 0 : index
    %c0_8 = arith.constant 0 : index
    %7 = vector.load %arg4[%c1_6, %c0_7, %c0_8] : memref<4x64x64xbf16, #tpu.memory_space<vmem>>, vector<1x64x64xbf16>
    %8 = vector.shape_cast %7 : vector<1x64x64xbf16> to vector<64x64xbf16>
    %cst_9 = arith.constant dense<0.000000e+00> : vector<8x64xf32>
    %9 = tpu.matmul %6, %8, %cst_9 {dimension_numbers = #tpu.dot_dimension_numbers<[1], [0], [0], [1], [0, 0, 1, 1], [], []>} : vector<8x64xbf16>, vector<64x64xbf16>, vector<8x64xf32> -> vector<8x64xf32>
    %10 = arith.addf %4, %9 : vector<8x64xf32>
    %c0_10 = arith.constant 0 : index
    %c0_11 = arith.constant 0 : index
    %11 = vector.load %arg7[%c0_10, %c0_11] : memref<1x64xf32, #tpu.memory_space<vmem>>, vector<1x64xf32>
    %12 = vector.broadcast %11 : vector<1x64xf32> to vector<8x64xf32>
    %13 = arith.addf %10, %12 : vector<8x64xf32>
    %c0_12 = arith.constant 0 : index
    %c1_13 = arith.constant 1 : index
    %c0_14 = arith.constant 0 : index
    %14 = vector.load %arg1[%c0_12, %c1_13, %c0_14] : memref<1x10x64xbf16, #tpu.memory_space<vmem>>, vector<1x8x64xbf16>
    %15 = vector.shape_cast %14 : vector<1x8x64xbf16> to vector<8x64xbf16>
    %c2 = arith.constant 2 : index
    %c0_15 = arith.constant 0 : index
    %c0_16 = arith.constant 0 : index
    %16 = vector.load %arg4[%c2, %c0_15, %c0_16] : memref<4x64x64xbf16, #tpu.memory_space<vmem>>, vector<1x64x64xbf16>
    %17 = vector.shape_cast %16 : vector<1x64x64xbf16> to vector<64x64xbf16>
    %cst_17 = arith.constant dense<0.000000e+00> : vector<8x64xf32>
    %18 = tpu.matmul %15, %17, %cst_17 {dimension_numbers = #tpu.dot_dimension_numbers<[1], [0], [0], [1], [0, 0, 1, 1], [], []>} : vector<8x64xbf16>, vector<64x64xbf16>, vector<8x64xf32> -> vector<8x64xf32>
    %c0_18 = arith.constant 0 : index
    %c2_19 = arith.constant 2 : index
    %c0_20 = arith.constant 0 : index
    %19 = vector.load %arg1[%c0_18, %c2_19, %c0_20] : memref<1x10x64xbf16, #tpu.memory_space<vmem>>, vector<1x8x64xbf16>
    %20 = vector.shape_cast %19 : vector<1x8x64xbf16> to vector<8x64xbf16>
    %c0_21 = arith.constant 0 : index
    %c0_22 = arith.constant 0 : index
    %c0_23 = arith.constant 0 : index
    %21 = vector.load %arg4[%c0_21, %c0_22, %c0_23] : memref<4x64x64xbf16, #tpu.memory_space<vmem>>, vector<1x64x64xbf16>
    %22 = vector.shape_cast %21 : vector<1x64x64xbf16> to vector<64x64xbf16>
    %cst_24 = arith.constant dense<0.000000e+00> : vector<8x64xf32>
    %23 = tpu.matmul %20, %22, %cst_24 {dimension_numbers = #tpu.dot_dimension_numbers<[1], [0], [0], [1], [0, 0, 1, 1], [], []>} : vector<8x64xbf16>, vector<64x64xbf16>, vector<8x64xf32> -> vector<8x64xf32>
    %24 = arith.addf %18, %23 : vector<8x64xf32>
    %c0_25 = arith.constant 0 : index
    %c0_26 = arith.constant 0 : index
    %25 = vector.load %arg7[%c0_25, %c0_26] : memref<1x64xf32, #tpu.memory_space<vmem>>, vector<1x64xf32>
    %26 = vector.broadcast %25 : vector<1x64xf32> to vector<8x64xf32>
    %27 = arith.addf %24, %26 : vector<8x64xf32>
    %c0_27 = arith.constant 0 : index
    %c0_28 = arith.constant 0 : index
    %28 = vector.load %arg12[%c0_27, %c0_28] : memref<9x64xf32, #tpu.memory_space<vmem>>, vector<8x64xf32>
    tpu.vector_store %arg12[%c0_27, %c0_28], %13 {strides = array<i32>} : memref<9x64xf32, #tpu.memory_space<vmem>>, vector<8x64xf32>,
    %cst_29 = arith.constant 0.000000e+00 : f32
    %29 = vector.broadcast %cst_29 : f32 to vector<1x64xf32>
    %c8 = arith.constant 8 : index
    %c0_30 = arith.constant 0 : index
    %30 = vector.load %arg12[%c8, %c0_30] : memref<9x64xf32, #tpu.memory_space<vmem>>, vector<1x64xf32>
    tpu.vector_store %arg12[%c8, %c0_30], %29 {strides = array<i32>} : memref<9x64xf32, #tpu.memory_space<vmem>>, vector<1x64xf32>,
    %cst_31 = arith.constant 0.000000e+00 : f32
    %31 = vector.broadcast %cst_31 : f32 to vector<1x64xf32>
    %c0_32 = arith.constant 0 : index
    %c0_33 = arith.constant 0 : index
    %32 = vector.load %arg13[%c0_32, %c0_33] : memref<9x64xf32, #tpu.memory_space<vmem>>, vector<1x64xf32>
    tpu.vector_store %arg13[%c0_32, %c0_33], %31 {strides = array<i32>} : memref<9x64xf32, #tpu.memory_space<vmem>>, vector<1x64xf32>,
    %c1_34 = arith.constant 1 : index
    %c0_35 = arith.constant 0 : index
    %33 = vector.load %arg13[%c1_34, %c0_35] : memref<9x64xf32, #tpu.memory_space<vmem>>, vector<8x64xf32>
    tpu.vector_store %arg13[%c1_34, %c0_35], %27 {strides = array<i32>} : memref<9x64xf32, #tpu.memory_space<vmem>>, vector<8x64xf32>,
    %c0_36 = arith.constant 0 : index
    %c0_37 = arith.constant 0 : index
    %34 = vector.load %arg12[%c0_36, %c0_37] : memref<9x64xf32, #tpu.memory_space<vmem>>, vector<8x64xf32>
    %35 = arith.truncf %34 : vector<8x64xf32> to vector<8x64xbf16>
    %c1_38 = arith.constant 1 : index
    %c0_39 = arith.constant 0 : index
    %36 = vector.load %arg12[%c1_38, %c0_39] : memref<9x64xf32, #tpu.memory_space<vmem>>, vector<8x64xf32>
    %37 = arith.truncf %36 : vector<8x64xf32> to vector<8x64xbf16>
    %c0_40 = arith.constant 0 : index
    %c0_41 = arith.constant 0 : index
    %38 = vector.load %arg13[%c0_40, %c0_41] : memref<9x64xf32, #tpu.memory_space<vmem>>, vector<8x64xf32>
    %39 = arith.truncf %38 : vector<8x64xf32> to vector<8x64xbf16>
    %c1_42 = arith.constant 1 : index
    %c0_43 = arith.constant 0 : index
    %40 = vector.load %arg13[%c1_42, %c0_43] : memref<9x64xf32, #tpu.memory_space<vmem>>, vector<8x64xf32>
    %41 = arith.truncf %40 : vector<8x64xf32> to vector<8x64xbf16>
    %c0_44 = arith.constant 0 : index
    %c0_45 = arith.constant 0 : index
    %c0_46 = arith.constant 0 : index
    %42 = vector.load %arg5[%c0_44, %c0_45, %c0_46] : memref<3x64x64xbf16, #tpu.memory_space<vmem>>, vector<1x64x64xbf16>
    %43 = vector.shape_cast %42 : vector<1x64x64xbf16> to vector<64x64xbf16>
    %cst_47 = arith.constant dense<0.000000e+00> : vector<8x64xf32>
    %44 = tpu.matmul %39, %43, %cst_47 {dimension_numbers = #tpu.dot_dimension_numbers<[1], [0], [0], [1], [0, 0, 1, 1], [], []>} : vector<8x64xbf16>, vector<64x64xbf16>, vector<8x64xf32> -> vector<8x64xf32>
    %c1_48 = arith.constant 1 : index
    %c0_49 = arith.constant 0 : index
    %c0_50 = arith.constant 0 : index
    %45 = vector.load %arg5[%c1_48, %c0_49, %c0_50] : memref<3x64x64xbf16, #tpu.memory_space<vmem>>, vector<1x64x64xbf16>
    %46 = vector.shape_cast %45 : vector<1x64x64xbf16> to vector<64x64xbf16>
    %cst_51 = arith.constant dense<0.000000e+00> : vector<8x64xf32>
    %47 = tpu.matmul %35, %46, %cst_51 {dimension_numbers = #tpu.dot_dimension_numbers<[1], [0], [0], [1], [0, 0, 1, 1], [], []>} : vector<8x64xbf16>, vector<64x64xbf16>, vector<8x64xf32> -> vector<8x64xf32>
    %48 = arith.addf %44, %47 : vector<8x64xf32>
    %c2_52 = arith.constant 2 : index
    %c0_53 = arith.constant 0 : index
    %c0_54 = arith.constant 0 : index
    %49 = vector.load %arg5[%c2_52, %c0_53, %c0_54] : memref<3x64x64xbf16, #tpu.memory_space<vmem>>, vector<1x64x64xbf16>
    %50 = vector.shape_cast %49 : vector<1x64x64xbf16> to vector<64x64xbf16>
    %cst_55 = arith.constant dense<0.000000e+00> : vector<8x64xf32>
    %51 = tpu.matmul %41, %50, %cst_55 {dimension_numbers = #tpu.dot_dimension_numbers<[1], [0], [0], [1], [0, 0, 1, 1], [], []>} : vector<8x64xbf16>, vector<64x64xbf16>, vector<8x64xf32> -> vector<8x64xf32>
    %52 = arith.addf %48, %51 : vector<8x64xf32>
    %c0_56 = arith.constant 0 : index
    %c0_57 = arith.constant 0 : index
    %c0_58 = arith.constant 0 : index
    %53 = vector.load %arg5[%c0_56, %c0_57, %c0_58] : memref<3x64x64xbf16, #tpu.memory_space<vmem>>, vector<1x64x64xbf16>
    %54 = vector.shape_cast %53 : vector<1x64x64xbf16> to vector<64x64xbf16>
    %cst_59 = arith.constant dense<0.000000e+00> : vector<8x64xf32>
    %55 = tpu.matmul %35, %54, %cst_59 {dimension_numbers = #tpu.dot_dimension_numbers<[1], [0], [0], [1], [0, 0, 1, 1], [], []>} : vector<8x64xbf16>, vector<64x64xbf16>, vector<8x64xf32> -> vector<8x64xf32>
    %c1_60 = arith.constant 1 : index
    %c0_61 = arith.constant 0 : index
    %c0_62 = arith.constant 0 : index
    %56 = vector.load %arg5[%c1_60, %c0_61, %c0_62] : memref<3x64x64xbf16, #tpu.memory_space<vmem>>, vector<1x64x64xbf16>
    %57 = vector.shape_cast %56 : vector<1x64x64xbf16> to vector<64x64xbf16>
    %cst_63 = arith.constant dense<0.000000e+00> : vector<8x64xf32>
    %58 = tpu.matmul %41, %57, %cst_63 {dimension_numbers = #tpu.dot_dimension_numbers<[1], [0], [0], [1], [0, 0, 1, 1], [], []>} : vector<8x64xbf16>, vector<64x64xbf16>, vector<8x64xf32> -> vector<8x64xf32>
    %59 = arith.addf %55, %58 : vector<8x64xf32>
    %c2_64 = arith.constant 2 : index
    %c0_65 = arith.constant 0 : index
    %c0_66 = arith.constant 0 : index
    %60 = vector.load %arg5[%c2_64, %c0_65, %c0_66] : memref<3x64x64xbf16, #tpu.memory_space<vmem>>, vector<1x64x64xbf16>
    %61 = vector.shape_cast %60 : vector<1x64x64xbf16> to vector<64x64xbf16>
    %cst_67 = arith.constant dense<0.000000e+00> : vector<8x64xf32>
    %62 = tpu.matmul %37, %61, %cst_67 {dimension_numbers = #tpu.dot_dimension_numbers<[1], [0], [0], [1], [0, 0, 1, 1], [], []>} : vector<8x64xbf16>, vector<64x64xbf16>, vector<8x64xf32> -> vector<8x64xf32>
    %63 = arith.addf %59, %62 : vector<8x64xf32>
    %c0_68 = arith.constant 0 : index
    %c0_69 = arith.constant 0 : index
    %c0_70 = arith.constant 0 : index
    %64 = vector.load %arg2[%c0_68, %c0_69, %c0_70] : memref<1x9x64xbf16, #tpu.memory_space<vmem>>, vector<1x8x64xbf16>
    %65 = vector.shape_cast %64 : vector<1x8x64xbf16> to vector<8x64xbf16>
    %c0_71 = arith.constant 0 : index
    %c1_72 = arith.constant 1 : index
    %c0_73 = arith.constant 0 : index
    %66 = vector.load %arg2[%c0_71, %c1_72, %c0_73] : memref<1x9x64xbf16, #tpu.memory_space<vmem>>, vector<1x8x64xbf16>
    %67 = vector.shape_cast %66 : vector<1x8x64xbf16> to vector<8x64xbf16>
    %c0_74 = arith.constant 0 : index
    %c0_75 = arith.constant 0 : index
    %c0_76 = arith.constant 0 : index
    %68 = vector.load %arg3[%c0_74, %c0_75, %c0_76] : memref<1x9x64xbf16, #tpu.memory_space<vmem>>, vector<1x8x64xbf16>
    %69 = vector.shape_cast %68 : vector<1x8x64xbf16> to vector<8x64xbf16>
    %c0_77 = arith.constant 0 : index
    %c1_78 = arith.constant 1 : index
    %c0_79 = arith.constant 0 : index
    %70 = vector.load %arg3[%c0_77, %c1_78, %c0_79] : memref<1x9x64xbf16, #tpu.memory_space<vmem>>, vector<1x8x64xbf16>
    %71 = vector.shape_cast %70 : vector<1x8x64xbf16> to vector<8x64xbf16>
    %c0_80 = arith.constant 0 : index
    %c0_81 = arith.constant 0 : index
    %c0_82 = arith.constant 0 : index
    %72 = vector.load %arg6[%c0_80, %c0_81, %c0_82] : memref<3x64x64xbf16, #tpu.memory_space<vmem>>, vector<1x64x64xbf16>
    %73 = vector.shape_cast %72 : vector<1x64x64xbf16> to vector<64x64xbf16>
    %cst_83 = arith.constant dense<0.000000e+00> : vector<8x64xf32>
    %74 = tpu.matmul %69, %73, %cst_83 {dimension_numbers = #tpu.dot_dimension_numbers<[1], [0], [0], [1], [0, 0, 1, 1], [], []>} : vector<8x64xbf16>, vector<64x64xbf16>, vector<8x64xf32> -> vector<8x64xf32>
    %c1_84 = arith.constant 1 : index
    %c0_85 = arith.constant 0 : index
    %c0_86 = arith.constant 0 : index
    %75 = vector.load %arg6[%c1_84, %c0_85, %c0_86] : memref<3x64x64xbf16, #tpu.memory_space<vmem>>, vector<1x64x64xbf16>
    %76 = vector.shape_cast %75 : vector<1x64x64xbf16> to vector<64x64xbf16>
    %cst_87 = arith.constant dense<0.000000e+00> : vector<8x64xf32>
    %77 = tpu.matmul %65, %76, %cst_87 {dimension_numbers = #tpu.dot_dimension_numbers<[1], [0], [0], [1], [0, 0, 1, 1], [], []>} : vector<8x64xbf16>, vector<64x64xbf16>, vector<8x64xf32> -> vector<8x64xf32>
    %78 = arith.addf %74, %77 : vector<8x64xf32>
    %c2_88 = arith.constant 2 : index
    %c0_89 = arith.constant 0 : index
    %c0_90 = arith.constant 0 : index
    %79 = vector.load %arg6[%c2_88, %c0_89, %c0_90] : memref<3x64x64xbf16, #tpu.memory_space<vmem>>, vector<1x64x64xbf16>
    %80 = vector.shape_cast %79 : vector<1x64x64xbf16> to vector<64x64xbf16>
    %cst_91 = arith.constant dense<0.000000e+00> : vector<8x64xf32>
    %81 = tpu.matmul %71, %80, %cst_91 {dimension_numbers = #tpu.dot_dimension_numbers<[1], [0], [0], [1], [0, 0, 1, 1], [], []>} : vector<8x64xbf16>, vector<64x64xbf16>, vector<8x64xf32> -> vector<8x64xf32>
    %82 = arith.addf %78, %81 : vector<8x64xf32>
    %c0_92 = arith.constant 0 : index
    %c0_93 = arith.constant 0 : index
    %c0_94 = arith.constant 0 : index
    %83 = vector.load %arg6[%c0_92, %c0_93, %c0_94] : memref<3x64x64xbf16, #tpu.memory_space<vmem>>, vector<1x64x64xbf16>
    %84 = vector.shape_cast %83 : vector<1x64x64xbf16> to vector<64x64xbf16>
    %cst_95 = arith.constant dense<0.000000e+00> : vector<8x64xf32>
    %85 = tpu.matmul %65, %84, %cst_95 {dimension_numbers = #tpu.dot_dimension_numbers<[1], [0], [0], [1], [0, 0, 1, 1], [], []>} : vector<8x64xbf16>, vector<64x64xbf16>, vector<8x64xf32> -> vector<8x64xf32>
    %c1_96 = arith.constant 1 : index
    %c0_97 = arith.constant 0 : index
    %c0_98 = arith.constant 0 : index
    %86 = vector.load %arg6[%c1_96, %c0_97, %c0_98] : memref<3x64x64xbf16, #tpu.memory_space<vmem>>, vector<1x64x64xbf16>
    %87 = vector.shape_cast %86 : vector<1x64x64xbf16> to vector<64x64xbf16>
    %cst_99 = arith.constant dense<0.000000e+00> : vector<8x64xf32>
    %88 = tpu.matmul %71, %87, %cst_99 {dimension_numbers = #tpu.dot_dimension_numbers<[1], [0], [0], [1], [0, 0, 1, 1], [], []>} : vector<8x64xbf16>, vector<64x64xbf16>, vector<8x64xf32> -> vector<8x64xf32>
    %89 = arith.addf %85, %88 : vector<8x64xf32>
    %c2_100 = arith.constant 2 : index
    %c0_101 = arith.constant 0 : index
    %c0_102 = arith.constant 0 : index
    %90 = vector.load %arg6[%c2_100, %c0_101, %c0_102] : memref<3x64x64xbf16, #tpu.memory_space<vmem>>, vector<1x64x64xbf16>
    %91 = vector.shape_cast %90 : vector<1x64x64xbf16> to vector<64x64xbf16>
    %cst_103 = arith.constant dense<0.000000e+00> : vector<8x64xf32>
    %92 = tpu.matmul %67, %91, %cst_103 {dimension_numbers = #tpu.dot_dimension_numbers<[1], [0], [0], [1], [0, 0, 1, 1], [], []>} : vector<8x64xbf16>, vector<64x64xbf16>, vector<8x64xf32> -> vector<8x64xf32>
    %93 = arith.addf %89, %92 : vector<8x64xf32>
    %94 = arith.addf %52, %82 : vector<8x64xf32>
    %c0_104 = arith.constant 0 : index
    %c0_105 = arith.constant 0 : index
    %95 = vector.load %arg8[%c0_104, %c0_105] : memref<1x64xf32, #tpu.memory_space<vmem>>, vector<1x64xf32>
    %96 = vector.broadcast %95 : vector<1x64xf32> to vector<8x64xf32>
    %97 = arith.addf %94, %96 : vector<8x64xf32>
    %98 = arith.addf %63, %93 : vector<8x64xf32>
    %c0_106 = arith.constant 0 : index
    %c0_107 = arith.constant 0 : index
    %99 = vector.load %arg8[%c0_106, %c0_107] : memref<1x64xf32, #tpu.memory_space<vmem>>, vector<1x64xf32>
    %100 = vector.broadcast %99 : vector<1x64xf32> to vector<8x64xf32>
    %101 = arith.addf %98, %100 : vector<8x64xf32>
    %cst_108 = arith.constant dense<0.000000e+00> : vector<64xf32>
    %102 = vector.multi_reduction <add>, %97, %cst_108 [0] : vector<8x64xf32> to vector<64xf32>
    %103 = vector.shape_cast %102 : vector<64xf32> to vector<1x64xf32>
    %cst_109 = arith.constant dense<0.000000e+00> : vector<64xf32>
    %104 = vector.multi_reduction <add>, %101, %cst_109 [0] : vector<8x64xf32> to vector<64xf32>
    %105 = vector.shape_cast %104 : vector<64xf32> to vector<1x64xf32>
    %106 = arith.addf %103, %105 : vector<1x64xf32>
    %c0_110 = arith.constant 0 : index
    %c0_111 = arith.constant 0 : index
    %c0_112 = arith.constant 0 : index
    %107 = vector.load %arg10[%c0_110, %c0_111, %c0_112] : memref<1x1x64xf32, #tpu.memory_space<vmem>>, vector<1x1x64xf32>
    %108 = vector.shape_cast %107 : vector<1x1x64xf32> to vector<1x64xf32>
    %109 = vector.shape_cast %106 : vector<1x64xf32> to vector<1x1x64xf32>
    tpu.vector_store %arg10[%c0_110, %c0_111, %c0_112], %109 {strides = array<i32>} : memref<1x1x64xf32, #tpu.memory_space<vmem>>, vector<1x1x64xf32>,
    %110 = arith.mulf %97, %97 : vector<8x64xf32>
    %cst_113 = arith.constant dense<0.000000e+00> : vector<64xf32>
    %111 = vector.multi_reduction <add>, %110, %cst_113 [0] : vector<8x64xf32> to vector<64xf32>
    %112 = vector.shape_cast %111 : vector<64xf32> to vector<1x64xf32>
    %113 = arith.mulf %101, %101 : vector<8x64xf32>
    %cst_114 = arith.constant dense<0.000000e+00> : vector<64xf32>
    %114 = vector.multi_reduction <add>, %113, %cst_114 [0] : vector<8x64xf32> to vector<64xf32>
    %115 = vector.shape_cast %114 : vector<64xf32> to vector<1x64xf32>
    %116 = arith.addf %112, %115 : vector<1x64xf32>
    %c0_115 = arith.constant 0 : index
    %c0_116 = arith.constant 0 : index
    %c0_117 = arith.constant 0 : index
    %117 = vector.load %arg11[%c0_115, %c0_116, %c0_117] : memref<1x1x64xf32, #tpu.memory_space<vmem>>, vector<1x1x64xf32>
    %118 = vector.shape_cast %117 : vector<1x1x64xf32> to vector<1x64xf32>
    %119 = vector.shape_cast %116 : vector<1x64xf32> to vector<1x1x64xf32>
    tpu.vector_store %arg11[%c0_115, %c0_116, %c0_117], %119 {strides = array<i32>} : memref<1x1x64xf32, #tpu.memory_space<vmem>>, vector<1x1x64xf32>,
    %120 = arith.truncf %97 : vector<8x64xf32> to vector<8x64xbf16>
    %c0_118 = arith.constant 0 : index
    %c0_119 = arith.constant 0 : index
    %c0_120 = arith.constant 0 : index
    %c0_121 = arith.constant 0 : index
    %121 = vector.load %arg9[%c0_118, %c0_119, %c0_120, %c0_121] : memref<1x2x8x64xbf16, #tpu.memory_space<vmem>>, vector<1x1x8x64xbf16>
    %122 = vector.shape_cast %121 : vector<1x1x8x64xbf16> to vector<8x64xbf16>
    %123 = vector.shape_cast %120 : vector<8x64xbf16> to vector<1x1x8x64xbf16>
    tpu.vector_store %arg9[%c0_118, %c0_119, %c0_120, %c0_121], %123 {strides = array<i32>} : memref<1x2x8x64xbf16, #tpu.memory_space<vmem>>, vector<1x1x8x64xbf16>,
    %124 = arith.truncf %101 : vector<8x64xf32> to vector<8x64xbf16>
    %c0_122 = arith.constant 0 : index
    %c1_123 = arith.constant 1 : index
    %c0_124 = arith.constant 0 : index
    %c0_125 = arith.constant 0 : index
    %125 = vector.load %arg9[%c0_122, %c1_123, %c0_124, %c0_125] : memref<1x2x8x64xbf16, #tpu.memory_space<vmem>>, vector<1x1x8x64xbf16>
    %126 = vector.shape_cast %125 : vector<1x1x8x64xbf16> to vector<8x64xbf16>
    %127 = vector.shape_cast %124 : vector<8x64xbf16> to vector<1x1x8x64xbf16>
    tpu.vector_store %arg9[%c0_122, %c1_123, %c0_124, %c0_125], %127 {strides = array<i32>} : memref<1x2x8x64xbf16, #tpu.memory_space<vmem>>, vector<1x1x8x64xbf16>,
    return
  }
  func.func @transform_0(%arg0: i32) -> (i32, i32, i32) {
    %c0_i32 = arith.constant 0 : i32
    %c0_i32_0 = arith.constant 0 : i32
    %c0_i32_1 = arith.constant 0 : i32
    return %arg0, %c0_i32, %c0_i32_0 : i32, i32, i32
  }
  func.func @transform_1(%arg0: i32) -> (i32, i32, i32) {
    %c0_i32 = arith.constant 0 : i32
    %c0_i32_0 = arith.constant 0 : i32
    %c0_i32_1 = arith.constant 0 : i32
    return %arg0, %c0_i32, %c0_i32_0 : i32, i32, i32
  }
  func.func @transform_2(%arg0: i32) -> (i32, i32, i32) {
    %c0_i32 = arith.constant 0 : i32
    %c0_i32_0 = arith.constant 0 : i32
    %c0_i32_1 = arith.constant 0 : i32
    return %arg0, %c0_i32, %c0_i32_0 : i32, i32, i32
  }
  func.func @transform_3(%arg0: i32) -> (i32, i32, i32) {
    %c0_i32 = arith.constant 0 : i32
    %c0_i32_0 = arith.constant 0 : i32
    %c0_i32_1 = arith.constant 0 : i32
    %c0_i32_2 = arith.constant 0 : i32
    return %c0_i32, %c0_i32_0, %c0_i32_1 : i32, i32, i32
  }
  func.func @transform_4(%arg0: i32) -> (i32, i32, i32) {
    %c0_i32 = arith.constant 0 : i32
    %c0_i32_0 = arith.constant 0 : i32
    %c0_i32_1 = arith.constant 0 : i32
    %c0_i32_2 = arith.constant 0 : i32
    return %c0_i32, %c0_i32_0, %c0_i32_1 : i32, i32, i32
  }
  func.func @transform_5(%arg0: i32) -> (i32, i32, i32) {
    %c0_i32 = arith.constant 0 : i32
    %c0_i32_0 = arith.constant 0 : i32
    %c0_i32_1 = arith.constant 0 : i32
    %c0_i32_2 = arith.constant 0 : i32
    return %c0_i32, %c0_i32_0, %c0_i32_1 : i32, i32, i32
  }
  func.func @transform_6(%arg0: i32) -> (i32, i32) {
    %c0_i32 = arith.constant 0 : i32
    %c0_i32_0 = arith.constant 0 : i32
    %c0_i32_1 = arith.constant 0 : i32
    return %c0_i32, %c0_i32_0 : i32, i32
  }
  func.func @transform_7(%arg0: i32) -> (i32, i32) {
    %c0_i32 = arith.constant 0 : i32
    %c0_i32_0 = arith.constant 0 : i32
    %c0_i32_1 = arith.constant 0 : i32
    return %c0_i32, %c0_i32_0 : i32, i32
  }
  func.func @transform_8(%arg0: i32) -> (i32, i32, i32, i32) {
    %c0_i32 = arith.constant 0 : i32
    %c0_i32_0 = arith.constant 0 : i32
    %c0_i32_1 = arith.constant 0 : i32
    %c0_i32_2 = arith.constant 0 : i32
    return %arg0, %c0_i32, %c0_i32_0, %c0_i32_1 : i32, i32, i32, i32
  }
  func.func @transform_9(%arg0: i32) -> (i32, i32, i32) {
    %c0_i32 = arith.constant 0 : i32
    %c0_i32_0 = arith.constant 0 : i32
    %c0_i32_1 = arith.constant 0 : i32
    return %arg0, %c0_i32, %c0_i32_0 : i32, i32, i32
  }
  func.func @transform_10(%arg0: i32) -> (i32, i32, i32) {
    %c0_i32 = arith.constant 0 : i32
    %c0_i32_0 = arith.constant 0 : i32
    %c0_i32_1 = arith.constant 0 : i32
    return %arg0, %c0_i32, %c0_i32_0 : i32, i32, i32
  }
}

module attributes {stable_mosaic.version = 11 : i64} {
  func.func @_conv2_kernel(%arg0: i32, %arg1: memref<1x2x8x64xbf16, #tpu.memory_space<vmem>>, %arg2: memref<1x64xf32, #tpu.memory_space<vmem>>, %arg3: memref<1x64xf32, #tpu.memory_space<vmem>>, %arg4: memref<3x64x64xbf16, #tpu.memory_space<vmem>>, %arg5: memref<1x64xf32, #tpu.memory_space<vmem>>, %arg6: memref<1x2x8x64xbf16, #tpu.memory_space<vmem>>, %arg7: memref<1x1x64xf32, #tpu.memory_space<vmem>>, %arg8: memref<1x1x64xf32, #tpu.memory_space<vmem>>, %arg9: memref<9x64xf32, #tpu.memory_space<vmem>>, %arg10: memref<9x64xf32, #tpu.memory_space<vmem>>) attributes {dimension_semantics = [#tpu.dimension_semantics<parallel>], iteration_bounds = array<i64: 2>, scalar_prefetch = 0 : i64, scratch_operands = 2 : i64, tpu.core_type = #tpu.core_type<tc>, window_params = [{transform_indices = @transform_0, window_bounds = array<i64: 1, 2, 8, 64>}, {pipeline_mode = #tpu.pipeline_mode<synchronous>, transform_indices = @transform_1, window_bounds = array<i64: 1, 64>}, {pipeline_mode = #tpu.pipeline_mode<synchronous>, transform_indices = @transform_2, window_bounds = array<i64: 1, 64>}, {pipeline_mode = #tpu.pipeline_mode<synchronous>, transform_indices = @transform_3, window_bounds = array<i64: 3, 64, 64>}, {pipeline_mode = #tpu.pipeline_mode<synchronous>, transform_indices = @transform_4, window_bounds = array<i64: 1, 64>}, {transform_indices = @transform_5, window_bounds = array<i64: 1, 2, 8, 64>}, {transform_indices = @transform_6, window_bounds = array<i64: 1, 1, 64>}, {transform_indices = @transform_7, window_bounds = array<i64: 1, 1, 64>}]} {
    %c0 = arith.constant 0 : index
    %c0_0 = arith.constant 0 : index
    %c0_1 = arith.constant 0 : index
    %c0_2 = arith.constant 0 : index
    %0 = vector.load %arg1[%c0, %c0_0, %c0_1, %c0_2] : memref<1x2x8x64xbf16, #tpu.memory_space<vmem>>, vector<1x1x8x64xbf16>
    %1 = vector.shape_cast %0 : vector<1x1x8x64xbf16> to vector<8x64xbf16>
    %2 = arith.extf %1 : vector<8x64xbf16> to vector<8x64xf32>
    %c0_3 = arith.constant 0 : index
    %c0_4 = arith.constant 0 : index
    %3 = vector.load %arg2[%c0_3, %c0_4] : memref<1x64xf32, #tpu.memory_space<vmem>>, vector<1x64xf32>
    %4 = vector.broadcast %3 : vector<1x64xf32> to vector<8x64xf32>
    %5 = arith.mulf %2, %4 : vector<8x64xf32>
    %c0_5 = arith.constant 0 : index
    %c0_6 = arith.constant 0 : index
    %6 = vector.load %arg3[%c0_5, %c0_6] : memref<1x64xf32, #tpu.memory_space<vmem>>, vector<1x64xf32>
    %7 = vector.broadcast %6 : vector<1x64xf32> to vector<8x64xf32>
    %8 = arith.addf %5, %7 : vector<8x64xf32>
    %cst = arith.constant 0.000000e+00 : f32
    %9 = vector.broadcast %cst : f32 to vector<8x64xf32>
    %10 = arith.maximumf %8, %9 : vector<8x64xf32>
    %c0_7 = arith.constant 0 : index
    %c1 = arith.constant 1 : index
    %c0_8 = arith.constant 0 : index
    %c0_9 = arith.constant 0 : index
    %11 = vector.load %arg1[%c0_7, %c1, %c0_8, %c0_9] : memref<1x2x8x64xbf16, #tpu.memory_space<vmem>>, vector<1x1x8x64xbf16>
    %12 = vector.shape_cast %11 : vector<1x1x8x64xbf16> to vector<8x64xbf16>
    %13 = arith.extf %12 : vector<8x64xbf16> to vector<8x64xf32>
    %c0_10 = arith.constant 0 : index
    %c0_11 = arith.constant 0 : index
    %14 = vector.load %arg2[%c0_10, %c0_11] : memref<1x64xf32, #tpu.memory_space<vmem>>, vector<1x64xf32>
    %15 = vector.broadcast %14 : vector<1x64xf32> to vector<8x64xf32>
    %16 = arith.mulf %13, %15 : vector<8x64xf32>
    %c0_12 = arith.constant 0 : index
    %c0_13 = arith.constant 0 : index
    %17 = vector.load %arg3[%c0_12, %c0_13] : memref<1x64xf32, #tpu.memory_space<vmem>>, vector<1x64xf32>
    %18 = vector.broadcast %17 : vector<1x64xf32> to vector<8x64xf32>
    %19 = arith.addf %16, %18 : vector<8x64xf32>
    %cst_14 = arith.constant 0.000000e+00 : f32
    %20 = vector.broadcast %cst_14 : f32 to vector<8x64xf32>
    %21 = arith.maximumf %19, %20 : vector<8x64xf32>
    %c0_15 = arith.constant 0 : index
    %c0_16 = arith.constant 0 : index
    %22 = vector.load %arg9[%c0_15, %c0_16] : memref<9x64xf32, #tpu.memory_space<vmem>>, vector<8x64xf32>
    tpu.vector_store %arg9[%c0_15, %c0_16], %10 {strides = array<i32>} : memref<9x64xf32, #tpu.memory_space<vmem>>, vector<8x64xf32>,
    %cst_17 = arith.constant 0.000000e+00 : f32
    %23 = vector.broadcast %cst_17 : f32 to vector<1x64xf32>
    %c8 = arith.constant 8 : index
    %c0_18 = arith.constant 0 : index
    %24 = vector.load %arg9[%c8, %c0_18] : memref<9x64xf32, #tpu.memory_space<vmem>>, vector<1x64xf32>
    tpu.vector_store %arg9[%c8, %c0_18], %23 {strides = array<i32>} : memref<9x64xf32, #tpu.memory_space<vmem>>, vector<1x64xf32>,
    %cst_19 = arith.constant 0.000000e+00 : f32
    %25 = vector.broadcast %cst_19 : f32 to vector<1x64xf32>
    %c0_20 = arith.constant 0 : index
    %c0_21 = arith.constant 0 : index
    %26 = vector.load %arg10[%c0_20, %c0_21] : memref<9x64xf32, #tpu.memory_space<vmem>>, vector<1x64xf32>
    tpu.vector_store %arg10[%c0_20, %c0_21], %25 {strides = array<i32>} : memref<9x64xf32, #tpu.memory_space<vmem>>, vector<1x64xf32>,
    %c1_22 = arith.constant 1 : index
    %c0_23 = arith.constant 0 : index
    %27 = vector.load %arg10[%c1_22, %c0_23] : memref<9x64xf32, #tpu.memory_space<vmem>>, vector<8x64xf32>
    tpu.vector_store %arg10[%c1_22, %c0_23], %21 {strides = array<i32>} : memref<9x64xf32, #tpu.memory_space<vmem>>, vector<8x64xf32>,
    %c0_24 = arith.constant 0 : index
    %c0_25 = arith.constant 0 : index
    %28 = vector.load %arg9[%c0_24, %c0_25] : memref<9x64xf32, #tpu.memory_space<vmem>>, vector<8x64xf32>
    %29 = arith.truncf %28 : vector<8x64xf32> to vector<8x64xbf16>
    %c1_26 = arith.constant 1 : index
    %c0_27 = arith.constant 0 : index
    %30 = vector.load %arg9[%c1_26, %c0_27] : memref<9x64xf32, #tpu.memory_space<vmem>>, vector<8x64xf32>
    %31 = arith.truncf %30 : vector<8x64xf32> to vector<8x64xbf16>
    %c0_28 = arith.constant 0 : index
    %c0_29 = arith.constant 0 : index
    %32 = vector.load %arg10[%c0_28, %c0_29] : memref<9x64xf32, #tpu.memory_space<vmem>>, vector<8x64xf32>
    %33 = arith.truncf %32 : vector<8x64xf32> to vector<8x64xbf16>
    %c1_30 = arith.constant 1 : index
    %c0_31 = arith.constant 0 : index
    %34 = vector.load %arg10[%c1_30, %c0_31] : memref<9x64xf32, #tpu.memory_space<vmem>>, vector<8x64xf32>
    %35 = arith.truncf %34 : vector<8x64xf32> to vector<8x64xbf16>
    %c0_32 = arith.constant 0 : index
    %c0_33 = arith.constant 0 : index
    %c0_34 = arith.constant 0 : index
    %36 = vector.load %arg4[%c0_32, %c0_33, %c0_34] : memref<3x64x64xbf16, #tpu.memory_space<vmem>>, vector<1x64x64xbf16>
    %37 = vector.shape_cast %36 : vector<1x64x64xbf16> to vector<64x64xbf16>
    %cst_35 = arith.constant dense<0.000000e+00> : vector<8x64xf32>
    %38 = tpu.matmul %33, %37, %cst_35 {dimension_numbers = #tpu.dot_dimension_numbers<[1], [0], [0], [1], [0, 0, 1, 1], [], []>} : vector<8x64xbf16>, vector<64x64xbf16>, vector<8x64xf32> -> vector<8x64xf32>
    %c1_36 = arith.constant 1 : index
    %c0_37 = arith.constant 0 : index
    %c0_38 = arith.constant 0 : index
    %39 = vector.load %arg4[%c1_36, %c0_37, %c0_38] : memref<3x64x64xbf16, #tpu.memory_space<vmem>>, vector<1x64x64xbf16>
    %40 = vector.shape_cast %39 : vector<1x64x64xbf16> to vector<64x64xbf16>
    %cst_39 = arith.constant dense<0.000000e+00> : vector<8x64xf32>
    %41 = tpu.matmul %29, %40, %cst_39 {dimension_numbers = #tpu.dot_dimension_numbers<[1], [0], [0], [1], [0, 0, 1, 1], [], []>} : vector<8x64xbf16>, vector<64x64xbf16>, vector<8x64xf32> -> vector<8x64xf32>
    %42 = arith.addf %38, %41 : vector<8x64xf32>
    %c2 = arith.constant 2 : index
    %c0_40 = arith.constant 0 : index
    %c0_41 = arith.constant 0 : index
    %43 = vector.load %arg4[%c2, %c0_40, %c0_41] : memref<3x64x64xbf16, #tpu.memory_space<vmem>>, vector<1x64x64xbf16>
    %44 = vector.shape_cast %43 : vector<1x64x64xbf16> to vector<64x64xbf16>
    %cst_42 = arith.constant dense<0.000000e+00> : vector<8x64xf32>
    %45 = tpu.matmul %35, %44, %cst_42 {dimension_numbers = #tpu.dot_dimension_numbers<[1], [0], [0], [1], [0, 0, 1, 1], [], []>} : vector<8x64xbf16>, vector<64x64xbf16>, vector<8x64xf32> -> vector<8x64xf32>
    %46 = arith.addf %42, %45 : vector<8x64xf32>
    %c0_43 = arith.constant 0 : index
    %c0_44 = arith.constant 0 : index
    %c0_45 = arith.constant 0 : index
    %47 = vector.load %arg4[%c0_43, %c0_44, %c0_45] : memref<3x64x64xbf16, #tpu.memory_space<vmem>>, vector<1x64x64xbf16>
    %48 = vector.shape_cast %47 : vector<1x64x64xbf16> to vector<64x64xbf16>
    %cst_46 = arith.constant dense<0.000000e+00> : vector<8x64xf32>
    %49 = tpu.matmul %29, %48, %cst_46 {dimension_numbers = #tpu.dot_dimension_numbers<[1], [0], [0], [1], [0, 0, 1, 1], [], []>} : vector<8x64xbf16>, vector<64x64xbf16>, vector<8x64xf32> -> vector<8x64xf32>
    %c1_47 = arith.constant 1 : index
    %c0_48 = arith.constant 0 : index
    %c0_49 = arith.constant 0 : index
    %50 = vector.load %arg4[%c1_47, %c0_48, %c0_49] : memref<3x64x64xbf16, #tpu.memory_space<vmem>>, vector<1x64x64xbf16>
    %51 = vector.shape_cast %50 : vector<1x64x64xbf16> to vector<64x64xbf16>
    %cst_50 = arith.constant dense<0.000000e+00> : vector<8x64xf32>
    %52 = tpu.matmul %35, %51, %cst_50 {dimension_numbers = #tpu.dot_dimension_numbers<[1], [0], [0], [1], [0, 0, 1, 1], [], []>} : vector<8x64xbf16>, vector<64x64xbf16>, vector<8x64xf32> -> vector<8x64xf32>
    %53 = arith.addf %49, %52 : vector<8x64xf32>
    %c2_51 = arith.constant 2 : index
    %c0_52 = arith.constant 0 : index
    %c0_53 = arith.constant 0 : index
    %54 = vector.load %arg4[%c2_51, %c0_52, %c0_53] : memref<3x64x64xbf16, #tpu.memory_space<vmem>>, vector<1x64x64xbf16>
    %55 = vector.shape_cast %54 : vector<1x64x64xbf16> to vector<64x64xbf16>
    %cst_54 = arith.constant dense<0.000000e+00> : vector<8x64xf32>
    %56 = tpu.matmul %31, %55, %cst_54 {dimension_numbers = #tpu.dot_dimension_numbers<[1], [0], [0], [1], [0, 0, 1, 1], [], []>} : vector<8x64xbf16>, vector<64x64xbf16>, vector<8x64xf32> -> vector<8x64xf32>
    %57 = arith.addf %53, %56 : vector<8x64xf32>
    %c0_55 = arith.constant 0 : index
    %c0_56 = arith.constant 0 : index
    %58 = vector.load %arg5[%c0_55, %c0_56] : memref<1x64xf32, #tpu.memory_space<vmem>>, vector<1x64xf32>
    %59 = vector.broadcast %58 : vector<1x64xf32> to vector<8x64xf32>
    %60 = arith.addf %46, %59 : vector<8x64xf32>
    %c0_57 = arith.constant 0 : index
    %c0_58 = arith.constant 0 : index
    %61 = vector.load %arg5[%c0_57, %c0_58] : memref<1x64xf32, #tpu.memory_space<vmem>>, vector<1x64xf32>
    %62 = vector.broadcast %61 : vector<1x64xf32> to vector<8x64xf32>
    %63 = arith.addf %57, %62 : vector<8x64xf32>
    %cst_59 = arith.constant dense<0.000000e+00> : vector<64xf32>
    %64 = vector.multi_reduction <add>, %60, %cst_59 [0] : vector<8x64xf32> to vector<64xf32>
    %65 = vector.shape_cast %64 : vector<64xf32> to vector<1x64xf32>
    %cst_60 = arith.constant dense<0.000000e+00> : vector<64xf32>
    %66 = vector.multi_reduction <add>, %63, %cst_60 [0] : vector<8x64xf32> to vector<64xf32>
    %67 = vector.shape_cast %66 : vector<64xf32> to vector<1x64xf32>
    %68 = arith.addf %65, %67 : vector<1x64xf32>
    %c0_61 = arith.constant 0 : index
    %c0_62 = arith.constant 0 : index
    %c0_63 = arith.constant 0 : index
    %69 = vector.load %arg7[%c0_61, %c0_62, %c0_63] : memref<1x1x64xf32, #tpu.memory_space<vmem>>, vector<1x1x64xf32>
    %70 = vector.shape_cast %69 : vector<1x1x64xf32> to vector<1x64xf32>
    %71 = vector.shape_cast %68 : vector<1x64xf32> to vector<1x1x64xf32>
    tpu.vector_store %arg7[%c0_61, %c0_62, %c0_63], %71 {strides = array<i32>} : memref<1x1x64xf32, #tpu.memory_space<vmem>>, vector<1x1x64xf32>,
    %72 = arith.mulf %60, %60 : vector<8x64xf32>
    %cst_64 = arith.constant dense<0.000000e+00> : vector<64xf32>
    %73 = vector.multi_reduction <add>, %72, %cst_64 [0] : vector<8x64xf32> to vector<64xf32>
    %74 = vector.shape_cast %73 : vector<64xf32> to vector<1x64xf32>
    %75 = arith.mulf %63, %63 : vector<8x64xf32>
    %cst_65 = arith.constant dense<0.000000e+00> : vector<64xf32>
    %76 = vector.multi_reduction <add>, %75, %cst_65 [0] : vector<8x64xf32> to vector<64xf32>
    %77 = vector.shape_cast %76 : vector<64xf32> to vector<1x64xf32>
    %78 = arith.addf %74, %77 : vector<1x64xf32>
    %c0_66 = arith.constant 0 : index
    %c0_67 = arith.constant 0 : index
    %c0_68 = arith.constant 0 : index
    %79 = vector.load %arg8[%c0_66, %c0_67, %c0_68] : memref<1x1x64xf32, #tpu.memory_space<vmem>>, vector<1x1x64xf32>
    %80 = vector.shape_cast %79 : vector<1x1x64xf32> to vector<1x64xf32>
    %81 = vector.shape_cast %78 : vector<1x64xf32> to vector<1x1x64xf32>
    tpu.vector_store %arg8[%c0_66, %c0_67, %c0_68], %81 {strides = array<i32>} : memref<1x1x64xf32, #tpu.memory_space<vmem>>, vector<1x1x64xf32>,
    %82 = arith.truncf %60 : vector<8x64xf32> to vector<8x64xbf16>
    %c0_69 = arith.constant 0 : index
    %c0_70 = arith.constant 0 : index
    %c0_71 = arith.constant 0 : index
    %c0_72 = arith.constant 0 : index
    %83 = vector.load %arg6[%c0_69, %c0_70, %c0_71, %c0_72] : memref<1x2x8x64xbf16, #tpu.memory_space<vmem>>, vector<1x1x8x64xbf16>
    %84 = vector.shape_cast %83 : vector<1x1x8x64xbf16> to vector<8x64xbf16>
    %85 = vector.shape_cast %82 : vector<8x64xbf16> to vector<1x1x8x64xbf16>
    tpu.vector_store %arg6[%c0_69, %c0_70, %c0_71, %c0_72], %85 {strides = array<i32>} : memref<1x2x8x64xbf16, #tpu.memory_space<vmem>>, vector<1x1x8x64xbf16>,
    %86 = arith.truncf %63 : vector<8x64xf32> to vector<8x64xbf16>
    %c0_73 = arith.constant 0 : index
    %c1_74 = arith.constant 1 : index
    %c0_75 = arith.constant 0 : index
    %c0_76 = arith.constant 0 : index
    %87 = vector.load %arg6[%c0_73, %c1_74, %c0_75, %c0_76] : memref<1x2x8x64xbf16, #tpu.memory_space<vmem>>, vector<1x1x8x64xbf16>
    %88 = vector.shape_cast %87 : vector<1x1x8x64xbf16> to vector<8x64xbf16>
    %89 = vector.shape_cast %86 : vector<8x64xbf16> to vector<1x1x8x64xbf16>
    tpu.vector_store %arg6[%c0_73, %c1_74, %c0_75, %c0_76], %89 {strides = array<i32>} : memref<1x2x8x64xbf16, #tpu.memory_space<vmem>>, vector<1x1x8x64xbf16>,
    return
  }
  func.func @transform_0(%arg0: i32) -> (i32, i32, i32, i32) {
    %c0_i32 = arith.constant 0 : i32
    %c0_i32_0 = arith.constant 0 : i32
    %c0_i32_1 = arith.constant 0 : i32
    %c0_i32_2 = arith.constant 0 : i32
    return %arg0, %c0_i32, %c0_i32_0, %c0_i32_1 : i32, i32, i32, i32
  }
  func.func @transform_1(%arg0: i32) -> (i32, i32) {
    %c0_i32 = arith.constant 0 : i32
    %c0_i32_0 = arith.constant 0 : i32
    %c0_i32_1 = arith.constant 0 : i32
    return %c0_i32, %c0_i32_0 : i32, i32
  }
  func.func @transform_2(%arg0: i32) -> (i32, i32) {
    %c0_i32 = arith.constant 0 : i32
    %c0_i32_0 = arith.constant 0 : i32
    %c0_i32_1 = arith.constant 0 : i32
    return %c0_i32, %c0_i32_0 : i32, i32
  }
  func.func @transform_3(%arg0: i32) -> (i32, i32, i32) {
    %c0_i32 = arith.constant 0 : i32
    %c0_i32_0 = arith.constant 0 : i32
    %c0_i32_1 = arith.constant 0 : i32
    %c0_i32_2 = arith.constant 0 : i32
    return %c0_i32, %c0_i32_0, %c0_i32_1 : i32, i32, i32
  }
  func.func @transform_4(%arg0: i32) -> (i32, i32) {
    %c0_i32 = arith.constant 0 : i32
    %c0_i32_0 = arith.constant 0 : i32
    %c0_i32_1 = arith.constant 0 : i32
    return %c0_i32, %c0_i32_0 : i32, i32
  }
  func.func @transform_5(%arg0: i32) -> (i32, i32, i32, i32) {
    %c0_i32 = arith.constant 0 : i32
    %c0_i32_0 = arith.constant 0 : i32
    %c0_i32_1 = arith.constant 0 : i32
    %c0_i32_2 = arith.constant 0 : i32
    return %arg0, %c0_i32, %c0_i32_0, %c0_i32_1 : i32, i32, i32, i32
  }
  func.func @transform_6(%arg0: i32) -> (i32, i32, i32) {
    %c0_i32 = arith.constant 0 : i32
    %c0_i32_0 = arith.constant 0 : i32
    %c0_i32_1 = arith.constant 0 : i32
    return %arg0, %c0_i32, %c0_i32_0 : i32, i32, i32
  }
  func.func @transform_7(%arg0: i32) -> (i32, i32, i32) {
    %c0_i32 = arith.constant 0 : i32
    %c0_i32_0 = arith.constant 0 : i32
    %c0_i32_1 = arith.constant 0 : i32
    return %arg0, %c0_i32, %c0_i32_0 : i32, i32, i32
  }
}

module attributes {stable_mosaic.version = 11 : i64} {
  func.func @_bn_relu_kernel(%arg0: i32, %arg1: memref<4x512xbf16, #tpu.memory_space<vmem>>, %arg2: memref<1x512xf32, #tpu.memory_space<vmem>>, %arg3: memref<1x512xf32, #tpu.memory_space<vmem>>, %arg4: memref<4x512xf32, #tpu.memory_space<vmem>>) attributes {dimension_semantics = [#tpu.dimension_semantics<parallel>], iteration_bounds = array<i64: 1>, scalar_prefetch = 0 : i64, scratch_operands = 0 : i64, tpu.core_type = #tpu.core_type<tc>, window_params = [{transform_indices = @transform_0, window_bounds = array<i64: 4, 512>}, {pipeline_mode = #tpu.pipeline_mode<synchronous>, transform_indices = @transform_1, window_bounds = array<i64: 1, 512>}, {pipeline_mode = #tpu.pipeline_mode<synchronous>, transform_indices = @transform_2, window_bounds = array<i64: 1, 512>}, {transform_indices = @transform_3, window_bounds = array<i64: 4, 512>}]} {
    %c0 = arith.constant 0 : index
    %c0_0 = arith.constant 0 : index
    %0 = vector.load %arg1[%c0, %c0_0] : memref<4x512xbf16, #tpu.memory_space<vmem>>, vector<4x512xbf16>
    %1 = arith.extf %0 : vector<4x512xbf16> to vector<4x512xf32>
    %c0_1 = arith.constant 0 : index
    %c0_2 = arith.constant 0 : index
    %2 = vector.load %arg2[%c0_1, %c0_2] : memref<1x512xf32, #tpu.memory_space<vmem>>, vector<1x512xf32>
    %3 = vector.broadcast %2 : vector<1x512xf32> to vector<4x512xf32>
    %4 = arith.mulf %1, %3 : vector<4x512xf32>
    %c0_3 = arith.constant 0 : index
    %c0_4 = arith.constant 0 : index
    %5 = vector.load %arg3[%c0_3, %c0_4] : memref<1x512xf32, #tpu.memory_space<vmem>>, vector<1x512xf32>
    %6 = vector.broadcast %5 : vector<1x512xf32> to vector<4x512xf32>
    %7 = arith.addf %4, %6 : vector<4x512xf32>
    %cst = arith.constant 0.000000e+00 : f32
    %8 = vector.broadcast %cst : f32 to vector<4x512xf32>
    %9 = arith.maximumf %7, %8 : vector<4x512xf32>
    %c0_5 = arith.constant 0 : index
    %c0_6 = arith.constant 0 : index
    %10 = vector.load %arg4[%c0_5, %c0_6] : memref<4x512xf32, #tpu.memory_space<vmem>>, vector<4x512xf32>
    tpu.vector_store %arg4[%c0_5, %c0_6], %9 {strides = array<i32>} : memref<4x512xf32, #tpu.memory_space<vmem>>, vector<4x512xf32>,
    return
  }
  func.func @transform_0(%arg0: i32) -> (i32, i32) {
    %c0_i32 = arith.constant 0 : i32
    %c0_i32_0 = arith.constant 0 : i32
    return %arg0, %c0_i32 : i32, i32
  }
  func.func @transform_1(%arg0: i32) -> (i32, i32) {
    %c0_i32 = arith.constant 0 : i32
    %c0_i32_0 = arith.constant 0 : i32
    %c0_i32_1 = arith.constant 0 : i32
    return %c0_i32, %c0_i32_0 : i32, i32
  }
  func.func @transform_2(%arg0: i32) -> (i32, i32) {
    %c0_i32 = arith.constant 0 : i32
    %c0_i32_0 = arith.constant 0 : i32
    %c0_i32_1 = arith.constant 0 : i32
    return %c0_i32, %c0_i32_0 : i32, i32
  }
  func.func @transform_3(%arg0: i32) -> (i32, i32) {
    %c0_i32 = arith.constant 0 : i32
    %c0_i32_0 = arith.constant 0 : i32
    return %arg0, %c0_i32 : i32, i32
  }
}

</mosaic_0001>

<llo_original>
// kernel: tile.38
$region0: #{tile.38}
  #allocation0 [shape = 's32[1]{0}', space=sflag, size = 0x4, scoped, tag = 'scoped memory for tile.38']
  %s0 = inlined_call_operand.vmem [shape: f32[4], index: 0, kind: input, shape index: {}]
  %s1 = inlined_call_operand.vmem [shape: f32[16,4], index: 1, kind: output, shape index: {}]
  // Predicated region
  $region2: #{tile.38} parent=0 // pred_check
    _
  $region3: #{tile.38} parent=0 // pred_check_branch
    %3 = sbr.rel (0) target = $region5
  $region4: #{tile.38} parent=0 // pred_region
    _
  $region5: #{tile.38} parent=0 // pred_fallthru
    _
  %v4 = vld [vmem:[%s0] ss:$0 sm:$0xff]
  %5 = vst [vmem:[%s1] sm:$0xff] %v4
  %s6 = scalar_lea.vmem %s1, 8
  %7 = vst [vmem:[%s6] sm:$0xff] %v4

// kernel: tile.39
$region0: #{tile.39}
  %s0 = inlined_call_operand.vmem [shape: f32[16,4], index: 0, kind: input, shape index: {}]
  %s1 = inlined_call_operand.vmem [shape: f32[1,64], index: 1, kind: output, shape index: {}]
  $region1: #{tile.39} parent=0
    #allocation0 [shape = 'u8[4096]{0}', space=vmem, size = 0x1000, scoped, tag = 'scoped mem for output reshape']
    %v2 = vld [vmem:[%s0] sm:$0x1]
    %vm3 = vcmask 31744
    %4 = vst.msk [vmem:[#allocation0] sm:$0x1] %vm3, %v2
    %s5 = scalar_lea.vmem %s0, 15
    %v6 = vld [vmem:[%s5] sm:$0x1]
    %7 = vrot.lane.b32.xlu0 %v6, 60
    %v8 = vpop.permute.xlu0 %7
    %vm9 = vcmask 523744
    %10 = vst.msk [vmem:[#allocation0] sm:$0x1] %vm9, %v8
    %s11 = scalar_lea.vmem %s0, 14
    %v12 = vld [vmem:[%s11] sm:$0x1]
    %13 = vrot.lane.b32.xlu0 %v12, 56
    %v14 = vpop.permute.xlu0 %13
    %vm15 = vcmask 490944
    %16 = vst.msk [vmem:[#allocation0] sm:$0x1] %vm15, %v14
    %s17 = scalar_lea.vmem %s0, 13
    %v18 = vld [vmem:[%s17] sm:$0x1]
    %19 = vrot.lane.b32.xlu0 %v18, 52
    %v20 = vpop.permute.xlu0 %19
    %vm21 = vcmask 458144
    %22 = vst.msk [vmem:[#allocation0] sm:$0x1] %vm21, %v20
    %s23 = scalar_lea.vmem %s0, 12
    %v24 = vld [vmem:[%s23] sm:$0x1]
    %25 = vrot.lane.b32.xlu0 %v24, 48
    %v26 = vpop.permute.xlu0 %25
    %vm27 = vcmask 425344
    %28 = vst.msk [vmem:[#allocation0] sm:$0x1] %vm27, %v26
    %s29 = scalar_lea.vmem %s0, 11
    %v30 = vld [vmem:[%s29] sm:$0x1]
    %31 = vrot.lane.b32.xlu0 %v30, 44
    %v32 = vpop.permute.xlu0 %31
    %vm33 = vcmask 392544
    %34 = vst.msk [vmem:[#allocation0] sm:$0x1] %vm33, %v32
    %s35 = scalar_lea.vmem %s0, 10
    %v36 = vld [vmem:[%s35] sm:$0x1]
    %37 = vrot.lane.b32.xlu0 %v36, 40
    %v38 = vpop.permute.xlu0 %37
    %vm39 = vcmask 359744
    %40 = vst.msk [vmem:[#allocation0] sm:$0x1] %vm39, %v38
    %s41 = scalar_lea.vmem %s0, 9
    %v42 = vld [vmem:[%s41] sm:$0x1]
    %43 = vrot.lane.b32.xlu0 %v42, 36
    %v44 = vpop.permute.xlu0 %43
    %vm45 = vcmask 326944
    %46 = vst.msk [vmem:[#allocation0] sm:$0x1] %vm45, %v44
    %s47 = scalar_lea.vmem %s0, 8
    %v48 = vld [vmem:[%s47] sm:$0x1]
    %49 = vrot.lane.b32.xlu0 %v48, 32
    %v50 = vpop.permute.xlu0 %49
    %vm51 = vcmask 294144
    %52 = vst.msk [vmem:[#allocation0] sm:$0x1] %vm51, %v50
    %s53 = scalar_lea.vmem %s0, 7
    %v54 = vld [vmem:[%s53] sm:$0x1]
    %55 = vrot.lane.b32.xlu0 %v54, 28
    %v56 = vpop.permute.xlu0 %55
    %vm57 = vcmask 261344
    %58 = vst.msk [vmem:[#allocation0] sm:$0x1] %vm57, %v56
    %s59 = scalar_lea.vmem %s0, 6
    %v60 = vld [vmem:[%s59] sm:$0x1]
    %61 = vrot.lane.b32.xlu0 %v60, 24
    %v62 = vpop.permute.xlu0 %61
    %vm63 = vcmask 228544
    %64 = vst.msk [vmem:[#allocation0] sm:$0x1] %vm63, %v62
    %s65 = scalar_lea.vmem %s0, 5
    %v66 = vld [vmem:[%s65] sm:$0x1]
    %67 = vrot.lane.b32.xlu0 %v66, 20
    %v68 = vpop.permute.xlu0 %67
    %vm69 = vcmask 195744
    %70 = vst.msk [vmem:[#allocation0] sm:$0x1] %vm69, %v68
    %s71 = scalar_lea.vmem %s0, 4
    %v72 = vld [vmem:[%s71] sm:$0x1]
    %73 = vrot.lane.b32.xlu0 %v72, 16
    %v74 = vpop.permute.xlu0 %73
    %vm75 = vcmask 162944
    %76 = vst.msk [vmem:[#allocation0] sm:$0x1] %vm75, %v74
    %s77 = scalar_lea.vmem %s0, 3
    %v78 = vld [vmem:[%s77] sm:$0x1]
    %79 = vrot.lane.b32.xlu0 %v78, 12
    %v80 = vpop.permute.xlu0 %79
    %vm81 = vcmask 130144
    %82 = vst.msk [vmem:[#allocation0] sm:$0x1] %vm81, %v80
    %s83 = scalar_lea.vmem %s0, 2
    %v84 = vld [vmem:[%s83] sm:$0x1]
    %85 = vrot.lane.b32.xlu0 %v84, 8
    %v86 = vpop.permute.xlu0 %85
    %vm87 = vcmask 97344
    %88 = vst.msk [vmem:[#allocation0] sm:$0x1] %vm87, %v86
    %s89 = scalar_lea.vmem %s0, 1
    %v90 = vld [vmem:[%s89] sm:$0x1]
    %91 = vrot.lane.b32.xlu0 %v90, 4
    %v92 = vpop.permute.xlu0 %91
    %vm93 = vcmask 64544
    %94 = vst.msk [vmem:[#allocation0] sm:$0x1] %vm93, %v92
    %s96 = sshll.u32 1, 1
    %s97 = ssub.s32 %s96, 1
    %v99 = vld [vmem:[#allocation0] sm:%s97]
    %s100 = sshll.u32 1, 1
    %s101 = ssub.s32 %s100, 1
    %102 = vst [vmem:[%s1] sm:%s101] %v99

// kernel: tile.63
$region0: #{tile.63}
  #allocation0 [shape = 's32[1]{0}', space=sflag, size = 0x4, scoped, tag = 'scoped memory for tile.63']
  %s0 = inlined_call_operand.vmem [shape: f32[4], index: 0, kind: input, shape index: {}]
  %s1 = inlined_call_operand.vmem [shape: f32[128,4], index: 1, kind: output, shape index: {}]
  // Predicated region
  $region2: #{tile.63} parent=0 // pred_check
    _
  $region3: #{tile.63} parent=0 // pred_check_branch
    %3 = sbr.rel (0) target = $region5
  $region4: #{tile.63} parent=0 // pred_region
    _
  $region5: #{tile.63} parent=0 // pred_fallthru
    _
  %v4 = vld [vmem:[%s0] ss:$0 sm:$0xff]
  %5 = vst [vmem:[%s1] sm:$0xff] %v4
  %s6 = scalar_lea.vmem %s1, 8
  %7 = vst [vmem:[%s6] sm:$0xff] %v4
  %s8 = scalar_lea.vmem %s1, 16
  %9 = vst [vmem:[%s8] sm:$0xff] %v4
  %s10 = scalar_lea.vmem %s1, 24
  %11 = vst [vmem:[%s10] sm:$0xff] %v4
  %s12 = scalar_lea.vmem %s1, 32
  %13 = vst [vmem:[%s12] sm:$0xff] %v4
  %s14 = scalar_lea.vmem %s1, 40
  %15 = vst [vmem:[%s14] sm:$0xff] %v4
  %s16 = scalar_lea.vmem %s1, 48
  %17 = vst [vmem:[%s16] sm:$0xff] %v4
  %s18 = scalar_lea.vmem %s1, 56
  %19 = vst [vmem:[%s18] sm:$0xff] %v4
  %s20 = scalar_lea.vmem %s1, 64
  %21 = vst [vmem:[%s20] sm:$0xff] %v4
  %s22 = scalar_lea.vmem %s1, 72
  %23 = vst [vmem:[%s22] sm:$0xff] %v4
  %s24 = scalar_lea.vmem %s1, 80
  %25 = vst [vmem:[%s24] sm:$0xff] %v4
  %s26 = scalar_lea.vmem %s1, 88
  %27 = vst [vmem:[%s26] sm:$0xff] %v4
  %s28 = scalar_lea.vmem %s1, 96
  %29 = vst [vmem:[%s28] sm:$0xff] %v4
  %s30 = scalar_lea.vmem %s1, 104
  %31 = vst [vmem:[%s30] sm:$0xff] %v4
  %s32 = scalar_lea.vmem %s1, 112
  %33 = vst [vmem:[%s32] sm:$0xff] %v4
  %s34 = scalar_lea.vmem %s1, 120
  %35 = vst [vmem:[%s34] sm:$0xff] %v4

// kernel: tile.64
$region0: #{tile.64}
  %s0 = inlined_call_operand.vmem [shape: f32[128,4], index: 0, kind: input, shape index: {}]
  %s1 = inlined_call_operand.vmem [shape: f32[1,512], index: 1, kind: output, shape index: {}]
  $region1: #{tile.64} parent=0
    #allocation0 [shape = 'u8[16384]{0}', space=vmem, size = 0x4000, scoped, tag = 'scoped mem for output reshape']
    %v2 = vld [vmem:[%s0] sm:$0x1]
    %s3 = scalar_lea.vmem %s0, 31
    %v4 = vld [vmem:[%s3] sm:$0x2]
    %vm5 = vcmask 1041409
    %v6 = vsel %vm5, %v4, %v2
    %s7 = scalar_lea.vmem %s0, 62
    %v8 = vld [vmem:[%s7] sm:$0x4]
    %vm9 = vcmask 1042434
    %v10 = vsel %vm9, %v8, %v6
    %s11 = scalar_lea.vmem %s0, 93
    %v12 = vld [vmem:[%s11] sm:$0x8]
    %vm13 = vcmask 1043459
    %v14 = vsel %vm13, %v12, %v10
    %vm15 = vcmask 31744
    %16 = vst.msk [vmem:[#allocation0] ss:$8 sm:$0xf] %vm15, %v14
    %s17 = scalar_lea.vmem %s0, 31
    %v18 = vld [vmem:[%s17] sm:$0x1]
    %s19 = scalar_lea.vmem %s0, 62
    %v20 = vld [vmem:[%s19] sm:$0x2]
    %vm21 = vcmask 1041409
    %v22 = vsel %vm21, %v20, %v18
    %s23 = scalar_lea.vmem %s0, 93
    %v24 = vld [vmem:[%s23] sm:$0x4]
    %vm25 = vcmask 1042434
    %v26 = vsel %vm25, %v24, %v22
    %s27 = scalar_lea.vmem %s0, 124
    %v28 = vld [vmem:[%s27] sm:$0x8]
    %vm29 = vcmask 1043459
    %v30 = vsel %vm29, %v28, %v26
    %31 = vrot.lane.b32.xlu0 %v30, 124
    %v32 = vpop.permute.xlu0 %31
    %vm33 = vcmask 1048544
    %34 = vst.msk [vmem:[#allocation0] ss:$8 sm:$0xf] %vm33, %v32
    %s35 = scalar_lea.vmem %s0, 30
    %v36 = vld [vmem:[%s35] sm:$0x1]
    %s37 = scalar_lea.vmem %s0, 61
    %v38 = vld [vmem:[%s37] sm:$0x2]
    %vm39 = vcmask 1041409
    %v40 = vsel %vm39, %v38, %v36
    %s41 = scalar_lea.vmem %s0, 92
    %v42 = vld [vmem:[%s41] sm:$0x4]
    %vm43 = vcmask 1042434
    %v44 = vsel %vm43, %v42, %v40
    %s45 = scalar_lea.vmem %s0, 123
    %v46 = vld [vmem:[%s45] sm:$0x8]
    %vm47 = vcmask 1043459
    %v48 = vsel %vm47, %v46, %v44
    %49 = vrot.lane.b32.xlu0 %v48, 120
    %v50 = vpop.permute.xlu0 %49
    %vm51 = vcmask 1015744
    %52 = vst.msk [vmem:[#allocation0] ss:$8 sm:$0xf] %vm51, %v50
    %s53 = scalar_lea.vmem %s0, 29
    %v54 = vld [vmem:[%s53] sm:$0x1]
    %s55 = scalar_lea.vmem %s0, 60
    %v56 = vld [vmem:[%s55] sm:$0x2]
    %vm57 = vcmask 1041409
    %v58 = vsel %vm57, %v56, %v54
    %s59 = scalar_lea.vmem %s0, 91
    %v60 = vld [vmem:[%s59] sm:$0x4]
    %vm61 = vcmask 1042434
    %v62 = vsel %vm61, %v60, %v58
    %s63 = scalar_lea.vmem %s0, 122
    %v64 = vld [vmem:[%s63] sm:$0x8]
    %vm65 = vcmask 1043459
    %v66 = vsel %vm65, %v64, %v62
    %67 = vrot.lane.b32.xlu0 %v66, 116
    %v68 = vpop.permute.xlu0 %67
    %vm69 = vcmask 982944
    %70 = vst.msk [vmem:[#allocation0] ss:$8 sm:$0xf] %vm69, %v68
    %s71 = scalar_lea.vmem %s0, 28
    %v72 = vld [vmem:[%s71] sm:$0x1]
    %s73 = scalar_lea.vmem %s0, 59
    %v74 = vld [vmem:[%s73] sm:$0x2]
    %vm75 = vcmask 1041409
    %v76 = vsel %vm75, %v74, %v72
    %s77 = scalar_lea.vmem %s0, 90
    %v78 = vld [vmem:[%s77] sm:$0x4]
    %vm79 = vcmask 1042434
    %v80 = vsel %vm79, %v78, %v76
    %s81 = scalar_lea.vmem %s0, 121
    %v82 = vld [vmem:[%s81] sm:$0x8]
    %vm83 = vcmask 1043459
    %v84 = vsel %vm83, %v82, %v80
    %85 = vrot.lane.b32.xlu0 %v84, 112
    %v86 = vpop.permute.xlu0 %85
    %vm87 = vcmask 950144
    %88 = vst.msk [vmem:[#allocation0] ss:$8 sm:$0xf] %vm87, %v86
    %s89 = scalar_lea.vmem %s0, 27
    %v90 = vld [vmem:[%s89] sm:$0x1]
    %s91 = scalar_lea.vmem %s0, 58
    %v92 = vld [vmem:[%s91] sm:$0x2]
    %vm93 = vcmask 1041409
    %v94 = vsel %vm93, %v92, %v90
    %s95 = scalar_lea.vmem %s0, 89
    %v96 = vld [vmem:[%s95] sm:$0x4]
    %vm97 = vcmask 1042434
    %v98 = vsel %vm97, %v96, %v94
    %s99 = scalar_lea.vmem %s0, 120
    %v100 = vld [vmem:[%s99] sm:$0x8]
    %vm101 = vcmask 1043459
    %v102 = vsel %vm101, %v100, %v98
    %103 = vrot.lane.b32.xlu0 %v102, 108
    %v104 = vpop.permute.xlu0 %103
    %vm105 = vcmask 917344
    %106 = vst.msk [vmem:[#allocation0] ss:$8 sm:$0xf] %vm105, %v104
    %s107 = scalar_lea.vmem %s0, 26
    %v108 = vld [vmem:[%s107] sm:$0x1]
    %s109 = scalar_lea.vmem %s0, 57
    %v110 = vld [vmem:[%s109] sm:$0x2]
    %vm111 = vcmask 1041409
    %v112 = vsel %vm111, %v110, %v108
    %s113 = scalar_lea.vmem %s0, 88
    %v114 = vld [vmem:[%s113] sm:$0x4]
    %vm115 = vcmask 1042434
    %v116 = vsel %vm115, %v114, %v112
    %s117 = scalar_lea.vmem %s0, 119
    %v118 = vld [vmem:[%s117] sm:$0x8]
    %vm119 = vcmask 1043459
    %v120 = vsel %vm119, %v118, %v116
    %121 = vrot.lane.b32.xlu0 %v120, 104
    %v122 = vpop.permute.xlu0 %121
    %vm123 = vcmask 884544
    %124 = vst.msk [vmem:[#allocation0] ss:$8 sm:$0xf] %vm123, %v122
    %s125 = scalar_lea.vmem %s0, 25
    %v126 = vld [vmem:[%s125] sm:$0x1]
    %s127 = scalar_lea.vmem %s0, 56
    %v128 = vld [vmem:[%s127] sm:$0x2]
    %vm129 = vcmask 1041409
    %v130 = vsel %vm129, %v128, %v126
    %s131 = scalar_lea.vmem %s0, 87
    %v132 = vld [vmem:[%s131] sm:$0x4]
    %vm133 = vcmask 1042434
    %v134 = vsel %vm133, %v132, %v130
    %s135 = scalar_lea.vmem %s0, 118
    %v136 = vld [vmem:[%s135] sm:$0x8]
    %vm137 = vcmask 1043459
    %v138 = vsel %vm137, %v136, %v134
    %139 = vrot.lane.b32.xlu0 %v138, 100
    %v140 = vpop.permute.xlu0 %139
    %vm141 = vcmask 851744
    %142 = vst.msk [vmem:[#allocation0] ss:$8 sm:$0xf] %vm141, %v140
    %s143 = scalar_lea.vmem %s0, 24
    %v144 = vld [vmem:[%s143] sm:$0x1]
    %s145 = scalar_lea.vmem %s0, 55
    %v146 = vld [vmem:[%s145] sm:$0x2]
    %vm147 = vcmask 1041409
    %v148 = vsel %vm147, %v146, %v144
    %s149 = scalar_lea.vmem %s0, 86
    %v150 = vld [vmem:[%s149] sm:$0x4]
    %vm151 = vcmask 1042434
    %v152 = vsel %vm151, %v150, %v148
    %s153 = scalar_lea.vmem %s0, 117
    %v154 = vld [vmem:[%s153] sm:$0x8]
    %vm155 = vcmask 1043459
    %v156 = vsel %vm155, %v154, %v152
    %157 = vrot.lane.b32.xlu0 %v156, 96
    %v158 = vpop.permute.xlu0 %157
    %vm159 = vcmask 818944
    %160 = vst.msk [vmem:[#allocation0] ss:$8 sm:$0xf] %vm159, %v158
    %s161 = scalar_lea.vmem %s0, 23
    %v162 = vld [vmem:[%s161] sm:$0x1]
    %s163 = scalar_lea.vmem %s0, 54
    %v164 = vld [vmem:[%s163] sm:$0x2]
    %vm165 = vcmask 1041409
    %v166 = vsel %vm165, %v164, %v162
    %s167 = scalar_lea.vmem %s0, 85
    %v168 = vld [vmem:[%s167] sm:$0x4]
    %vm169 = vcmask 1042434
    %v170 = vsel %vm169, %v168, %v166
    %s171 = scalar_lea.vmem %s0, 116
    %v172 = vld [vmem:[%s171] sm:$0x8]
    %vm173 = vcmask 1043459
    %v174 = vsel %vm173, %v172, %v170
    %175 = vrot.lane.b32.xlu0 %v174, 92
    %v176 = vpop.permute.xlu0 %175
    %vm177 = vcmask 786144
    %178 = vst.msk [vmem:[#allocation0] ss:$8 sm:$0xf] %vm177, %v176
    %s179 = scalar_lea.vmem %s0, 22
    %v180 = vld [vmem:[%s179] sm:$0x1]
    %s181 = scalar_lea.vmem %s0, 53
    %v182 = vld [vmem:[%s181] sm:$0x2]
    %vm183 = vcmask 1041409
    %v184 = vsel %vm183, %v182, %v180
    %s185 = scalar_lea.vmem %s0, 84
    %v186 = vld [vmem:[%s185] sm:$0x4]
    %vm187 = vcmask 1042434
    %v188 = vsel %vm187, %v186, %v184
    %s189 = scalar_lea.vmem %s0, 115
    %v190 = vld [vmem:[%s189] sm:$0x8]
    %vm191 = vcmask 1043459
    %v192 = vsel %vm191, %v190, %v188
    %193 = vrot.lane.b32.xlu0 %v192, 88
    %v194 = vpop.permute.xlu0 %193
    %vm195 = vcmask 753344
    %196 = vst.msk [vmem:[#allocation0] ss:$8 sm:$0xf] %vm195, %v194
    %s197 = scalar_lea.vmem %s0, 21
    %v198 = vld [vmem:[%s197] sm:$0x1]
    %s199 = scalar_lea.vmem %s0, 52
    %v200 = vld [vmem:[%s199] sm:$0x2]
    %vm201 = vcmask 1041409
    %v202 = vsel %vm201, %v200, %v198
    %s203 = scalar_lea.vmem %s0, 83
    %v204 = vld [vmem:[%s203] sm:$0x4]
    %vm205 = vcmask 1042434
    %v206 = vsel %vm205, %v204, %v202
    %s207 = scalar_lea.vmem %s0, 114
    %v208 = vld [vmem:[%s207] sm:$0x8]
    %vm209 = vcmask 1043459
    %v210 = vsel %vm209, %v208, %v206
    %211 = vrot.lane.b32.xlu0 %v210, 84
    %v212 = vpop.permute.xlu0 %211
    %vm213 = vcmask 720544
    %214 = vst.msk [vmem:[#allocation0] ss:$8 sm:$0xf] %vm213, %v212
    %s215 = scalar_lea.vmem %s0, 20
    %v216 = vld [vmem:[%s215] sm:$0x1]
    %s217 = scalar_lea.vmem %s0, 51
    %v218 = vld [vmem:[%s217] sm:$0x2]
    %vm219 = vcmask 1041409
    %v220 = vsel %vm219, %v218, %v216
    %s221 = scalar_lea.vmem %s0, 82
    %v222 = vld [vmem:[%s221] sm:$0x4]
    %vm223 = vcmask 1042434
    %v224 = vsel %vm223, %v222, %v220
    %s225 = scalar_lea.vmem %s0, 113
    %v226 = vld [vmem:[%s225] sm:$0x8]
    %vm227 = vcmask 1043459
    %v228 = vsel %vm227, %v226, %v224
    %229 = vrot.lane.b32.xlu0 %v228, 80
    %v230 = vpop.permute.xlu0 %229
    %vm231 = vcmask 687744
    %232 = vst.msk [vmem:[#allocation0] ss:$8 sm:$0xf] %vm231, %v230
    %s233 = scalar_lea.vmem %s0, 19
    %v234 = vld [vmem:[%s233] sm:$0x1]
    %s235 = scalar_lea.vmem %s0, 50
    %v236 = vld [vmem:[%s235] sm:$0x2]
    %vm237 = vcmask 1041409
    %v238 = vsel %vm237, %v236, %v234
    %s239 = scalar_lea.vmem %s0, 81
    %v240 = vld [vmem:[%s239] sm:$0x4]
    %vm241 = vcmask 1042434
    %v242 = vsel %vm241, %v240, %v238
    %s243 = scalar_lea.vmem %s0, 112
    %v244 = vld [vmem:[%s243] sm:$0x8]
    %vm245 = vcmask 1043459
    %v246 = vsel %vm245, %v244, %v242
    %247 = vrot.lane.b32.xlu0 %v246, 76
    %v248 = vpop.permute.xlu0 %247
    %vm249 = vcmask 654944
    %250 = vst.msk [vmem:[#allocation0] ss:$8 sm:$0xf] %vm249, %v248
    %s251 = scalar_lea.vmem %s0, 18
    %v252 = vld [vmem:[%s251] sm:$0x1]
    %s253 = scalar_lea.vmem %s0, 49
    %v254 = vld [vmem:[%s253] sm:$0x2]
    %vm255 = vcmask 1041409
    %v256 = vsel %vm255, %v254, %v252
    %s257 = scalar_lea.vmem %s0, 80
    %v258 = vld [vmem:[%s257] sm:$0x4]
    %vm259 = vcmask 1042434
    %v260 = vsel %vm259, %v258, %v256
    %s261 = scalar_lea.vmem %s0, 111
    %v262 = vld [vmem:[%s261] sm:$0x8]
    %vm263 = vcmask 1043459
    %v264 = vsel %vm263, %v262, %v260
    %265 = vrot.lane.b32.xlu0 %v264, 72
    %v266 = vpop.permute.xlu0 %265
    %vm267 = vcmask 622144
    %268 = vst.msk [vmem:[#allocation0] ss:$8 sm:$0xf] %vm267, %v266
    %s269 = scalar_lea.vmem %s0, 17
    %v270 = vld [vmem:[%s269] sm:$0x1]
    %s271 = scalar_lea.vmem %s0, 48
    %v272 = vld [vmem:[%s271] sm:$0x2]
    %vm273 = vcmask 1041409
    %v274 = vsel %vm273, %v272, %v270
    %s275 = scalar_lea.vmem %s0, 79
    %v276 = vld [vmem:[%s275] sm:$0x4]
    %vm277 = vcmask 1042434
    %v278 = vsel %vm277, %v276, %v274
    %s279 = scalar_lea.vmem %s0, 110
    %v280 = vld [vmem:[%s279] sm:$0x8]
    %vm281 = vcmask 1043459
    %v282 = vsel %vm281, %v280, %v278
    %283 = vrot.lane.b32.xlu0 %v282, 68
    %v284 = vpop.permute.xlu0 %283
    %vm285 = vcmask 589344
    %286 = vst.msk [vmem:[#allocation0] ss:$8 sm:$0xf] %vm285, %v284
    %s287 = scalar_lea.vmem %s0, 16
    %v288 = vld [vmem:[%s287] sm:$0x1]
    %s289 = scalar_lea.vmem %s0, 47
    %v290 = vld [vmem:[%s289] sm:$0x2]
    %vm291 = vcmask 1041409
    %v292 = vsel %vm291, %v290, %v288
    %s293 = scalar_lea.vmem %s0, 78
    %v294 = vld [vmem:[%s293] sm:$0x4]
    %vm295 = vcmask 1042434
    %v296 = vsel %vm295, %v294, %v292
    %s297 = scalar_lea.vmem %s0, 109
    %v298 = vld [vmem:[%s297] sm:$0x8]
    %vm299 = vcmask 1043459
    %v300 = vsel %vm299, %v298, %v296
    %301 = vrot.lane.b32.xlu0 %v300, 64
    %v302 = vpop.permute.xlu0 %301
    %vm303 = vcmask 556544
    %304 = vst.msk [vmem:[#allocation0] ss:$8 sm:$0xf] %vm303, %v302
    %s305 = scalar_lea.vmem %s0, 15
    %v306 = vld [vmem:[%s305] sm:$0x1]
    %s307 = scalar_lea.vmem %s0, 46
    %v308 = vld [vmem:[%s307] sm:$0x2]
    %vm309 = vcmask 1041409
    %v310 = vsel %vm309, %v308, %v306
    %s311 = scalar_lea.vmem %s0, 77
    %v312 = vld [vmem:[%s311] sm:$0x4]
    %vm313 = vcmask 1042434
    %v314 = vsel %vm313, %v312, %v310
    %s315 = scalar_lea.vmem %s0, 108
    %v316 = vld [vmem:[%s315] sm:$0x8]
    %vm317 = vcmask 1043459
    %v318 = vsel %vm317, %v316, %v314
    %319 = vrot.lane.b32.xlu0 %v318, 60
    %v320 = vpop.permute.xlu0 %319
    %vm321 = vcmask 523744
    %322 = vst.msk [vmem:[#allocation0] ss:$8 sm:$0xf] %vm321, %v320
    %s323 = scalar_lea.vmem %s0, 14
    %v324 = vld [vmem:[%s323] sm:$0x1]
    %s325 = scalar_lea.vmem %s0, 45
    %v326 = vld [vmem:[%s325] sm:$0x2]
    %vm327 = vcmask 1041409
    %v328 = vsel %vm327, %v326, %v324
    %s329 = scalar_lea.vmem %s0, 76
    %v330 = vld [vmem:[%s329] sm:$0x4]
    %vm331 = vcmask 1042434
    %v332 = vsel %vm331, %v330, %v328
    %s333 = scalar_lea.vmem %s0, 107
    %v334 = vld [vmem:[%s333] sm:$0x8]
    %vm335 = vcmask 1043459
    %v336 = vsel %vm335, %v334, %v332
    %337 = vrot.lane.b32.xlu0 %v336, 56
    %v338 = vpop.permute.xlu0 %337
    %vm339 = vcmask 490944
    %340 = vst.msk [vmem:[#allocation0] ss:$8 sm:$0xf] %vm339, %v338
    %s341 = scalar_lea.vmem %s0, 13
    %v342 = vld [vmem:[%s341] sm:$0x1]
    %s343 = scalar_lea.vmem %s0, 44
    %v344 = vld [vmem:[%s343] sm:$0x2]
    %vm345 = vcmask 1041409
    %v346 = vsel %vm345, %v344, %v342
    %s347 = scalar_lea.vmem %s0, 75
    %v348 = vld [vmem:[%s347] sm:$0x4]
    %vm349 = vcmask 1042434
    %v350 = vsel %vm349, %v348, %v346
    %s351 = scalar_lea.vmem %s0, 106
    %v352 = vld [vmem:[%s351] sm:$0x8]
    %vm353 = vcmask 1043459
    %v354 = vsel %vm353, %v352, %v350
    %355 = vrot.lane.b32.xlu0 %v354, 52
    %v356 = vpop.permute.xlu0 %355
    %vm357 = vcmask 458144
    %358 = vst.msk [vmem:[#allocation0] ss:$8 sm:$0xf] %vm357, %v356
    %s359 = scalar_lea.vmem %s0, 12
    %v360 = vld [vmem:[%s359] sm:$0x1]
    %s361 = scalar_lea.vmem %s0, 43
    %v362 = vld [vmem:[%s361] sm:$0x2]
    %vm363 = vcmask 1041409
    %v364 = vsel %vm363, %v362, %v360
    %s365 = scalar_lea.vmem %s0, 74
    %v366 = vld [vmem:[%s365] sm:$0x4]
    %vm367 = vcmask 1042434
    %v368 = vsel %vm367, %v366, %v364
    %s369 = scalar_lea.vmem %s0, 105
    %v370 = vld [vmem:[%s369] sm:$0x8]
    %vm371 = vcmask 1043459
    %v372 = vsel %vm371, %v370, %v368
    %373 = vrot.lane.b32.xlu0 %v372, 48
    %v374 = vpop.permute.xlu0 %373
    %vm375 = vcmask 425344
    %376 = vst.msk [vmem:[#allocation0] ss:$8 sm:$0xf] %vm375, %v374
    %s377 = scalar_lea.vmem %s0, 11
    %v378 = vld [vmem:[%s377] sm:$0x1]
    %s379 = scalar_lea.vmem %s0, 42
    %v380 = vld [vmem:[%s379] sm:$0x2]
    %vm381 = vcmask 1041409
    %v382 = vsel %vm381, %v380, %v378
    %s383 = scalar_lea.vmem %s0, 73
    %v384 = vld [vmem:[%s383] sm:$0x4]
    %vm385 = vcmask 1042434
    %v386 = vsel %vm385, %v384, %v382
    %s387 = scalar_lea.vmem %s0, 104
    %v388 = vld [vmem:[%s387] sm:$0x8]
    %vm389 = vcmask 1043459
    %v390 = vsel %vm389, %v388, %v386
    %391 = vrot.lane.b32.xlu0 %v390, 44
    %v392 = vpop.permute.xlu0 %391
    %vm393 = vcmask 392544
    %394 = vst.msk [vmem:[#allocation0] ss:$8 sm:$0xf] %vm393, %v392
    %s395 = scalar_lea.vmem %s0, 10
    %v396 = vld [vmem:[%s395] sm:$0x1]
    %s397 = scalar_lea.vmem %s0, 41
    %v398 = vld [vmem:[%s397] sm:$0x2]
    %vm399 = vcmask 1041409
    %v400 = vsel %vm399, %v398, %v396
    %s401 = scalar_lea.vmem %s0, 72
    %v402 = vld [vmem:[%s401] sm:$0x4]
    %vm403 = vcmask 1042434
    %v404 = vsel %vm403, %v402, %v400
    %s405 = scalar_lea.vmem %s0, 103
    %v406 = vld [vmem:[%s405] sm:$0x8]
    %vm407 = vcmask 1043459
    %v408 = vsel %vm407, %v406, %v404
    %409 = vrot.lane.b32.xlu0 %v408, 40
    %v410 = vpop.permute.xlu0 %409
    %vm411 = vcmask 359744
    %412 = vst.msk [vmem:[#allocation0] ss:$8 sm:$0xf] %vm411, %v410
    %s413 = scalar_lea.vmem %s0, 9
    %v414 = vld [vmem:[%s413] sm:$0x1]
    %s415 = scalar_lea.vmem %s0, 40
    %v416 = vld [vmem:[%s415] sm:$0x2]
    %vm417 = vcmask 1041409
    %v418 = vsel %vm417, %v416, %v414
    %s419 = scalar_lea.vmem %s0, 71
    %v420 = vld [vmem:[%s419] sm:$0x4]
    %vm421 = vcmask 1042434
    %v422 = vsel %vm421, %v420, %v418
    %s423 = scalar_lea.vmem %s0, 102
    %v424 = vld [vmem:[%s423] sm:$0x8]
    %vm425 = vcmask 1043459
    %v426 = vsel %vm425, %v424, %v422
    %427 = vrot.lane.b32.xlu0 %v426, 36
    %v428 = vpop.permute.xlu0 %427
    %vm429 = vcmask 326944
    %430 = vst.msk [vmem:[#allocation0] ss:$8 sm:$0xf] %vm429, %v428
    %s431 = scalar_lea.vmem %s0, 8
    %v432 = vld [vmem:[%s431] sm:$0x1]
    %s433 = scalar_lea.vmem %s0, 39
    %v434 = vld [vmem:[%s433] sm:$0x2]
    %vm435 = vcmask 1041409
    %v436 = vsel %vm435, %v434, %v432
    %s437 = scalar_lea.vmem %s0, 70
    %v438 = vld [vmem:[%s437] sm:$0x4]
    %vm439 = vcmask 1042434
    %v440 = vsel %vm439, %v438, %v436
    %s441 = scalar_lea.vmem %s0, 101
    %v442 = vld [vmem:[%s441] sm:$0x8]
    %vm443 = vcmask 1043459
    %v444 = vsel %vm443, %v442, %v440
    %445 = vrot.lane.b32.xlu0 %v444, 32
    %v446 = vpop.permute.xlu0 %445
    %vm447 = vcmask 294144
    %448 = vst.msk [vmem:[#allocation0] ss:$8 sm:$0xf] %vm447, %v446
    %s449 = scalar_lea.vmem %s0, 7
    %v450 = vld [vmem:[%s449] sm:$0x1]
    %s451 = scalar_lea.vmem %s0, 38
    %v452 = vld [vmem:[%s451] sm:$0x2]
    %vm453 = vcmask 1041409
    %v454 = vsel %vm453, %v452, %v450
    %s455 = scalar_lea.vmem %s0, 69
    %v456 = vld [vmem:[%s455] sm:$0x4]
    %vm457 = vcmask 1042434
    %v458 = vsel %vm457, %v456, %v454
    %s459 = scalar_lea.vmem %s0, 100
    %v460 = vld [vmem:[%s459] sm:$0x8]
    %vm461 = vcmask 1043459
    %v462 = vsel %vm461, %v460, %v458
    %463 = vrot.lane.b32.xlu0 %v462, 28
    %v464 = vpop.permute.xlu0 %463
    %vm465 = vcmask 261344
    %466 = vst.msk [vmem:[#allocation0] ss:$8 sm:$0xf] %vm465, %v464
    %s467 = scalar_lea.vmem %s0, 6
    %v468 = vld [vmem:[%s467] sm:$0x1]
    %s469 = scalar_lea.vmem %s0, 37
    %v470 = vld [vmem:[%s469] sm:$0x2]
    %vm471 = vcmask 1041409
    %v472 = vsel %vm471, %v470, %v468
    %s473 = scalar_lea.vmem %s0, 68
    %v474 = vld [vmem:[%s473] sm:$0x4]
    %vm475 = vcmask 1042434
    %v476 = vsel %vm475, %v474, %v472
    %s477 = scalar_lea.vmem %s0, 99
    %v478 = vld [vmem:[%s477] sm:$0x8]
    %vm479 = vcmask 1043459
    %v480 = vsel %vm479, %v478, %v476
    %481 = vrot.lane.b32.xlu0 %v480, 24
    %v482 = vpop.permute.xlu0 %481
    %vm483 = vcmask 228544
    %484 = vst.msk [vmem:[#allocation0] ss:$8 sm:$0xf] %vm483, %v482
    %s485 = scalar_lea.vmem %s0, 5
    %v486 = vld [vmem:[%s485] sm:$0x1]
    %s487 = scalar_lea.vmem %s0, 36
    %v488 = vld [vmem:[%s487] sm:$0x2]
    %vm489 = vcmask 1041409
    %v490 = vsel %vm489, %v488, %v486
    %s491 = scalar_lea.vmem %s0, 67
    %v492 = vld [vmem:[%s491] sm:$0x4]
    %vm493 = vcmask 1042434
    %v494 = vsel %vm493, %v492, %v490
    %s495 = scalar_lea.vmem %s0, 98
    %v496 = vld [vmem:[%s495] sm:$0x8]
    %vm497 = vcmask 1043459
    %v498 = vsel %vm497, %v496, %v494
    %499 = vrot.lane.b32.xlu0 %v498, 20
    %v500 = vpop.permute.xlu0 %499
    %vm501 = vcmask 195744
    %502 = vst.msk [vmem:[#allocation0] ss:$8 sm:$0xf] %vm501, %v500
    %s503 = scalar_lea.vmem %s0, 4
    %v504 = vld [vmem:[%s503] sm:$0x1]
    %s505 = scalar_lea.vmem %s0, 35
    %v506 = vld [vmem:[%s505] sm:$0x2]
    %vm507 = vcmask 1041409
    %v508 = vsel %vm507, %v506, %v504
    %s509 = scalar_lea.vmem %s0, 66
    %v510 = vld [vmem:[%s509] sm:$0x4]
    %vm511 = vcmask 1042434
    %v512 = vsel %vm511, %v510, %v508
    %s513 = scalar_lea.vmem %s0, 97
    %v514 = vld [vmem:[%s513] sm:$0x8]
    %vm515 = vcmask 1043459
    %v516 = vsel %vm515, %v514, %v512
    %517 = vrot.lane.b32.xlu0 %v516, 16
    %v518 = vpop.permute.xlu0 %517
    %vm519 = vcmask 162944
    %520 = vst.msk [vmem:[#allocation0] ss:$8 sm:$0xf] %vm519, %v518
    %s521 = scalar_lea.vmem %s0, 3
    %v522 = vld [vmem:[%s521] sm:$0x1]
    %s523 = scalar_lea.vmem %s0, 34
    %v524 = vld [vmem:[%s523] sm:$0x2]
    %vm525 = vcmask 1041409
    %v526 = vsel %vm525, %v524, %v522
    %s527 = scalar_lea.vmem %s0, 65
    %v528 = vld [vmem:[%s527] sm:$0x4]
    %vm529 = vcmask 1042434
    %v530 = vsel %vm529, %v528, %v526
    %s531 = scalar_lea.vmem %s0, 96
    %v532 = vld [vmem:[%s531] sm:$0x8]
    %vm533 = vcmask 1043459
    %v534 = vsel %vm533, %v532, %v530
    %535 = vrot.lane.b32.xlu0 %v534, 12
    %v536 = vpop.permute.xlu0 %535
    %vm537 = vcmask 130144
    %538 = vst.msk [vmem:[#allocation0] ss:$8 sm:$0xf] %vm537, %v536
    %s539 = scalar_lea.vmem %s0, 2
    %v540 = vld [vmem:[%s539] sm:$0x1]
    %s541 = scalar_lea.vmem %s0, 33
    %v542 = vld [vmem:[%s541] sm:$0x2]
    %vm543 = vcmask 1041409
    %v544 = vsel %vm543, %v542, %v540
    %s545 = scalar_lea.vmem %s0, 64
    %v546 = vld [vmem:[%s545] sm:$0x4]
    %vm547 = vcmask 1042434
    %v548 = vsel %vm547, %v546, %v544
    %s549 = scalar_lea.vmem %s0, 95
    %v550 = vld [vmem:[%s549] sm:$0x8]
    %vm551 = vcmask 1043459
    %v552 = vsel %vm551, %v550, %v548
    %553 = vrot.lane.b32.xlu0 %v552, 8
    %v554 = vpop.permute.xlu0 %553
    %vm555 = vcmask 97344
    %556 = vst.msk [vmem:[#allocation0] ss:$8 sm:$0xf] %vm555, %v554
    %s557 = scalar_lea.vmem %s0, 1
    %v558 = vld [vmem:[%s557] sm:$0x1]
    %s559 = scalar_lea.vmem %s0, 32
    %v560 = vld [vmem:[%s559] sm:$0x2]
    %vm561 = vcmask 1041409
    %v562 = vsel %vm561, %v560, %v558
    %s563 = scalar_lea.vmem %s0, 63
    %v564 = vld [vmem:[%s563] sm:$0x4]
    %vm565 = vcmask 1042434
    %v566 = vsel %vm565, %v564, %v562
    %s567 = scalar_lea.vmem %s0, 94
    %v568 = vld [vmem:[%s567] sm:$0x8]
    %vm569 = vcmask 1043459
    %v570 = vsel %vm569, %v568, %v566
    %571 = vrot.lane.b32.xlu0 %v570, 4
    %v572 = vpop.permute.xlu0 %571
    %vm573 = vcmask 64544
    %574 = vst.msk [vmem:[#allocation0] ss:$8 sm:$0xf] %vm573, %v572
    %s576 = sshll.u32 1, 1
    %s577 = ssub.s32 %s576, 1
    %v579 = vld [vmem:[#allocation0] sm:%s577]
    %s580 = sshll.u32 1, 1
    %s581 = ssub.s32 %s580, 1
    %582 = vst [vmem:[%s1] sm:%s581] %v579
    %s583 = scalar_lea.vmem [#allocation0], 8
    %v584 = vld [vmem:[%s583] sm:%s577]
    %s585 = sshll.u32 1, 1
    %s586 = ssub.s32 %s585, 1
    %s587 = scalar_lea.vmem %s1, 1
    %588 = vst [vmem:[%s587] sm:%s586] %v584
    %s589 = scalar_lea.vmem [#allocation0], 16
    %v590 = vld [vmem:[%s589] sm:%s577]
    %s591 = sshll.u32 1, 1
    %s592 = ssub.s32 %s591, 1
    %s593 = smul.addr 1, 2
    %s594 = scalar_lea.vmem %s1, %s593
    %595 = vst [vmem:[%s594] sm:%s592] %v590
    %s596 = scalar_lea.vmem [#allocation0], 24
    %v597 = vld [vmem:[%s596] sm:%s577]
    %s598 = sshll.u32 1, 1
    %s599 = ssub.s32 %s598, 1
    %s600 = smul.addr 1, 3
    %s601 = scalar_lea.vmem %s1, %s600
    %602 = vst [vmem:[%s601] sm:%s599] %v597

// kernel: upsample_block_forward.4
$region0: #{upsample_block_forward.4}
  #allocation0 [shape = 'u32[]', space=smem, size = 0x4, offset = 0x4, fixed_abs, tag = 'smem constant byte address 0x4 - core index']
  #allocation1 [shape = 'u32[144,128]{1,0:T(1,128)}', space=vmem, size = 0x12000, scoped, tag = 'internal scratch']
  #allocation2 [shape = 'f32[9,64]{1,0:T(8,128)}', space=vmem, size = 0x2000, scoped, tag = 'scratch operand']
  #allocation3 [shape = 'f32[9,64]{1,0:T(8,128)}', space=vmem, size = 0x2000, scoped, tag = 'scratch operand']
  %s0 = inlined_call_operand.vmem [shape: bf16[2,2,8,64], index: 0, kind: input, shape index: {}]
  %s1 = inlined_call_operand.vmem [shape: f32[1,64], index: 1, kind: input, shape index: {}]
  %s2 = inlined_call_operand.vmem [shape: f32[1,64], index: 2, kind: input, shape index: {}]
  %s3 = inlined_call_operand.vmem [shape: bf16[3,64,64], index: 3, kind: input, shape index: {}]
  %s4 = inlined_call_operand.vmem [shape: f32[1,64], index: 4, kind: input, shape index: {}]
  %s5 = inlined_call_operand.vmem [shape: bf16[2,2,8,64], index: 5, kind: output, shape index: {0}]
  %s6 = inlined_call_operand.vmem [shape: f32[2,1,64], index: 6, kind: output, shape index: {1}]
  %s7 = inlined_call_operand.vmem [shape: f32[2,1,64], index: 7, kind: output, shape index: {2}]
  %8 = xla_tuple %s5, %s6, %s7
  %s9 = sld [smem:[#allocation0]]
  $region69: #{upsample_block_forward.4} parent=0
    _
  %s11 = ssub.s32 1, %s9
  %s12 = scalar_select 0, %s11, %s9
  loop: start=0, step=1, limit=4
  $region2: #{upsample_block_forward.4} parent=0 // loop_pre_header
    _
  $region3: #{upsample_block_forward.4} parent=0 // loop_header
    %s14 = sphi 0, %s18
    %p15 = scmp.ge.s32.totalorder %s14, 4
    %s24 = sphi 0, %s26
    %s27 = sphi 0, %s24
    %s28 = sphi 0, %s27
    %s44 = sphi 0, %s28
    %s48 = sphi 0, %s48
    %s50 = sphi 0, %s48
    %s51 = sphi 0, %s50
    %s65 = sphi 0, %s51
    %s69 = sphi 0, %s69
    %s71 = sphi 0, %s69
    %s72 = sphi 0, %s71
    %s86 = sphi 0, %s72
    %s90 = sphi 0, %s90
    %s92 = sphi 0, %s90
    %s93 = sphi 0, %s92
    %s107 = sphi 0, %s93
    %s111 = sphi 0, %s111
    %s113 = sphi 0, %s111
    %s114 = sphi 0, %s113
    %s128 = sphi 0, %s114
    %s134 = sphi 0, %s136
    %s137 = sphi 0, %s134
    %s138 = sphi 0, %s137
    %s154 = sphi 0, %s138
    %s160 = sphi 0, %s162
    %s163 = sphi 0, %s160
    %s164 = sphi 0, %s163
    %s180 = sphi 0, %s164
    %s186 = sphi 0, %s188
    %s189 = sphi 0, %s186
    %s190 = sphi 0, %s189
    %s206 = sphi 0, %s190
  $region4: #{upsample_block_forward.4} parent=0 // loop_header_branch
    %17 = sbr.rel (%p15) target = $region8
  $region5: #{upsample_block_forward.4} parent=0 // loop_body
    %s19 = ssub.s32 %s14, 1
    %s20 = ssub.s32 %s14, 2
    %s21 = sadd.s32 %s14, 1
    %s22 = ssub.s32 %s14, %s21
    %p23 = scmp.eq.s32.totalorder %s22, 0
    %s25 = sadd.s32 %s24, 1
    %s26 = scalar_select %p23, %s24, %s25
    %p29 = pneg %p23
    %p30 = scmp.eq.s32.totalorder %s14, 1
    %p31 = por %p29, %p30
    %p32 = scmp.ne.s32.totalorder %s24, %s27
    %p33 = scmp.eq.s32.totalorder %s14, 0
    %p34 = por %p32, %p33
    %p35 = scmp.ne.s32.totalorder %s24, %s27
    %p36 = scmp.eq.s32.totalorder %s19, 1
    %p37 = por %p35, %p36
    %p38 = scmp.ne.s32.totalorder %s27, %s28
    %p39 = scmp.eq.s32.totalorder %s19, 0
    %p40 = por %p38, %p39
    %p41 = scmp.ne.s32.totalorder %s27, %s28
    %p42 = scmp.eq.s32.totalorder %s20, 1
    %p43 = por %p41, %p42
    %p45 = scmp.ne.s32.totalorder %s28, %s44
    %p46 = scmp.eq.s32.totalorder %s20, 0
    %p47 = por %p45, %p46
    %s49 = sadd.s32 %s48, 1
    %p52 = scmp.eq.s32.totalorder %s14, 1
    %p53 = scmp.ne.s32.totalorder %s48, %s50
    %p54 = scmp.eq.s32.totalorder %s14, 0
    %p55 = por %p53, %p54
    %p56 = scmp.ne.s32.totalorder %s48, %s50
    %p57 = scmp.eq.s32.totalorder %s19, 1
    %p58 = por %p56, %p57
    %p59 = scmp.ne.s32.totalorder %s50, %s51
    %p60 = scmp.eq.s32.totalorder %s19, 0
    %p61 = por %p59, %p60
    %p62 = scmp.ne.s32.totalorder %s50, %s51
    %p63 = scmp.eq.s32.totalorder %s20, 1
    %p64 = por %p62, %p63
    %p66 = scmp.ne.s32.totalorder %s51, %s65
    %p67 = scmp.eq.s32.totalorder %s20, 0
    %p68 = por %p66, %p67
    %s70 = sadd.s32 %s69, 1
    %p73 = scmp.eq.s32.totalorder %s14, 1
    %p74 = scmp.ne.s32.totalorder %s69, %s71
    %p75 = scmp.eq.s32.totalorder %s14, 0
    %p76 = por %p74, %p75
    %p77 = scmp.ne.s32.totalorder %s69, %s71
    %p78 = scmp.eq.s32.totalorder %s19, 1
    %p79 = por %p77, %p78
    %p80 = scmp.ne.s32.totalorder %s71, %s72
    %p81 = scmp.eq.s32.totalorder %s19, 0
    %p82 = por %p80, %p81
    %p83 = scmp.ne.s32.totalorder %s71, %s72
    %p84 = scmp.eq.s32.totalorder %s20, 1
    %p85 = por %p83, %p84
    %p87 = scmp.ne.s32.totalorder %s72, %s86
    %p88 = scmp.eq.s32.totalorder %s20, 0
    %p89 = por %p87, %p88
    %s91 = sadd.s32 %s90, 1
    %p94 = scmp.eq.s32.totalorder %s14, 1
    %p95 = scmp.ne.s32.totalorder %s90, %s92
    %p96 = scmp.eq.s32.totalorder %s14, 0
    %p97 = por %p95, %p96
    %p98 = scmp.ne.s32.totalorder %s90, %s92
    %p99 = scmp.eq.s32.totalorder %s19, 1
    %p100 = por %p98, %p99
    %p101 = scmp.ne.s32.totalorder %s92, %s93
    %p102 = scmp.eq.s32.totalorder %s19, 0
    %p103 = por %p101, %p102
    %p104 = scmp.ne.s32.totalorder %s92, %s93
    %p105 = scmp.eq.s32.totalorder %s20, 1
    %p106 = por %p104, %p105
    %p108 = scmp.ne.s32.totalorder %s93, %s107
    %p109 = scmp.eq.s32.totalorder %s20, 0
    %p110 = por %p108, %p109
    %s112 = sadd.s32 %s111, 1
    %p115 = scmp.eq.s32.totalorder %s14, 1
    %p116 = scmp.ne.s32.totalorder %s111, %s113
    %p117 = scmp.eq.s32.totalorder %s14, 0
    %p118 = por %p116, %p117
    %p119 = scmp.ne.s32.totalorder %s111, %s113
    %p120 = scmp.eq.s32.totalorder %s19, 1
    %p121 = por %p119, %p120
    %p122 = scmp.ne.s32.totalorder %s113, %s114
    %p123 = scmp.eq.s32.totalorder %s19, 0
    %p124 = por %p122, %p123
    %p125 = scmp.ne.s32.totalorder %s113, %s114
    %p126 = scmp.eq.s32.totalorder %s20, 1
    %p127 = por %p125, %p126
    %p129 = scmp.ne.s32.totalorder %s114, %s128
    %p130 = scmp.eq.s32.totalorder %s20, 0
    %p131 = por %p129, %p130
    %s132 = ssub.s32 %s14, %s21
    %p133 = scmp.eq.s32.totalorder %s132, 0
    %s135 = sadd.s32 %s134, 1
    %s136 = scalar_select %p133, %s134, %s135
    %p139 = pneg %p133
    %p140 = scmp.eq.s32.totalorder %s14, 1
    %p141 = por %p139, %p140
    %p142 = scmp.ne.s32.totalorder %s134, %s137
    %p143 = scmp.eq.s32.totalorder %s14, 0
    %p144 = por %p142, %p143
    %p145 = scmp.ne.s32.totalorder %s134, %s137
    %p146 = scmp.eq.s32.totalorder %s19, 1
    %p147 = por %p145, %p146
    %p148 = scmp.ne.s32.totalorder %s137, %s138
    %p149 = scmp.eq.s32.totalorder %s19, 0
    %p150 = por %p148, %p149
    %p151 = scmp.ne.s32.totalorder %s137, %s138
    %p152 = scmp.eq.s32.totalorder %s20, 1
    %p153 = por %p151, %p152
    %p155 = scmp.ne.s32.totalorder %s138, %s154
    %p156 = scmp.eq.s32.totalorder %s20, 0
    %p157 = por %p155, %p156
    %s158 = ssub.s32 %s14, %s21
    %p159 = scmp.eq.s32.totalorder %s158, 0
    %s161 = sadd.s32 %s160, 1
    %s162 = scalar_select %p159, %s160, %s161
    %p165 = pneg %p159
    %p166 = scmp.eq.s32.totalorder %s14, 1
    %p167 = por %p165, %p166
    %p168 = scmp.ne.s32.totalorder %s160, %s163
    %p169 = scmp.eq.s32.totalorder %s14, 0
    %p170 = por %p168, %p169
    %p171 = scmp.ne.s32.totalorder %s160, %s163
    %p172 = scmp.eq.s32.totalorder %s19, 1
    %p173 = por %p171, %p172
    %p174 = scmp.ne.s32.totalorder %s163, %s164
    %p175 = scmp.eq.s32.totalorder %s19, 0
    %p176 = por %p174, %p175
    %p177 = scmp.ne.s32.totalorder %s163, %s164
    %p178 = scmp.eq.s32.totalorder %s20, 1
    %p179 = por %p177, %p178
    %p181 = scmp.ne.s32.totalorder %s164, %s180
    %p182 = scmp.eq.s32.totalorder %s20, 0
    %p183 = por %p181, %p182
    %s184 = ssub.s32 %s14, %s21
    %p185 = scmp.eq.s32.totalorder %s184, 0
    %s187 = sadd.s32 %s186, 1
    %s188 = scalar_select %p185, %s186, %s187
    %p191 = pneg %p185
    %p192 = scmp.eq.s32.totalorder %s14, 1
    %p193 = por %p191, %p192
    %p194 = scmp.ne.s32.totalorder %s186, %s189
    %p195 = scmp.eq.s32.totalorder %s14, 0
    %p196 = por %p194, %p195
    %p197 = scmp.ne.s32.totalorder %s186, %s189
    %p198 = scmp.eq.s32.totalorder %s19, 1
    %p199 = por %p197, %p198
    %p200 = scmp.ne.s32.totalorder %s189, %s190
    %p201 = scmp.eq.s32.totalorder %s19, 0
    %p202 = por %p200, %p201
    %p203 = scmp.ne.s32.totalorder %s189, %s190
    %p204 = scmp.eq.s32.totalorder %s20, 1
    %p205 = por %p203, %p204
    %p207 = scmp.ne.s32.totalorder %s190, %s206
    %p208 = scmp.eq.s32.totalorder %s20, 0
    %p209 = por %p207, %p208
    %p210 = scmp.le.s32.totalorder 1, %s14
    %p211 = scmp.lt.s32.totalorder %s14, 3
    %p212 = pnand %p210, %p211
    %p213 = pneg %p212
    // Predicated region
    $region9: #{upsample_block_forward.4} parent=5 // pred_check
      _
    $region10: #{upsample_block_forward.4} parent=5 // pred_check_branch
      %215 = sbr.rel (%p212) target = $region12
    $region11: #{upsample_block_forward.4} parent=5 // pred_region
      %s216 = ssub.s32 %s14, 1
      // Predicated region
      $region13: #{upsample_block_forward.4} parent=11 // pred_check
        %p217 = pneg %p61
      $region14: #{upsample_block_forward.4} parent=11 // pred_check_branch
        %219 = sbr.rel (%p217) target = $region16
      $region15: #{upsample_block_forward.4} parent=11 // pred_region
        _
      $region16: #{upsample_block_forward.4} parent=11 // pred_fallthru
        _
      // Predicated region
      $region17: #{upsample_block_forward.4} parent=11 // pred_check
        %p220 = pneg %p82
      $region18: #{upsample_block_forward.4} parent=11 // pred_check_branch
        %222 = sbr.rel (%p220) target = $region20
      $region19: #{upsample_block_forward.4} parent=11 // pred_region
        _
      $region20: #{upsample_block_forward.4} parent=11 // pred_fallthru
        _
      // Predicated region
      $region21: #{upsample_block_forward.4} parent=11 // pred_check
        %p223 = pneg %p103
      $region22: #{upsample_block_forward.4} parent=11 // pred_check_branch
        %225 = sbr.rel (%p223) target = $region24
      $region23: #{upsample_block_forward.4} parent=11 // pred_region
        _
      $region24: #{upsample_block_forward.4} parent=11 // pred_fallthru
        _
      // Predicated region
      $region25: #{upsample_block_forward.4} parent=11 // pred_check
        %p226 = pneg %p124
      $region26: #{upsample_block_forward.4} parent=11 // pred_check_branch
        %228 = sbr.rel (%p226) target = $region28
      $region27: #{upsample_block_forward.4} parent=11 // pred_region
        _
      $region28: #{upsample_block_forward.4} parent=11 // pred_fallthru
        _
    $region12: #{upsample_block_forward.4} parent=5 // pred_fallthru
      _
    %p229 = scmp.lt.s32.totalorder %s14, 2
    // Predicated region
    $region29: #{upsample_block_forward.4} parent=5 // pred_check
      %p230 = pneg %p229
    $region30: #{upsample_block_forward.4} parent=5 // pred_check_branch
      %232 = sbr.rel (%p230) target = $region32
    $region31: #{upsample_block_forward.4} parent=5 // pred_region
      // Predicated region
      $region33: #{upsample_block_forward.4} parent=31 // pred_check
        %p233 = pneg %p34
      $region34: #{upsample_block_forward.4} parent=31 // pred_check_branch
        %235 = sbr.rel (%p233) target = $region36
      $region35: #{upsample_block_forward.4} parent=31 // pred_region
        %p236 = scmp.lt.s32.totalorder %s14, 1
        %s237 = scalar_select %p236, %s14, 1
        %s238 = smul.addr %s237, 2
        %s239 = smul.addr %s238, 4
        %s240 = scalar_lea.vmem %s0, %s239
      $region36: #{upsample_block_forward.4} parent=31 // pred_fallthru
        _
    $region32: #{upsample_block_forward.4} parent=5 // pred_fallthru
      _
    %p241 = scmp.le.s32.totalorder 1, %s14
    %p242 = scmp.lt.s32.totalorder %s14, 3
    %p243 = pnand %p241, %p242
    %p244 = pneg %p243
    // Predicated region
    $region37: #{upsample_block_forward.4} parent=5 // pred_check
      _
    $region38: #{upsample_block_forward.4} parent=5 // pred_check_branch
      %246 = sbr.rel (%p243) target = $region40
    $region39: #{upsample_block_forward.4} parent=5 // pred_region
      %s247 = ssub.s32 %s14, 1
      %p248 = scmp.lt.s32.totalorder %s19, 1
      %s249 = scalar_select %p248, %s19, 1
      %s250 = smul.addr %s249, 2
      %s251 = smul.addr %s250, 4
      %s252 = scalar_lea.vmem %s0, %s251
      %p253 = pneg %p40
      %p254 = pneg %p37
      %p255 = pneg %p61
      %p256 = pneg %p58
      %p257 = pneg %p82
      %p258 = pneg %p79
      %p259 = pneg %p103
      %p260 = pneg %p100
      %p261 = pneg %p124
      %p262 = pneg %p121
      %p263 = pneg %p150
      %p264 = pneg %p147
      %p265 = scmp.lt.s32.totalorder %s19, 1
      %s266 = scalar_select %p265, %s19, 1
      %s267 = smul.addr %s266, 2
      %s268 = smul.addr %s267, 4
      %s269 = scalar_lea.vmem %s5, %s268
      %p270 = pneg %p176
      %p271 = pneg %p173
      %p272 = scmp.lt.s32.totalorder %s19, 1
      %s273 = scalar_select %p272, %s19, 1
      %s274 = scalar_lea.vmem %s6, %s273
      %p275 = pneg %p202
      %p276 = pneg %p199
      %p277 = scmp.lt.s32.totalorder %s19, 1
      %s278 = scalar_select %p277, %s19, 1
      %s279 = scalar_lea.vmem %s7, %s278
      %p280 = scmp.lt.s32.totalorder %s19, 1
      %s281 = scalar_select %p280, %s19, 1
      %s282 = smul.addr %s281, 2
      %s283 = smul.addr %s282, 4
      %s284 = scalar_lea.vmem %s0, %s283
      %p285 = scmp.lt.s32.totalorder %s19, 1
      %s286 = scalar_select %p285, %s19, 1
      %s287 = smul.addr %s286, 2
      %s288 = smul.addr %s287, 4
      %s289 = scalar_lea.vmem %s5, %s288
      %p290 = scmp.lt.s32.totalorder %s19, 1
      %s291 = scalar_select %p290, %s19, 1
      %s292 = scalar_lea.vmem %s6, %s291
      %p293 = scmp.lt.s32.totalorder %s19, 1
      %s294 = scalar_select %p293, %s19, 1
      %s295 = scalar_lea.vmem %s7, %s294
      %v297 = vld [vmem:[%s284] sm:$0xf]
      %v298 = vunpack.c.l.bf16 %v297
      %v299 = vld [vmem:[%s1] sm:$0x1]
      %v301 = vlaneseq
      %v302 = vshrl.u32 %v301, 7
      %v303 = vsub.s32 0, %v302
      %v304 = vrot.slane %v299, %v303
      %v306 = vmul.f32 %v298, %v304
      %v307 = vld [vmem:[%s2] sm:$0x1]
      %v309 = vlaneseq
      %v310 = vshrl.u32 %v309, 7
      %v311 = vsub.s32 0, %v310
      %v312 = vrot.slane %v307, %v311
      %v314 = vadd.f32 %v306, %v312
      %v315 = vmax.f32 %v314, 0.0
      %s316 = scalar_lea.vmem %s284, 4
      %v317 = vld [vmem:[%s316] sm:$0xf]
      %v318 = vunpack.c.l.bf16 %v317
      %v319 = vmul.f32 %v318, %v304
      %v320 = vadd.f32 %v319, %v312
      %v321 = vmax.f32 %v320, 0.0
      %vm322 = vcmask 523264
      %323 = vst.msk [vmem:[#allocation2] sm:$0xff] %vm322, %v315
      %vm324 = vcmask 516096
      %325 = vst.msk [vmem:[#allocation2 + $0x8] sm:$0x1] %vm324, 0.0
      %326 = vst.msk [vmem:[#allocation3] sm:$0x1] %vm324, 0.0
      %327 = vst.msk [vmem:[#allocation3 + $0x1] sm:$0xff] %vm322, %v321
      %v328 = vld [vmem:[#allocation2] sm:$0xff]
      %v329 = vpack.c.bf16 %v328, %v328
      %v330 = vld [vmem:[#allocation2 + $0x1] sm:$0xff]
      %v331 = vpack.c.bf16 %v330, %v330
      %v332 = vld [vmem:[#allocation3] sm:$0xff]
      %v333 = vpack.c.bf16 %v332, %v332
      %v334 = vld [vmem:[#allocation3 + $0x1] sm:$0xff]
      %v335 = vpack.c.bf16 %v334, %v334
      %v336 = vld [vmem:[%s3] sm:$0xf]
      %v337 = vld [vmem:[%s3 + $0x4] sm:$0xf]
      %v338 = vld [vmem:[%s3 + $0x8] sm:$0xf]
      %v339 = vld [vmem:[%s3 + $0xc] sm:$0xf]
      %v340 = vld [vmem:[%s3 + $0x10] sm:$0xf]
      %v341 = vld [vmem:[%s3 + $0x14] sm:$0xf]
      %v342 = vld [vmem:[%s3 + $0x18] sm:$0xf]
      %v343 = vld [vmem:[%s3 + $0x1c] sm:$0xf]
      %s344 = scalar_lea.vmem %s3, 32
      %v345 = vld [vmem:[%s344] sm:$0xf]
      %v346 = vld [vmem:[%s344 + $0x4] sm:$0xf]
      %v347 = vld [vmem:[%s344 + $0x8] sm:$0xf]
      %v348 = vld [vmem:[%s344 + $0xc] sm:$0xf]
      %v349 = vld [vmem:[%s344 + $0x10] sm:$0xf]
      %v350 = vld [vmem:[%s344 + $0x14] sm:$0xf]
      %v351 = vld [vmem:[%s344 + $0x18] sm:$0xf]
      %v352 = vld [vmem:[%s344 + $0x1c] sm:$0xf]
      %v361 = vunpack.c.l.b16 %v345
      %v362 = vunpack.c.l.b16 %v346
      %v363 = vunpack.c.l.b16 %v347
      %v364 = vunpack.c.l.b16 %v348
      %v365 = vunpack.c.l.b16 %v349
      %v366 = vunpack.c.l.b16 %v350
      %v367 = vunpack.c.l.b16 %v351
      %v368 = vunpack.c.l.b16 %v352
      %v369 = vpack.c.b16 %v362, %v361
      %v370 = vpack.c.b16 %v364, %v363
      %v371 = vpack.c.b16 %v366, %v365
      %v372 = vpack.c.b16 %v368, %v367
      %v378 = vsel %vm322, %v329, 0
      %380 = vmatprep.subr.bf16.mxu0 0
      %381 = vmatpush1.bf16.msra.mxu0 0
      %382 = vmatprep.subr.bf16.mxu0 0
      %383 = vmatpush1.bf16.msra.mxu0 0
      %384 = vmatprep.subr.bf16.mxu0 0
      %385 = vmatpush1.bf16.msra.mxu0 0
      %386 = vmatprep.subr.bf16.mxu0 0
      %387 = vmatpush1.bf16.msra.mxu0 0
      %388 = vmatprep.subr.bf16.mxu0 0
      %389 = vmatpush1.bf16.msra.mxu0 %v372
      %390 = vmatprep.subr.bf16.mxu0 0
      %391 = vmatpush1.bf16.msra.mxu0 %v371
      %392 = vmatprep.subr.bf16.mxu0 0
      %393 = vmatpush1.bf16.msra.mxu0 %v370
      %394 = vmatprep.subr.bf16.mxu0 0
      %395 = vmatpush1.bf16.msra.mxu0 %v369
      %396 = vmatprep.subr.bf16.mxu0 0
      %397 = vmatpush2.bf16.msra.mxu0 0
      %398 = vmatprep.subr.bf16.mxu0 0
      %399 = vmatpush2.bf16.msra.mxu0 0
      %400 = vmatprep.subr.bf16.mxu0 0
      %401 = vmatpush2.bf16.msra.mxu0 0
      %402 = vmatprep.subr.bf16.mxu0 0
      %403 = vmatpush2.bf16.msra.mxu0 0
      %404 = vmatprep.subr.bf16.mxu0 0
      %405 = vmatpush2.bf16.msra.mxu0 0
      %406 = vmatprep.subr.bf16.mxu0 0
      %407 = vmatpush2.bf16.msra.mxu0 0
      %408 = vmatprep.subr.bf16.mxu0 0
      %409 = vmatpush2.bf16.msra.mxu0 0
      %410 = vmatprep.subr.bf16.mxu0 0
      %411 = vmatpush2.bf16.msra.mxu0 0
      %412 = vmatprep.mubr.bf16.mxu0 0
      %413 = vmatmul.mubr.bf16.gmra.mxu0 %v378
      %v414 = vpop.f32.mrf.mxu0
      %v415 = vadd.f32 0.0, %v414
      %v416 = vpop.f32.mrf.mxu0
      %v417 = vpop.f32.mrf.mxu0
      %v418 = vpop.f32.mrf.mxu0
      %419 = vdwg.mxu0
      %v428 = vunpack.c.l.b16 %v336
      %v429 = vunpack.c.l.b16 %v337
      %v430 = vunpack.c.l.b16 %v338
      %v431 = vunpack.c.l.b16 %v339
      %v432 = vunpack.c.l.b16 %v340
      %v433 = vunpack.c.l.b16 %v341
      %v434 = vunpack.c.l.b16 %v342
      %v435 = vunpack.c.l.b16 %v343
      %v436 = vpack.c.b16 %v429, %v428
      %v437 = vpack.c.b16 %v431, %v430
      %v438 = vpack.c.b16 %v433, %v432
      %v439 = vpack.c.b16 %v435, %v434
      %v445 = vsel %vm322, %v333, 0
      %447 = vmatprep.subr.bf16.mxu0 0
      %448 = vmatpush1.bf16.msra.mxu0 0
      %449 = vmatprep.subr.bf16.mxu0 0
      %450 = vmatpush1.bf16.msra.mxu0 0
      %451 = vmatprep.subr.bf16.mxu0 0
      %452 = vmatpush1.bf16.msra.mxu0 0
      %453 = vmatprep.subr.bf16.mxu0 0
      %454 = vmatpush1.bf16.msra.mxu0 0
      %455 = vmatprep.subr.bf16.mxu0 0
      %456 = vmatpush1.bf16.msra.mxu0 %v439
      %457 = vmatprep.subr.bf16.mxu0 0
      %458 = vmatpush1.bf16.msra.mxu0 %v438
      %459 = vmatprep.subr.bf16.mxu0 0
      %460 = vmatpush1.bf16.msra.mxu0 %v437
      %461 = vmatprep.subr.bf16.mxu0 0
      %462 = vmatpush1.bf16.msra.mxu0 %v436
      %463 = vmatprep.subr.bf16.mxu0 0
      %464 = vmatpush2.bf16.msra.mxu0 0
      %465 = vmatprep.subr.bf16.mxu0 0
      %466 = vmatpush2.bf16.msra.mxu0 0
      %467 = vmatprep.subr.bf16.mxu0 0
      %468 = vmatpush2.bf16.msra.mxu0 0
      %469 = vmatprep.subr.bf16.mxu0 0
      %470 = vmatpush2.bf16.msra.mxu0 0
      %471 = vmatprep.subr.bf16.mxu0 0
      %472 = vmatpush2.bf16.msra.mxu0 0
      %473 = vmatprep.subr.bf16.mxu0 0
      %474 = vmatpush2.bf16.msra.mxu0 0
      %475 = vmatprep.subr.bf16.mxu0 0
      %476 = vmatpush2.bf16.msra.mxu0 0
      %477 = vmatprep.subr.bf16.mxu0 0
      %478 = vmatpush2.bf16.msra.mxu0 0
      %479 = vmatprep.mubr.bf16.mxu0 0
      %480 = vmatmul.mubr.bf16.gmra.mxu0 %v445
      %v481 = vpop.f32.mrf.mxu0
      %v482 = vadd.f32 %v415, %v481
      %v483 = vpop.f32.mrf.mxu0
      %v484 = vpop.f32.mrf.mxu0
      %v485 = vpop.f32.mrf.mxu0
      %486 = vdwg.mxu0
      %s487 = scalar_lea.vmem %s3, 64
      %v488 = vld [vmem:[%s487] sm:$0xf]
      %v489 = vld [vmem:[%s487 + $0x4] sm:$0xf]
      %v490 = vld [vmem:[%s487 + $0x8] sm:$0xf]
      %v491 = vld [vmem:[%s487 + $0xc] sm:$0xf]
      %v492 = vld [vmem:[%s487 + $0x10] sm:$0xf]
      %v493 = vld [vmem:[%s487 + $0x14] sm:$0xf]
      %v494 = vld [vmem:[%s487 + $0x18] sm:$0xf]
      %v495 = vld [vmem:[%s487 + $0x1c] sm:$0xf]
      %v504 = vunpack.c.l.b16 %v488
      %v505 = vunpack.c.l.b16 %v489
      %v506 = vunpack.c.l.b16 %v490
      %v507 = vunpack.c.l.b16 %v491
      %v508 = vunpack.c.l.b16 %v492
      %v509 = vunpack.c.l.b16 %v493
      %v510 = vunpack.c.l.b16 %v494
      %v511 = vunpack.c.l.b16 %v495
      %v512 = vpack.c.b16 %v505, %v504
      %v513 = vpack.c.b16 %v507, %v506
      %v514 = vpack.c.b16 %v509, %v508
      %v515 = vpack.c.b16 %v511, %v510
      %v521 = vsel %vm322, %v335, 0
      %523 = vmatprep.subr.bf16.mxu0 0
      %524 = vmatpush1.bf16.msra.mxu0 0
      %525 = vmatprep.subr.bf16.mxu0 0
      %526 = vmatpush1.bf16.msra.mxu0 0
      %527 = vmatprep.subr.bf16.mxu0 0
      %528 = vmatpush1.bf16.msra.mxu0 0
      %529 = vmatprep.subr.bf16.mxu0 0
      %530 = vmatpush1.bf16.msra.mxu0 0
      %531 = vmatprep.subr.bf16.mxu0 0
      %532 = vmatpush1.bf16.msra.mxu0 %v515
      %533 = vmatprep.subr.bf16.mxu0 0
      %534 = vmatpush1.bf16.msra.mxu0 %v514
      %535 = vmatprep.subr.bf16.mxu0 0
      %536 = vmatpush1.bf16.msra.mxu0 %v513
      %537 = vmatprep.subr.bf16.mxu0 0
      %538 = vmatpush1.bf16.msra.mxu0 %v512
      %539 = vmatprep.subr.bf16.mxu0 0
      %540 = vmatpush2.bf16.msra.mxu0 0
      %541 = vmatprep.subr.bf16.mxu0 0
      %542 = vmatpush2.bf16.msra.mxu0 0
      %543 = vmatprep.subr.bf16.mxu0 0
      %544 = vmatpush2.bf16.msra.mxu0 0
      %545 = vmatprep.subr.bf16.mxu0 0
      %546 = vmatpush2.bf16.msra.mxu0 0
      %547 = vmatprep.subr.bf16.mxu0 0
      %548 = vmatpush2.bf16.msra.mxu0 0
      %549 = vmatprep.subr.bf16.mxu0 0
      %550 = vmatpush2.bf16.msra.mxu0 0
      %551 = vmatprep.subr.bf16.mxu0 0
      %552 = vmatpush2.bf16.msra.mxu0 0
      %553 = vmatprep.subr.bf16.mxu0 0
      %554 = vmatpush2.bf16.msra.mxu0 0
      %555 = vmatprep.mubr.bf16.mxu0 0
      %556 = vmatmul.mubr.bf16.gmra.mxu0 %v521
      %v557 = vpop.f32.mrf.mxu0
      %v558 = vadd.f32 0.0, %v557
      %v559 = vpop.f32.mrf.mxu0
      %v560 = vpop.f32.mrf.mxu0
      %v561 = vpop.f32.mrf.mxu0
      %562 = vdwg.mxu0
      %v563 = vadd.f32 %v482, %v558
      %564 = vmatprep.subr.bf16.mxu0 0
      %565 = vmatpush1.bf16.msra.mxu0 0
      %566 = vmatprep.subr.bf16.mxu0 0
      %567 = vmatpush1.bf16.msra.mxu0 0
      %568 = vmatprep.subr.bf16.mxu0 0
      %569 = vmatpush1.bf16.msra.mxu0 0
      %570 = vmatprep.subr.bf16.mxu0 0
      %571 = vmatpush1.bf16.msra.mxu0 0
      %572 = vmatprep.subr.bf16.mxu0 0
      %573 = vmatpush1.bf16.msra.mxu0 %v372
      %574 = vmatprep.subr.bf16.mxu0 0
      %575 = vmatpush1.bf16.msra.mxu0 %v371
      %576 = vmatprep.subr.bf16.mxu0 0
      %577 = vmatpush1.bf16.msra.mxu0 %v370
      %578 = vmatprep.subr.bf16.mxu0 0
      %579 = vmatpush1.bf16.msra.mxu0 %v369
      %580 = vmatprep.subr.bf16.mxu0 0
      %581 = vmatpush2.bf16.msra.mxu0 0
      %582 = vmatprep.subr.bf16.mxu0 0
      %583 = vmatpush2.bf16.msra.mxu0 0
      %584 = vmatprep.subr.bf16.mxu0 0
      %585 = vmatpush2.bf16.msra.mxu0 0
      %586 = vmatprep.subr.bf16.mxu0 0
      %587 = vmatpush2.bf16.msra.mxu0 0
      %588 = vmatprep.subr.bf16.mxu0 0
      %589 = vmatpush2.bf16.msra.mxu0 0
      %590 = vmatprep.subr.bf16.mxu0 0
      %591 = vmatpush2.bf16.msra.mxu0 0
      %592 = vmatprep.subr.bf16.mxu0 0
      %593 = vmatpush2.bf16.msra.mxu0 0
      %594 = vmatprep.subr.bf16.mxu0 0
      %595 = vmatpush2.bf16.msra.mxu0 0
      %596 = vmatprep.mubr.bf16.mxu0 0
      %597 = vmatmul.mubr.bf16.gmra.mxu0 %v521
      %v598 = vpop.f32.mrf.mxu0
      %v599 = vadd.f32 0.0, %v598
      %v600 = vpop.f32.mrf.mxu0
      %v601 = vpop.f32.mrf.mxu0
      %v602 = vpop.f32.mrf.mxu0
      %603 = vdwg.mxu0
      %604 = vmatprep.subr.bf16.mxu0 0
      %605 = vmatpush1.bf16.msra.mxu0 0
      %606 = vmatprep.subr.bf16.mxu0 0
      %607 = vmatpush1.bf16.msra.mxu0 0
      %608 = vmatprep.subr.bf16.mxu0 0
      %609 = vmatpush1.bf16.msra.mxu0 0
      %610 = vmatprep.subr.bf16.mxu0 0
      %611 = vmatpush1.bf16.msra.mxu0 0
      %612 = vmatprep.subr.bf16.mxu0 0
      %613 = vmatpush1.bf16.msra.mxu0 %v439
      %614 = vmatprep.subr.bf16.mxu0 0
      %615 = vmatpush1.bf16.msra.mxu0 %v438
      %616 = vmatprep.subr.bf16.mxu0 0
      %617 = vmatpush1.bf16.msra.mxu0 %v437
      %618 = vmatprep.subr.bf16.mxu0 0
      %619 = vmatpush1.bf16.msra.mxu0 %v436
      %620 = vmatprep.subr.bf16.mxu0 0
      %621 = vmatpush2.bf16.msra.mxu0 0
      %622 = vmatprep.subr.bf16.mxu0 0
      %623 = vmatpush2.bf16.msra.mxu0 0
      %624 = vmatprep.subr.bf16.mxu0 0
      %625 = vmatpush2.bf16.msra.mxu0 0
      %626 = vmatprep.subr.bf16.mxu0 0
      %627 = vmatpush2.bf16.msra.mxu0 0
      %628 = vmatprep.subr.bf16.mxu0 0
      %629 = vmatpush2.bf16.msra.mxu0 0
      %630 = vmatprep.subr.bf16.mxu0 0
      %631 = vmatpush2.bf16.msra.mxu0 0
      %632 = vmatprep.subr.bf16.mxu0 0
      %633 = vmatpush2.bf16.msra.mxu0 0
      %634 = vmatprep.subr.bf16.mxu0 0
      %635 = vmatpush2.bf16.msra.mxu0 0
      %636 = vmatprep.mubr.bf16.mxu0 0
      %637 = vmatmul.mubr.bf16.gmra.mxu0 %v378
      %v638 = vpop.f32.mrf.mxu0
      %v639 = vadd.f32 %v599, %v638
      %v640 = vpop.f32.mrf.mxu0
      %v641 = vpop.f32.mrf.mxu0
      %v642 = vpop.f32.mrf.mxu0
      %643 = vdwg.mxu0
      %v645 = vsel %vm322, %v331, 0
      %647 = vmatprep.subr.bf16.mxu0 0
      %648 = vmatpush1.bf16.msra.mxu0 0
      %649 = vmatprep.subr.bf16.mxu0 0
      %650 = vmatpush1.bf16.msra.mxu0 0
      %651 = vmatprep.subr.bf16.mxu0 0
      %652 = vmatpush1.bf16.msra.mxu0 0
      %653 = vmatprep.subr.bf16.mxu0 0
      %654 = vmatpush1.bf16.msra.mxu0 0
      %655 = vmatprep.subr.bf16.mxu0 0
      %656 = vmatpush1.bf16.msra.mxu0 %v515
      %657 = vmatprep.subr.bf16.mxu0 0
      %658 = vmatpush1.bf16.msra.mxu0 %v514
      %659 = vmatprep.subr.bf16.mxu0 0
      %660 = vmatpush1.bf16.msra.mxu0 %v513
      %661 = vmatprep.subr.bf16.mxu0 0
      %662 = vmatpush1.bf16.msra.mxu0 %v512
      %663 = vmatprep.subr.bf16.mxu0 0
      %664 = vmatpush2.bf16.msra.mxu0 0
      %665 = vmatprep.subr.bf16.mxu0 0
      %666 = vmatpush2.bf16.msra.mxu0 0
      %667 = vmatprep.subr.bf16.mxu0 0
      %668 = vmatpush2.bf16.msra.mxu0 0
      %669 = vmatprep.subr.bf16.mxu0 0
      %670 = vmatpush2.bf16.msra.mxu0 0
      %671 = vmatprep.subr.bf16.mxu0 0
      %672 = vmatpush2.bf16.msra.mxu0 0
      %673 = vmatprep.subr.bf16.mxu0 0
      %674 = vmatpush2.bf16.msra.mxu0 0
      %675 = vmatprep.subr.bf16.mxu0 0
      %676 = vmatpush2.bf16.msra.mxu0 0
      %677 = vmatprep.subr.bf16.mxu0 0
      %678 = vmatpush2.bf16.msra.mxu0 0
      %679 = vmatprep.mubr.bf16.mxu0 0
      %680 = vmatmul.mubr.bf16.gmra.mxu0 %v645
      %v681 = vpop.f32.mrf.mxu0
      %v682 = vadd.f32 0.0, %v681
      %v683 = vpop.f32.mrf.mxu0
      %v684 = vpop.f32.mrf.mxu0
      %v685 = vpop.f32.mrf.mxu0
      %686 = vdwg.mxu0
      %v687 = vadd.f32 %v639, %v682
      %v688 = vld [vmem:[%s4] sm:$0x1]
      %v690 = vlaneseq
      %v691 = vshrl.u32 %v690, 7
      %v692 = vsub.s32 0, %v691
      %v693 = vrot.slane %v688, %v692
      %v695 = vadd.f32 %v563, %v693
      %v696 = vadd.f32 %v687, %v693
      %v697 = vsel %vm322, %v695, 0.0
      %v698 = vrot.slane %v697, 4
      %v699 = vadd.f32 %v697, %v698
      %v700 = vrot.slane %v699, 2
      %v701 = vadd.f32 %v699, %v700
      %v702 = vrot.slane %v701, 1
      %v703 = vadd.f32 %v701, %v702
      %v704 = vsel %vm322, %v696, 0.0
      %v705 = vrot.slane %v704, 4
      %v706 = vadd.f32 %v704, %v705
      %v707 = vrot.slane %v706, 2
      %v708 = vadd.f32 %v706, %v707
      %v709 = vrot.slane %v708, 1
      %v710 = vadd.f32 %v708, %v709
      %v711 = vadd.f32 %v703, %v710
      %712 = vst.msk [vmem:[%s292] sm:$0x1] %vm324, %v711
      %v713 = vmul.f32 %v695, %v695
      %v714 = vsel %vm322, %v713, 0.0
      %v715 = vrot.slane %v714, 4
      %v716 = vadd.f32 %v714, %v715
      %v717 = vrot.slane %v716, 2
      %v718 = vadd.f32 %v716, %v717
      %v719 = vrot.slane %v718, 1
      %v720 = vadd.f32 %v718, %v719
      %v721 = vmul.f32 %v696, %v696
      %v722 = vsel %vm322, %v721, 0.0
      %v723 = vrot.slane %v722, 4
      %v724 = vadd.f32 %v722, %v723
      %v725 = vrot.slane %v724, 2
      %v726 = vadd.f32 %v724, %v725
      %v727 = vrot.slane %v726, 1
      %v728 = vadd.f32 %v726, %v727
      %v729 = vadd.f32 %v720, %v728
      %730 = vst.msk [vmem:[%s295] sm:$0x1] %vm324, %v729
      %v731 = vpack.c.bf16 %v695, %v695
      %vm732 = vcmask 519168
      %733 = vst.msk [vmem:[%s289] sm:$0xf] %vm732, %v731
      %v734 = vpack.c.bf16 %v696, %v696
      %s735 = scalar_lea.vmem %s289, 4
      %736 = vst.msk [vmem:[%s735] sm:$0xf] %vm732, %v734
      %p737 = scmp.lt.s32.totalorder %s19, 1
      %s738 = scalar_select %p737, %s19, 1
      %s739 = smul.addr %s738, 2
      %s740 = smul.addr %s739, 4
      %s741 = scalar_lea.vmem %s5, %s740
      %p742 = scmp.lt.s32.totalorder %s19, 1
      %s743 = scalar_select %p742, %s19, 1
      %s744 = scalar_lea.vmem %s6, %s743
      %p745 = scmp.lt.s32.totalorder %s19, 1
      %s746 = scalar_select %p745, %s19, 1
      %s747 = scalar_lea.vmem %s7, %s746
      // Predicated region
      $region41: #{upsample_block_forward.4} parent=39 // pred_check
        %p748 = pneg %p147
      $region42: #{upsample_block_forward.4} parent=39 // pred_check_branch
        %750 = sbr.rel (%p748) target = $region44
      $region43: #{upsample_block_forward.4} parent=39 // pred_region
        _
      $region44: #{upsample_block_forward.4} parent=39 // pred_fallthru
        _
      // Predicated region
      $region45: #{upsample_block_forward.4} parent=39 // pred_check
        %p751 = pneg %p173
      $region46: #{upsample_block_forward.4} parent=39 // pred_check_branch
        %753 = sbr.rel (%p751) target = $region48
      $region47: #{upsample_block_forward.4} parent=39 // pred_region
        _
      $region48: #{upsample_block_forward.4} parent=39 // pred_fallthru
        _
      // Predicated region
      $region49: #{upsample_block_forward.4} parent=39 // pred_check
        %p754 = pneg %p199
      $region50: #{upsample_block_forward.4} parent=39 // pred_check_branch
        %756 = sbr.rel (%p754) target = $region52
      $region51: #{upsample_block_forward.4} parent=39 // pred_region
        _
      $region52: #{upsample_block_forward.4} parent=39 // pred_fallthru
        _
    $region40: #{upsample_block_forward.4} parent=5 // pred_fallthru
      _
    %p757 = scmp.le.s32.totalorder 2, %s14
    // Predicated region
    $region53: #{upsample_block_forward.4} parent=5 // pred_check
      %p758 = pneg %p757
    $region54: #{upsample_block_forward.4} parent=5 // pred_check_branch
      %760 = sbr.rel (%p758) target = $region56
    $region55: #{upsample_block_forward.4} parent=5 // pred_region
      %s761 = ssub.s32 %s14, 2
      // Predicated region
      $region57: #{upsample_block_forward.4} parent=55 // pred_check
        %p762 = pneg %p153
      $region58: #{upsample_block_forward.4} parent=55 // pred_check_branch
        %764 = sbr.rel (%p762) target = $region60
      $region59: #{upsample_block_forward.4} parent=55 // pred_region
        %p765 = scmp.lt.s32.totalorder %s20, 1
        %s766 = scalar_select %p765, %s20, 1
        %s767 = smul.addr %s766, 2
        %s768 = smul.addr %s767, 4
        %s769 = scalar_lea.vmem %s5, %s768
      $region60: #{upsample_block_forward.4} parent=55 // pred_fallthru
        _
      // Predicated region
      $region61: #{upsample_block_forward.4} parent=55 // pred_check
        %p770 = pneg %p179
      $region62: #{upsample_block_forward.4} parent=55 // pred_check_branch
        %772 = sbr.rel (%p770) target = $region64
      $region63: #{upsample_block_forward.4} parent=55 // pred_region
        %p773 = scmp.lt.s32.totalorder %s20, 1
        %s774 = scalar_select %p773, %s20, 1
        %s775 = scalar_lea.vmem %s6, %s774
      $region64: #{upsample_block_forward.4} parent=55 // pred_fallthru
        _
      // Predicated region
      $region65: #{upsample_block_forward.4} parent=55 // pred_check
        %p776 = pneg %p205
      $region66: #{upsample_block_forward.4} parent=55 // pred_check_branch
        %778 = sbr.rel (%p776) target = $region68
      $region67: #{upsample_block_forward.4} parent=55 // pred_region
        %p779 = scmp.lt.s32.totalorder %s20, 1
        %s780 = scalar_select %p779, %s20, 1
        %s781 = scalar_lea.vmem %s7, %s780
      $region68: #{upsample_block_forward.4} parent=55 // pred_fallthru
        _
    $region56: #{upsample_block_forward.4} parent=5 // pred_fallthru
      _
  $region6: #{upsample_block_forward.4} parent=0 // loop_footer
    %s18 = sadd.s32 1, %s14
  $region7: #{upsample_block_forward.4} parent=0 // loop_footer_branch
    %13 = sbr.rel target = $region3
  $region8: #{upsample_block_forward.4} parent=0 // loop_exit
    _

// kernel: upsample_block_forward.5
$region0: #{upsample_block_forward.5}
  #allocation0 [shape = 'u32[]', space=smem, size = 0x4, offset = 0x4, fixed_abs, tag = 'smem constant byte address 0x4 - core index']
  #allocation1 [shape = 'u32[144,128]{1,0:T(1,128)}', space=vmem, size = 0x12000, scoped, tag = 'internal scratch']
  %s0 = inlined_call_operand.vmem [shape: bf16[4,512], index: 0, kind: input, shape index: {}]
  %s1 = inlined_call_operand.vmem [shape: f32[1,512], index: 1, kind: input, shape index: {}]
  %s2 = inlined_call_operand.vmem [shape: f32[1,512], index: 2, kind: input, shape index: {}]
  %s3 = inlined_call_operand.vmem [shape: f32[4,512], index: 3, kind: output, shape index: {}]
  %s4 = sld [smem:[#allocation0]]
  $region22: #{upsample_block_forward.5} parent=0
    _
  %s6 = ssub.s32 1, %s4
  %s7 = scalar_select 0, %s6, %s4
  // Predicated region
  $region2: #{upsample_block_forward.5} parent=0 // pred_check
    _
  $region3: #{upsample_block_forward.5} parent=0 // pred_check_branch
    %9 = sbr.rel (0) target = $region5
  $region4: #{upsample_block_forward.5} parent=0 // pred_region
    _
  $region5: #{upsample_block_forward.5} parent=0 // pred_fallthru
    _
  // Predicated region
  $region6: #{upsample_block_forward.5} parent=0 // pred_check
    _
  $region7: #{upsample_block_forward.5} parent=0 // pred_check_branch
    %11 = sbr.rel (0) target = $region9
  $region8: #{upsample_block_forward.5} parent=0 // pred_region
    _
  $region9: #{upsample_block_forward.5} parent=0 // pred_fallthru
    _
  // Predicated region
  $region10: #{upsample_block_forward.5} parent=0 // pred_check
    _
  $region11: #{upsample_block_forward.5} parent=0 // pred_check_branch
    %13 = sbr.rel (0) target = $region13
  $region12: #{upsample_block_forward.5} parent=0 // pred_region
    _
  $region13: #{upsample_block_forward.5} parent=0 // pred_fallthru
    _
  %v14 = vld [vmem:[%s0] sm:$0xff]
  %v15 = vunpack.c.l.bf16 %v14
  %v16 = vunpack.c.h.bf16 %v14
  %v17 = vld [vmem:[%s1] sm:$0xf]
  %v19 = vlaneseq
  %v20 = vshrl.u32 %v19, 7
  %v21 = vsub.s32 0, %v20
  %v22 = vrot.slane %v17, %v21
  %v23 = vlaneseq
  %v24 = vshrl.u32 %v23, 7
  %v25 = vsub.s32 1, %v24
  %v26 = vrot.slane %v17, %v25
  %v27 = vlaneseq
  %v28 = vshrl.u32 %v27, 7
  %v29 = vsub.s32 2, %v28
  %v30 = vrot.slane %v17, %v29
  %v31 = vlaneseq
  %v32 = vshrl.u32 %v31, 7
  %v33 = vsub.s32 3, %v32
  %v34 = vrot.slane %v17, %v33
  %v35 = vcombine.low %v22, %v26
  %v36 = vcombine.low %v30, %v34
  %v39 = vmul.f32 %v15, %v35
  %v40 = vmul.f32 %v16, %v36
  %v41 = vld [vmem:[%s2] sm:$0xf]
  %v43 = vlaneseq
  %v44 = vshrl.u32 %v43, 7
  %v45 = vsub.s32 0, %v44
  %v46 = vrot.slane %v41, %v45
  %v47 = vlaneseq
  %v48 = vshrl.u32 %v47, 7
  %v49 = vsub.s32 1, %v48
  %v50 = vrot.slane %v41, %v49
  %v51 = vlaneseq
  %v52 = vshrl.u32 %v51, 7
  %v53 = vsub.s32 2, %v52
  %v54 = vrot.slane %v41, %v53
  %v55 = vlaneseq
  %v56 = vshrl.u32 %v55, 7
  %v57 = vsub.s32 3, %v56
  %v58 = vrot.slane %v41, %v57
  %v59 = vcombine.low %v46, %v50
  %v60 = vcombine.low %v54, %v58
  %v63 = vadd.f32 %v39, %v59
  %v64 = vadd.f32 %v40, %v60
  %v65 = vmax.f32 %v63, 0.0
  %v66 = vmax.f32 %v64, 0.0
  %67 = vst [vmem:[%s3] sm:$0xff] %v65
  %68 = vst [vmem:[%s3 + $0x8] sm:$0xff] %v66
  // Predicated region
  $region14: #{upsample_block_forward.5} parent=0 // pred_check
    _
  $region15: #{upsample_block_forward.5} parent=0 // pred_check_branch
    %70 = sbr.rel (0) target = $region17
  $region16: #{upsample_block_forward.5} parent=0 // pred_region
    _
  $region17: #{upsample_block_forward.5} parent=0 // pred_fallthru
    _
  // Predicated region
  $region18: #{upsample_block_forward.5} parent=0 // pred_check
    _
  $region19: #{upsample_block_forward.5} parent=0 // pred_check_branch
    %72 = sbr.rel (0) target = $region21
  $region20: #{upsample_block_forward.5} parent=0 // pred_region
    _
  $region21: #{upsample_block_forward.5} parent=0 // pred_fallthru
    _

// kernel: upsample_block_forward.3
$region0: #{upsample_block_forward.3}
  #allocation0 [shape = 'u32[]', space=smem, size = 0x4, offset = 0x4, fixed_abs, tag = 'smem constant byte address 0x4 - core index']
  #allocation1 [shape = 'u32[144,128]{1,0:T(1,128)}', space=vmem, size = 0x12000, scoped, tag = 'internal scratch']
  #allocation2 [shape = 'f32[9,64]{1,0:T(8,128)}', space=vmem, size = 0x2000, scoped, tag = 'scratch operand']
  #allocation3 [shape = 'f32[9,64]{1,0:T(8,128)}', space=vmem, size = 0x2000, scoped, tag = 'scratch operand']
  %s0 = inlined_call_operand.vmem [shape: bf16[2,10,64], index: 0, kind: input, shape index: {}]
  %s1 = inlined_call_operand.vmem [shape: bf16[2,9,64], index: 1, kind: input, shape index: {}]
  %s2 = inlined_call_operand.vmem [shape: bf16[2,9,64], index: 2, kind: input, shape index: {}]
  %s3 = inlined_call_operand.vmem [shape: bf16[4,64,64], index: 3, kind: input, shape index: {}]
  %s4 = inlined_call_operand.vmem [shape: bf16[3,64,64], index: 4, kind: input, shape index: {}]
  %s5 = inlined_call_operand.vmem [shape: bf16[3,64,64], index: 5, kind: input, shape index: {}]
  %s6 = inlined_call_operand.vmem [shape: f32[1,64], index: 6, kind: input, shape index: {}]
  %s7 = inlined_call_operand.vmem [shape: f32[1,64], index: 7, kind: input, shape index: {}]
  %s8 = inlined_call_operand.vmem [shape: bf16[2,2,8,64], index: 8, kind: output, shape index: {0}]
  %s9 = inlined_call_operand.vmem [shape: f32[2,1,64], index: 9, kind: output, shape index: {1}]
  %s10 = inlined_call_operand.vmem [shape: f32[2,1,64], index: 10, kind: output, shape index: {2}]
  %11 = xla_tuple %s8, %s9, %s10
  %s12 = sld [smem:[#allocation0]]
  $region81: #{upsample_block_forward.3} parent=0
    _
  %s14 = ssub.s32 1, %s12
  %s15 = scalar_select 0, %s14, %s12
  loop: start=0, step=1, limit=4
  $region2: #{upsample_block_forward.3} parent=0 // loop_pre_header
    _
  $region3: #{upsample_block_forward.3} parent=0 // loop_header
    %s17 = sphi 0, %s21
    %p18 = scmp.ge.s32.totalorder %s17, 4
    %s27 = sphi 0, %s29
    %s30 = sphi 0, %s27
    %s31 = sphi 0, %s30
    %s47 = sphi 0, %s31
    %s53 = sphi 0, %s55
    %s56 = sphi 0, %s53
    %s57 = sphi 0, %s56
    %s73 = sphi 0, %s57
    %s79 = sphi 0, %s81
    %s82 = sphi 0, %s79
    %s83 = sphi 0, %s82
    %s99 = sphi 0, %s83
    %s103 = sphi 0, %s103
    %s105 = sphi 0, %s103
    %s106 = sphi 0, %s105
    %s120 = sphi 0, %s106
    %s124 = sphi 0, %s124
    %s126 = sphi 0, %s124
    %s127 = sphi 0, %s126
    %s141 = sphi 0, %s127
    %s145 = sphi 0, %s145
    %s147 = sphi 0, %s145
    %s148 = sphi 0, %s147
    %s162 = sphi 0, %s148
    %s166 = sphi 0, %s166
    %s168 = sphi 0, %s166
    %s169 = sphi 0, %s168
    %s183 = sphi 0, %s169
    %s187 = sphi 0, %s187
    %s189 = sphi 0, %s187
    %s190 = sphi 0, %s189
    %s204 = sphi 0, %s190
    %s210 = sphi 0, %s212
    %s213 = sphi 0, %s210
    %s214 = sphi 0, %s213
    %s230 = sphi 0, %s214
    %s236 = sphi 0, %s238
    %s239 = sphi 0, %s236
    %s240 = sphi 0, %s239
    %s256 = sphi 0, %s240
    %s262 = sphi 0, %s264
    %s265 = sphi 0, %s262
    %s266 = sphi 0, %s265
    %s282 = sphi 0, %s266
  $region4: #{upsample_block_forward.3} parent=0 // loop_header_branch
    %20 = sbr.rel (%p18) target = $region8
  $region5: #{upsample_block_forward.3} parent=0 // loop_body
    %s22 = ssub.s32 %s17, 1
    %s23 = ssub.s32 %s17, 2
    %s24 = sadd.s32 %s17, 1
    %s25 = ssub.s32 %s17, %s24
    %p26 = scmp.eq.s32.totalorder %s25, 0
    %s28 = sadd.s32 %s27, 1
    %s29 = scalar_select %p26, %s27, %s28
    %p32 = pneg %p26
    %p33 = scmp.eq.s32.totalorder %s17, 1
    %p34 = por %p32, %p33
    %p35 = scmp.ne.s32.totalorder %s27, %s30
    %p36 = scmp.eq.s32.totalorder %s17, 0
    %p37 = por %p35, %p36
    %p38 = scmp.ne.s32.totalorder %s27, %s30
    %p39 = scmp.eq.s32.totalorder %s22, 1
    %p40 = por %p38, %p39
    %p41 = scmp.ne.s32.totalorder %s30, %s31
    %p42 = scmp.eq.s32.totalorder %s22, 0
    %p43 = por %p41, %p42
    %p44 = scmp.ne.s32.totalorder %s30, %s31
    %p45 = scmp.eq.s32.totalorder %s23, 1
    %p46 = por %p44, %p45
    %p48 = scmp.ne.s32.totalorder %s31, %s47
    %p49 = scmp.eq.s32.totalorder %s23, 0
    %p50 = por %p48, %p49
    %s51 = ssub.s32 %s17, %s24
    %p52 = scmp.eq.s32.totalorder %s51, 0
    %s54 = sadd.s32 %s53, 1
    %s55 = scalar_select %p52, %s53, %s54
    %p58 = pneg %p52
    %p59 = scmp.eq.s32.totalorder %s17, 1
    %p60 = por %p58, %p59
    %p61 = scmp.ne.s32.totalorder %s53, %s56
    %p62 = scmp.eq.s32.totalorder %s17, 0
    %p63 = por %p61, %p62
    %p64 = scmp.ne.s32.totalorder %s53, %s56
    %p65 = scmp.eq.s32.totalorder %s22, 1
    %p66 = por %p64, %p65
    %p67 = scmp.ne.s32.totalorder %s56, %s57
    %p68 = scmp.eq.s32.totalorder %s22, 0
    %p69 = por %p67, %p68
    %p70 = scmp.ne.s32.totalorder %s56, %s57
    %p71 = scmp.eq.s32.totalorder %s23, 1
    %p72 = por %p70, %p71
    %p74 = scmp.ne.s32.totalorder %s57, %s73
    %p75 = scmp.eq.s32.totalorder %s23, 0
    %p76 = por %p74, %p75
    %s77 = ssub.s32 %s17, %s24
    %p78 = scmp.eq.s32.totalorder %s77, 0
    %s80 = sadd.s32 %s79, 1
    %s81 = scalar_select %p78, %s79, %s80
    %p84 = pneg %p78
    %p85 = scmp.eq.s32.totalorder %s17, 1
    %p86 = por %p84, %p85
    %p87 = scmp.ne.s32.totalorder %s79, %s82
    %p88 = scmp.eq.s32.totalorder %s17, 0
    %p89 = por %p87, %p88
    %p90 = scmp.ne.s32.totalorder %s79, %s82
    %p91 = scmp.eq.s32.totalorder %s22, 1
    %p92 = por %p90, %p91
    %p93 = scmp.ne.s32.totalorder %s82, %s83
    %p94 = scmp.eq.s32.totalorder %s22, 0
    %p95 = por %p93, %p94
    %p96 = scmp.ne.s32.totalorder %s82, %s83
    %p97 = scmp.eq.s32.totalorder %s23, 1
    %p98 = por %p96, %p97
    %p100 = scmp.ne.s32.totalorder %s83, %s99
    %p101 = scmp.eq.s32.totalorder %s23, 0
    %p102 = por %p100, %p101
    %s104 = sadd.s32 %s103, 1
    %p107 = scmp.eq.s32.totalorder %s17, 1
    %p108 = scmp.ne.s32.totalorder %s103, %s105
    %p109 = scmp.eq.s32.totalorder %s17, 0
    %p110 = por %p108, %p109
    %p111 = scmp.ne.s32.totalorder %s103, %s105
    %p112 = scmp.eq.s32.totalorder %s22, 1
    %p113 = por %p111, %p112
    %p114 = scmp.ne.s32.totalorder %s105, %s106
    %p115 = scmp.eq.s32.totalorder %s22, 0
    %p116 = por %p114, %p115
    %p117 = scmp.ne.s32.totalorder %s105, %s106
    %p118 = scmp.eq.s32.totalorder %s23, 1
    %p119 = por %p117, %p118
    %p121 = scmp.ne.s32.totalorder %s106, %s120
    %p122 = scmp.eq.s32.totalorder %s23, 0
    %p123 = por %p121, %p122
    %s125 = sadd.s32 %s124, 1
    %p128 = scmp.eq.s32.totalorder %s17, 1
    %p129 = scmp.ne.s32.totalorder %s124, %s126
    %p130 = scmp.eq.s32.totalorder %s17, 0
    %p131 = por %p129, %p130
    %p132 = scmp.ne.s32.totalorder %s124, %s126
    %p133 = scmp.eq.s32.totalorder %s22, 1
    %p134 = por %p132, %p133
    %p135 = scmp.ne.s32.totalorder %s126, %s127
    %p136 = scmp.eq.s32.totalorder %s22, 0
    %p137 = por %p135, %p136
    %p138 = scmp.ne.s32.totalorder %s126, %s127
    %p139 = scmp.eq.s32.totalorder %s23, 1
    %p140 = por %p138, %p139
    %p142 = scmp.ne.s32.totalorder %s127, %s141
    %p143 = scmp.eq.s32.totalorder %s23, 0
    %p144 = por %p142, %p143
    %s146 = sadd.s32 %s145, 1
    %p149 = scmp.eq.s32.totalorder %s17, 1
    %p150 = scmp.ne.s32.totalorder %s145, %s147
    %p151 = scmp.eq.s32.totalorder %s17, 0
    %p152 = por %p150, %p151
    %p153 = scmp.ne.s32.totalorder %s145, %s147
    %p154 = scmp.eq.s32.totalorder %s22, 1
    %p155 = por %p153, %p154
    %p156 = scmp.ne.s32.totalorder %s147, %s148
    %p157 = scmp.eq.s32.totalorder %s22, 0
    %p158 = por %p156, %p157
    %p159 = scmp.ne.s32.totalorder %s147, %s148
    %p160 = scmp.eq.s32.totalorder %s23, 1
    %p161 = por %p159, %p160
    %p163 = scmp.ne.s32.totalorder %s148, %s162
    %p164 = scmp.eq.s32.totalorder %s23, 0
    %p165 = por %p163, %p164
    %s167 = sadd.s32 %s166, 1
    %p170 = scmp.eq.s32.totalorder %s17, 1
    %p171 = scmp.ne.s32.totalorder %s166, %s168
    %p172 = scmp.eq.s32.totalorder %s17, 0
    %p173 = por %p171, %p172
    %p174 = scmp.ne.s32.totalorder %s166, %s168
    %p175 = scmp.eq.s32.totalorder %s22, 1
    %p176 = por %p174, %p175
    %p177 = scmp.ne.s32.totalorder %s168, %s169
    %p178 = scmp.eq.s32.totalorder %s22, 0
    %p179 = por %p177, %p178
    %p180 = scmp.ne.s32.totalorder %s168, %s169
    %p181 = scmp.eq.s32.totalorder %s23, 1
    %p182 = por %p180, %p181
    %p184 = scmp.ne.s32.totalorder %s169, %s183
    %p185 = scmp.eq.s32.totalorder %s23, 0
    %p186 = por %p184, %p185
    %s188 = sadd.s32 %s187, 1
    %p191 = scmp.eq.s32.totalorder %s17, 1
    %p192 = scmp.ne.s32.totalorder %s187, %s189
    %p193 = scmp.eq.s32.totalorder %s17, 0
    %p194 = por %p192, %p193
    %p195 = scmp.ne.s32.totalorder %s187, %s189
    %p196 = scmp.eq.s32.totalorder %s22, 1
    %p197 = por %p195, %p196
    %p198 = scmp.ne.s32.totalorder %s189, %s190
    %p199 = scmp.eq.s32.totalorder %s22, 0
    %p200 = por %p198, %p199
    %p201 = scmp.ne.s32.totalorder %s189, %s190
    %p202 = scmp.eq.s32.totalorder %s23, 1
    %p203 = por %p201, %p202
    %p205 = scmp.ne.s32.totalorder %s190, %s204
    %p206 = scmp.eq.s32.totalorder %s23, 0
    %p207 = por %p205, %p206
    %s208 = ssub.s32 %s17, %s24
    %p209 = scmp.eq.s32.totalorder %s208, 0
    %s211 = sadd.s32 %s210, 1
    %s212 = scalar_select %p209, %s210, %s211
    %p215 = pneg %p209
    %p216 = scmp.eq.s32.totalorder %s17, 1
    %p217 = por %p215, %p216
    %p218 = scmp.ne.s32.totalorder %s210, %s213
    %p219 = scmp.eq.s32.totalorder %s17, 0
    %p220 = por %p218, %p219
    %p221 = scmp.ne.s32.totalorder %s210, %s213
    %p222 = scmp.eq.s32.totalorder %s22, 1
    %p223 = por %p221, %p222
    %p224 = scmp.ne.s32.totalorder %s213, %s214
    %p225 = scmp.eq.s32.totalorder %s22, 0
    %p226 = por %p224, %p225
    %p227 = scmp.ne.s32.totalorder %s213, %s214
    %p228 = scmp.eq.s32.totalorder %s23, 1
    %p229 = por %p227, %p228
    %p231 = scmp.ne.s32.totalorder %s214, %s230
    %p232 = scmp.eq.s32.totalorder %s23, 0
    %p233 = por %p231, %p232
    %s234 = ssub.s32 %s17, %s24
    %p235 = scmp.eq.s32.totalorder %s234, 0
    %s237 = sadd.s32 %s236, 1
    %s238 = scalar_select %p235, %s236, %s237
    %p241 = pneg %p235
    %p242 = scmp.eq.s32.totalorder %s17, 1
    %p243 = por %p241, %p242
    %p244 = scmp.ne.s32.totalorder %s236, %s239
    %p245 = scmp.eq.s32.totalorder %s17, 0
    %p246 = por %p244, %p245
    %p247 = scmp.ne.s32.totalorder %s236, %s239
    %p248 = scmp.eq.s32.totalorder %s22, 1
    %p249 = por %p247, %p248
    %p250 = scmp.ne.s32.totalorder %s239, %s240
    %p251 = scmp.eq.s32.totalorder %s22, 0
    %p252 = por %p250, %p251
    %p253 = scmp.ne.s32.totalorder %s239, %s240
    %p254 = scmp.eq.s32.totalorder %s23, 1
    %p255 = por %p253, %p254
    %p257 = scmp.ne.s32.totalorder %s240, %s256
    %p258 = scmp.eq.s32.totalorder %s23, 0
    %p259 = por %p257, %p258
    %s260 = ssub.s32 %s17, %s24
    %p261 = scmp.eq.s32.totalorder %s260, 0
    %s263 = sadd.s32 %s262, 1
    %s264 = scalar_select %p261, %s262, %s263
    %p267 = pneg %p261
    %p268 = scmp.eq.s32.totalorder %s17, 1
    %p269 = por %p267, %p268
    %p270 = scmp.ne.s32.totalorder %s262, %s265
    %p271 = scmp.eq.s32.totalorder %s17, 0
    %p272 = por %p270, %p271
    %p273 = scmp.ne.s32.totalorder %s262, %s265
    %p274 = scmp.eq.s32.totalorder %s22, 1
    %p275 = por %p273, %p274
    %p276 = scmp.ne.s32.totalorder %s265, %s266
    %p277 = scmp.eq.s32.totalorder %s22, 0
    %p278 = por %p276, %p277
    %p279 = scmp.ne.s32.totalorder %s265, %s266
    %p280 = scmp.eq.s32.totalorder %s23, 1
    %p281 = por %p279, %p280
    %p283 = scmp.ne.s32.totalorder %s266, %s282
    %p284 = scmp.eq.s32.totalorder %s23, 0
    %p285 = por %p283, %p284
    %p286 = scmp.le.s32.totalorder 1, %s17
    %p287 = scmp.lt.s32.totalorder %s17, 3
    %p288 = pnand %p286, %p287
    %p289 = pneg %p288
    // Predicated region
    $region9: #{upsample_block_forward.3} parent=5 // pred_check
      _
    $region10: #{upsample_block_forward.3} parent=5 // pred_check_branch
      %291 = sbr.rel (%p288) target = $region12
    $region11: #{upsample_block_forward.3} parent=5 // pred_region
      %s292 = ssub.s32 %s17, 1
      // Predicated region
      $region13: #{upsample_block_forward.3} parent=11 // pred_check
        %p293 = pneg %p116
      $region14: #{upsample_block_forward.3} parent=11 // pred_check_branch
        %295 = sbr.rel (%p293) target = $region16
      $region15: #{upsample_block_forward.3} parent=11 // pred_region
        _
      $region16: #{upsample_block_forward.3} parent=11 // pred_fallthru
        _
      // Predicated region
      $region17: #{upsample_block_forward.3} parent=11 // pred_check
        %p296 = pneg %p137
      $region18: #{upsample_block_forward.3} parent=11 // pred_check_branch
        %298 = sbr.rel (%p296) target = $region20
      $region19: #{upsample_block_forward.3} parent=11 // pred_region
        _
      $region20: #{upsample_block_forward.3} parent=11 // pred_fallthru
        _
      // Predicated region
      $region21: #{upsample_block_forward.3} parent=11 // pred_check
        %p299 = pneg %p158
      $region22: #{upsample_block_forward.3} parent=11 // pred_check_branch
        %301 = sbr.rel (%p299) target = $region24
      $region23: #{upsample_block_forward.3} parent=11 // pred_region
        _
      $region24: #{upsample_block_forward.3} parent=11 // pred_fallthru
        _
      // Predicated region
      $region25: #{upsample_block_forward.3} parent=11 // pred_check
        %p302 = pneg %p179
      $region26: #{upsample_block_forward.3} parent=11 // pred_check_branch
        %304 = sbr.rel (%p302) target = $region28
      $region27: #{upsample_block_forward.3} parent=11 // pred_region
        _
      $region28: #{upsample_block_forward.3} parent=11 // pred_fallthru
        _
      // Predicated region
      $region29: #{upsample_block_forward.3} parent=11 // pred_check
        %p305 = pneg %p200
      $region30: #{upsample_block_forward.3} parent=11 // pred_check_branch
        %307 = sbr.rel (%p305) target = $region32
      $region31: #{upsample_block_forward.3} parent=11 // pred_region
        _
      $region32: #{upsample_block_forward.3} parent=11 // pred_fallthru
        _
    $region12: #{upsample_block_forward.3} parent=5 // pred_fallthru
      _
    %p308 = scmp.lt.s32.totalorder %s17, 2
    // Predicated region
    $region33: #{upsample_block_forward.3} parent=5 // pred_check
      %p309 = pneg %p308
    $region34: #{upsample_block_forward.3} parent=5 // pred_check_branch
      %311 = sbr.rel (%p309) target = $region36
    $region35: #{upsample_block_forward.3} parent=5 // pred_region
      // Predicated region
      $region37: #{upsample_block_forward.3} parent=35 // pred_check
        %p312 = pneg %p37
      $region38: #{upsample_block_forward.3} parent=35 // pred_check_branch
        %314 = sbr.rel (%p312) target = $region40
      $region39: #{upsample_block_forward.3} parent=35 // pred_region
        %p315 = scmp.lt.s32.totalorder %s17, 1
        %s316 = scalar_select %p315, %s17, 1
        %s317 = smul.addr %s316, 2
        %s318 = smul.addr %s317, 4
        %s319 = scalar_lea.vmem %s0, %s318
      $region40: #{upsample_block_forward.3} parent=35 // pred_fallthru
        _
      // Predicated region
      $region41: #{upsample_block_forward.3} parent=35 // pred_check
        %p320 = pneg %p63
      $region42: #{upsample_block_forward.3} parent=35 // pred_check_branch
        %322 = sbr.rel (%p320) target = $region44
      $region43: #{upsample_block_forward.3} parent=35 // pred_region
        %p323 = scmp.lt.s32.totalorder %s17, 1
        %s324 = scalar_select %p323, %s17, 1
        %s325 = smul.addr %s324, 2
        %s326 = smul.addr %s325, 4
        %s327 = scalar_lea.vmem %s1, %s326
      $region44: #{upsample_block_forward.3} parent=35 // pred_fallthru
        _
      // Predicated region
      $region45: #{upsample_block_forward.3} parent=35 // pred_check
        %p328 = pneg %p89
      $region46: #{upsample_block_forward.3} parent=35 // pred_check_branch
        %330 = sbr.rel (%p328) target = $region48
      $region47: #{upsample_block_forward.3} parent=35 // pred_region
        %p331 = scmp.lt.s32.totalorder %s17, 1
        %s332 = scalar_select %p331, %s17, 1
        %s333 = smul.addr %s332, 2
        %s334 = smul.addr %s333, 4
        %s335 = scalar_lea.vmem %s2, %s334
      $region48: #{upsample_block_forward.3} parent=35 // pred_fallthru
        _
    $region36: #{upsample_block_forward.3} parent=5 // pred_fallthru
      _
    %p336 = scmp.le.s32.totalorder 1, %s17
    %p337 = scmp.lt.s32.totalorder %s17, 3
    %p338 = pnand %p336, %p337
    %p339 = pneg %p338
    // Predicated region
    $region49: #{upsample_block_forward.3} parent=5 // pred_check
      _
    $region50: #{upsample_block_forward.3} parent=5 // pred_check_branch
      %341 = sbr.rel (%p338) target = $region52
    $region51: #{upsample_block_forward.3} parent=5 // pred_region
      %s342 = ssub.s32 %s17, 1
      %p343 = scmp.lt.s32.totalorder %s22, 1
      %s344 = scalar_select %p343, %s22, 1
      %s345 = smul.addr %s344, 2
      %s346 = smul.addr %s345, 4
      %s347 = scalar_lea.vmem %s0, %s346
      %p348 = pneg %p43
      %p349 = pneg %p40
      %p350 = scmp.lt.s32.totalorder %s22, 1
      %s351 = scalar_select %p350, %s22, 1
      %s352 = smul.addr %s351, 2
      %s353 = smul.addr %s352, 4
      %s354 = scalar_lea.vmem %s1, %s353
      %p355 = pneg %p69
      %p356 = pneg %p66
      %p357 = scmp.lt.s32.totalorder %s22, 1
      %s358 = scalar_select %p357, %s22, 1
      %s359 = smul.addr %s358, 2
      %s360 = smul.addr %s359, 4
      %s361 = scalar_lea.vmem %s2, %s360
      %p362 = pneg %p95
      %p363 = pneg %p92
      %p364 = pneg %p116
      %p365 = pneg %p113
      %p366 = pneg %p137
      %p367 = pneg %p134
      %p368 = pneg %p158
      %p369 = pneg %p155
      %p370 = pneg %p179
      %p371 = pneg %p176
      %p372 = pneg %p200
      %p373 = pneg %p197
      %p374 = pneg %p226
      %p375 = pneg %p223
      %p376 = scmp.lt.s32.totalorder %s22, 1
      %s377 = scalar_select %p376, %s22, 1
      %s378 = smul.addr %s377, 2
      %s379 = smul.addr %s378, 4
      %s380 = scalar_lea.vmem %s8, %s379
      %p381 = pneg %p252
      %p382 = pneg %p249
      %p383 = scmp.lt.s32.totalorder %s22, 1
      %s384 = scalar_select %p383, %s22, 1
      %s385 = scalar_lea.vmem %s9, %s384
      %p386 = pneg %p278
      %p387 = pneg %p275
      %p388 = scmp.lt.s32.totalorder %s22, 1
      %s389 = scalar_select %p388, %s22, 1
      %s390 = scalar_lea.vmem %s10, %s389
      %p391 = scmp.lt.s32.totalorder %s22, 1
      %s392 = scalar_select %p391, %s22, 1
      %s393 = smul.addr %s392, 2
      %s394 = smul.addr %s393, 4
      %s395 = scalar_lea.vmem %s0, %s394
      %p396 = scmp.lt.s32.totalorder %s22, 1
      %s397 = scalar_select %p396, %s22, 1
      %s398 = smul.addr %s397, 2
      %s399 = smul.addr %s398, 4
      %s400 = scalar_lea.vmem %s1, %s399
      %p401 = scmp.lt.s32.totalorder %s22, 1
      %s402 = scalar_select %p401, %s22, 1
      %s403 = smul.addr %s402, 2
      %s404 = smul.addr %s403, 4
      %s405 = scalar_lea.vmem %s2, %s404
      %p406 = scmp.lt.s32.totalorder %s22, 1
      %s407 = scalar_select %p406, %s22, 1
      %s408 = smul.addr %s407, 2
      %s409 = smul.addr %s408, 4
      %s410 = scalar_lea.vmem %s8, %s409
      %p411 = scmp.lt.s32.totalorder %s22, 1
      %s412 = scalar_select %p411, %s22, 1
      %s413 = scalar_lea.vmem %s9, %s412
      %p414 = scmp.lt.s32.totalorder %s22, 1
      %s415 = scalar_select %p414, %s22, 1
      %s416 = scalar_lea.vmem %s10, %s415
      %v418 = vld [vmem:[%s395] sm:$0xf]
      %s419 = scalar_lea.vmem %s3, 96
      %v420 = vld [vmem:[%s419] sm:$0xf]
      %v421 = vld [vmem:[%s419 + $0x4] sm:$0xf]
      %v422 = vld [vmem:[%s419 + $0x8] sm:$0xf]
      %v423 = vld [vmem:[%s419 + $0xc] sm:$0xf]
      %v424 = vld [vmem:[%s419 + $0x10] sm:$0xf]
      %v425 = vld [vmem:[%s419 + $0x14] sm:$0xf]
      %v426 = vld [vmem:[%s419 + $0x18] sm:$0xf]
      %v427 = vld [vmem:[%s419 + $0x1c] sm:$0xf]
      %v428 = vld [vmem:[%s395 + $0x4] sm:$0x1]
      %s429 = scalar_lea.vmem %s3, 32
      %v430 = vld [vmem:[%s429] sm:$0xf]
      %v431 = vld [vmem:[%s429 + $0x4] sm:$0xf]
      %v432 = vld [vmem:[%s429 + $0x8] sm:$0xf]
      %v433 = vld [vmem:[%s429 + $0xc] sm:$0xf]
      %v434 = vld [vmem:[%s429 + $0x10] sm:$0xf]
      %v435 = vld [vmem:[%s429 + $0x14] sm:$0xf]
      %v436 = vld [vmem:[%s429 + $0x18] sm:$0xf]
      %v437 = vld [vmem:[%s429 + $0x1c] sm:$0xf]
      %v440 = vunpack.c.l.b16 %v418
      %v441 = vunpack.c.l.b16 %v428
      %v442 = vpack.c.b16 %v441, %v440
      %v444 = vshrl.u32 %v442, 16
      %v446 = vshll.u32 %v442, 16
      %v448 = vrot.slane %v446, 1
      %v449 = vor.u32 %v444, %v448
      %v458 = vunpack.c.l.b16 %v430
      %v459 = vunpack.c.l.b16 %v431
      %v460 = vunpack.c.l.b16 %v432
      %v461 = vunpack.c.l.b16 %v433
      %v462 = vunpack.c.l.b16 %v434
      %v463 = vunpack.c.l.b16 %v435
      %v464 = vunpack.c.l.b16 %v436
      %v465 = vunpack.c.l.b16 %v437
      %v466 = vpack.c.b16 %v459, %v458
      %v467 = vpack.c.b16 %v461, %v460
      %v468 = vpack.c.b16 %v463, %v462
      %v469 = vpack.c.b16 %v465, %v464
      %vm474 = vcmask 523264
      %v476 = vsel %vm474, %v449, 0
      %478 = vmatprep.subr.bf16.mxu0 0
      %479 = vmatpush1.bf16.msra.mxu0 0
      %480 = vmatprep.subr.bf16.mxu0 0
      %481 = vmatpush1.bf16.msra.mxu0 0
      %482 = vmatprep.subr.bf16.mxu0 0
      %483 = vmatpush1.bf16.msra.mxu0 0
      %484 = vmatprep.subr.bf16.mxu0 0
      %485 = vmatpush1.bf16.msra.mxu0 0
      %486 = vmatprep.subr.bf16.mxu0 0
      %487 = vmatpush1.bf16.msra.mxu0 %v469
      %488 = vmatprep.subr.bf16.mxu0 0
      %489 = vmatpush1.bf16.msra.mxu0 %v468
      %490 = vmatprep.subr.bf16.mxu0 0
      %491 = vmatpush1.bf16.msra.mxu0 %v467
      %492 = vmatprep.subr.bf16.mxu0 0
      %493 = vmatpush1.bf16.msra.mxu0 %v466
      %494 = vmatprep.subr.bf16.mxu0 0
      %495 = vmatpush2.bf16.msra.mxu0 0
      %496 = vmatprep.subr.bf16.mxu0 0
      %497 = vmatpush2.bf16.msra.mxu0 0
      %498 = vmatprep.subr.bf16.mxu0 0
      %499 = vmatpush2.bf16.msra.mxu0 0
      %500 = vmatprep.subr.bf16.mxu0 0
      %501 = vmatpush2.bf16.msra.mxu0 0
      %502 = vmatprep.subr.bf16.mxu0 0
      %503 = vmatpush2.bf16.msra.mxu0 0
      %504 = vmatprep.subr.bf16.mxu0 0
      %505 = vmatpush2.bf16.msra.mxu0 0
      %506 = vmatprep.subr.bf16.mxu0 0
      %507 = vmatpush2.bf16.msra.mxu0 0
      %508 = vmatprep.subr.bf16.mxu0 0
      %509 = vmatpush2.bf16.msra.mxu0 0
      %510 = vmatprep.mubr.bf16.mxu0 0
      %511 = vmatmul.mubr.bf16.gmra.mxu0 %v476
      %v512 = vpop.f32.mrf.mxu0
      %v513 = vadd.f32 0.0, %v512
      %v514 = vpop.f32.mrf.mxu0
      %v515 = vpop.f32.mrf.mxu0
      %v516 = vpop.f32.mrf.mxu0
      %517 = vdwg.mxu0
      %v526 = vunpack.c.l.b16 %v420
      %v527 = vunpack.c.l.b16 %v421
      %v528 = vunpack.c.l.b16 %v422
      %v529 = vunpack.c.l.b16 %v423
      %v530 = vunpack.c.l.b16 %v424
      %v531 = vunpack.c.l.b16 %v425
      %v532 = vunpack.c.l.b16 %v426
      %v533 = vunpack.c.l.b16 %v427
      %v534 = vpack.c.b16 %v527, %v526
      %v535 = vpack.c.b16 %v529, %v528
      %v536 = vpack.c.b16 %v531, %v530
      %v537 = vpack.c.b16 %v533, %v532
      %v543 = vsel %vm474, %v418, 0
      %545 = vmatprep.subr.bf16.mxu0 0
      %546 = vmatpush1.bf16.msra.mxu0 0
      %547 = vmatprep.subr.bf16.mxu0 0
      %548 = vmatpush1.bf16.msra.mxu0 0
      %549 = vmatprep.subr.bf16.mxu0 0
      %550 = vmatpush1.bf16.msra.mxu0 0
      %551 = vmatprep.subr.bf16.mxu0 0
      %552 = vmatpush1.bf16.msra.mxu0 0
      %553 = vmatprep.subr.bf16.mxu0 0
      %554 = vmatpush1.bf16.msra.mxu0 %v537
      %555 = vmatprep.subr.bf16.mxu0 0
      %556 = vmatpush1.bf16.msra.mxu0 %v536
      %557 = vmatprep.subr.bf16.mxu0 0
      %558 = vmatpush1.bf16.msra.mxu0 %v535
      %559 = vmatprep.subr.bf16.mxu0 0
      %560 = vmatpush1.bf16.msra.mxu0 %v534
      %561 = vmatprep.subr.bf16.mxu0 0
      %562 = vmatpush2.bf16.msra.mxu0 0
      %563 = vmatprep.subr.bf16.mxu0 0
      %564 = vmatpush2.bf16.msra.mxu0 0
      %565 = vmatprep.subr.bf16.mxu0 0
      %566 = vmatpush2.bf16.msra.mxu0 0
      %567 = vmatprep.subr.bf16.mxu0 0
      %568 = vmatpush2.bf16.msra.mxu0 0
      %569 = vmatprep.subr.bf16.mxu0 0
      %570 = vmatpush2.bf16.msra.mxu0 0
      %571 = vmatprep.subr.bf16.mxu0 0
      %572 = vmatpush2.bf16.msra.mxu0 0
      %573 = vmatprep.subr.bf16.mxu0 0
      %574 = vmatpush2.bf16.msra.mxu0 0
      %575 = vmatprep.subr.bf16.mxu0 0
      %576 = vmatpush2.bf16.msra.mxu0 0
      %577 = vmatprep.mubr.bf16.mxu0 0
      %578 = vmatmul.mubr.bf16.gmra.mxu0 %v543
      %v579 = vpop.f32.mrf.mxu0
      %v580 = vadd.f32 %v513, %v579
      %v581 = vpop.f32.mrf.mxu0
      %v582 = vpop.f32.mrf.mxu0
      %v583 = vpop.f32.mrf.mxu0
      %584 = vdwg.mxu0
      %v585 = vld [vmem:[%s6] sm:$0x1]
      %v587 = vlaneseq
      %v588 = vshrl.u32 %v587, 7
      %v589 = vsub.s32 0, %v588
      %v590 = vrot.slane %v585, %v589
      %v592 = vadd.f32 %v580, %v590
      %s593 = scalar_lea.vmem %s3, 64
      %v594 = vld [vmem:[%s593] sm:$0xf]
      %v595 = vld [vmem:[%s593 + $0x4] sm:$0xf]
      %v596 = vld [vmem:[%s593 + $0x8] sm:$0xf]
      %v597 = vld [vmem:[%s593 + $0xc] sm:$0xf]
      %v598 = vld [vmem:[%s593 + $0x10] sm:$0xf]
      %v599 = vld [vmem:[%s593 + $0x14] sm:$0xf]
      %v600 = vld [vmem:[%s593 + $0x18] sm:$0xf]
      %v601 = vld [vmem:[%s593 + $0x1c] sm:$0xf]
      %v602 = vld [vmem:[%s395] sm:$0xe]
      %v603 = vld [vmem:[%s3] sm:$0xf]
      %v604 = vld [vmem:[%s3 + $0x4] sm:$0xf]
      %v605 = vld [vmem:[%s3 + $0x8] sm:$0xf]
      %v606 = vld [vmem:[%s3 + $0xc] sm:$0xf]
      %v607 = vld [vmem:[%s3 + $0x10] sm:$0xf]
      %v608 = vld [vmem:[%s3 + $0x14] sm:$0xf]
      %v609 = vld [vmem:[%s3 + $0x18] sm:$0xf]
      %v610 = vld [vmem:[%s3 + $0x1c] sm:$0xf]
      %v612 = vunpack.c.l.b16 %v602
      %v613 = vpack.c.b16 %v441, %v612
      %v614 = vrot.slane %v613, 1
      %v623 = vunpack.c.l.b16 %v603
      %v624 = vunpack.c.l.b16 %v604
      %v625 = vunpack.c.l.b16 %v605
      %v626 = vunpack.c.l.b16 %v606
      %v627 = vunpack.c.l.b16 %v607
      %v628 = vunpack.c.l.b16 %v608
      %v629 = vunpack.c.l.b16 %v609
      %v630 = vunpack.c.l.b16 %v610
      %v631 = vpack.c.b16 %v624, %v623
      %v632 = vpack.c.b16 %v626, %v625
      %v633 = vpack.c.b16 %v628, %v627
      %v634 = vpack.c.b16 %v630, %v629
      %v640 = vsel %vm474, %v614, 0
      %642 = vmatprep.subr.bf16.mxu0 0
      %643 = vmatpush1.bf16.msra.mxu0 0
      %644 = vmatprep.subr.bf16.mxu0 0
      %645 = vmatpush1.bf16.msra.mxu0 0
      %646 = vmatprep.subr.bf16.mxu0 0
      %647 = vmatpush1.bf16.msra.mxu0 0
      %648 = vmatprep.subr.bf16.mxu0 0
      %649 = vmatpush1.bf16.msra.mxu0 0
      %650 = vmatprep.subr.bf16.mxu0 0
      %651 = vmatpush1.bf16.msra.mxu0 %v634
      %652 = vmatprep.subr.bf16.mxu0 0
      %653 = vmatpush1.bf16.msra.mxu0 %v633
      %654 = vmatprep.subr.bf16.mxu0 0
      %655 = vmatpush1.bf16.msra.mxu0 %v632
      %656 = vmatprep.subr.bf16.mxu0 0
      %657 = vmatpush1.bf16.msra.mxu0 %v631
      %658 = vmatprep.subr.bf16.mxu0 0
      %659 = vmatpush2.bf16.msra.mxu0 0
      %660 = vmatprep.subr.bf16.mxu0 0
      %661 = vmatpush2.bf16.msra.mxu0 0
      %662 = vmatprep.subr.bf16.mxu0 0
      %663 = vmatpush2.bf16.msra.mxu0 0
      %664 = vmatprep.subr.bf16.mxu0 0
      %665 = vmatpush2.bf16.msra.mxu0 0
      %666 = vmatprep.subr.bf16.mxu0 0
      %667 = vmatpush2.bf16.msra.mxu0 0
      %668 = vmatprep.subr.bf16.mxu0 0
      %669 = vmatpush2.bf16.msra.mxu0 0
      %670 = vmatprep.subr.bf16.mxu0 0
      %671 = vmatpush2.bf16.msra.mxu0 0
      %672 = vmatprep.subr.bf16.mxu0 0
      %673 = vmatpush2.bf16.msra.mxu0 0
      %674 = vmatprep.mubr.bf16.mxu0 0
      %675 = vmatmul.mubr.bf16.gmra.mxu0 %v640
      %v676 = vpop.f32.mrf.mxu0
      %v677 = vadd.f32 0.0, %v676
      %v678 = vpop.f32.mrf.mxu0
      %v679 = vpop.f32.mrf.mxu0
      %v680 = vpop.f32.mrf.mxu0
      %681 = vdwg.mxu0
      %v690 = vunpack.c.l.b16 %v594
      %v691 = vunpack.c.l.b16 %v595
      %v692 = vunpack.c.l.b16 %v596
      %v693 = vunpack.c.l.b16 %v597
      %v694 = vunpack.c.l.b16 %v598
      %v695 = vunpack.c.l.b16 %v599
      %v696 = vunpack.c.l.b16 %v600
      %v697 = vunpack.c.l.b16 %v601
      %v698 = vpack.c.b16 %v691, %v690
      %v699 = vpack.c.b16 %v693, %v692
      %v700 = vpack.c.b16 %v695, %v694
      %v701 = vpack.c.b16 %v697, %v696
      %706 = vmatprep.subr.bf16.mxu0 0
      %707 = vmatpush1.bf16.msra.mxu0 0
      %708 = vmatprep.subr.bf16.mxu0 0
      %709 = vmatpush1.bf16.msra.mxu0 0
      %710 = vmatprep.subr.bf16.mxu0 0
      %711 = vmatpush1.bf16.msra.mxu0 0
      %712 = vmatprep.subr.bf16.mxu0 0
      %713 = vmatpush1.bf16.msra.mxu0 0
      %714 = vmatprep.subr.bf16.mxu0 0
      %715 = vmatpush1.bf16.msra.mxu0 %v701
      %716 = vmatprep.subr.bf16.mxu0 0
      %717 = vmatpush1.bf16.msra.mxu0 %v700
      %718 = vmatprep.subr.bf16.mxu0 0
      %719 = vmatpush1.bf16.msra.mxu0 %v699
      %720 = vmatprep.subr.bf16.mxu0 0
      %721 = vmatpush1.bf16.msra.mxu0 %v698
      %722 = vmatprep.subr.bf16.mxu0 0
      %723 = vmatpush2.bf16.msra.mxu0 0
      %724 = vmatprep.subr.bf16.mxu0 0
      %725 = vmatpush2.bf16.msra.mxu0 0
      %726 = vmatprep.subr.bf16.mxu0 0
      %727 = vmatpush2.bf16.msra.mxu0 0
      %728 = vmatprep.subr.bf16.mxu0 0
      %729 = vmatpush2.bf16.msra.mxu0 0
      %730 = vmatprep.subr.bf16.mxu0 0
      %731 = vmatpush2.bf16.msra.mxu0 0
      %732 = vmatprep.subr.bf16.mxu0 0
      %733 = vmatpush2.bf16.msra.mxu0 0
      %734 = vmatprep.subr.bf16.mxu0 0
      %735 = vmatpush2.bf16.msra.mxu0 0
      %736 = vmatprep.subr.bf16.mxu0 0
      %737 = vmatpush2.bf16.msra.mxu0 0
      %738 = vmatprep.mubr.bf16.mxu0 0
      %739 = vmatmul.mubr.bf16.gmra.mxu0 %v476
      %v740 = vpop.f32.mrf.mxu0
      %v741 = vadd.f32 %v677, %v740
      %v742 = vpop.f32.mrf.mxu0
      %v743 = vpop.f32.mrf.mxu0
      %v744 = vpop.f32.mrf.mxu0
      %745 = vdwg.mxu0
      %v746 = vadd.f32 %v741, %v590
      %747 = vst.msk [vmem:[#allocation2] sm:$0xff] %vm474, %v592
      %vm748 = vcmask 516096
      %749 = vst.msk [vmem:[#allocation2 + $0x8] sm:$0x1] %vm748, 0.0
      %750 = vst.msk [vmem:[#allocation3] sm:$0x1] %vm748, 0.0
      %751 = vst.msk [vmem:[#allocation3 + $0x1] sm:$0xff] %vm474, %v746
      %v752 = vld [vmem:[#allocation2] sm:$0xff]
      %v753 = vpack.c.bf16 %v752, %v752
      %v754 = vld [vmem:[#allocation2 + $0x1] sm:$0xff]
      %v755 = vpack.c.bf16 %v754, %v754
      %v756 = vld [vmem:[#allocation3] sm:$0xff]
      %v757 = vpack.c.bf16 %v756, %v756
      %v758 = vld [vmem:[#allocation3 + $0x1] sm:$0xff]
      %v759 = vpack.c.bf16 %v758, %v758
      %v760 = vld [vmem:[%s4] sm:$0xf]
      %v761 = vld [vmem:[%s4 + $0x4] sm:$0xf]
      %v762 = vld [vmem:[%s4 + $0x8] sm:$0xf]
      %v763 = vld [vmem:[%s4 + $0xc] sm:$0xf]
      %v764 = vld [vmem:[%s4 + $0x10] sm:$0xf]
      %v765 = vld [vmem:[%s4 + $0x14] sm:$0xf]
      %v766 = vld [vmem:[%s4 + $0x18] sm:$0xf]
      %v767 = vld [vmem:[%s4 + $0x1c] sm:$0xf]
      %s768 = scalar_lea.vmem %s4, 32
      %v769 = vld [vmem:[%s768] sm:$0xf]
      %v770 = vld [vmem:[%s768 + $0x4] sm:$0xf]
      %v771 = vld [vmem:[%s768 + $0x8] sm:$0xf]
      %v772 = vld [vmem:[%s768 + $0xc] sm:$0xf]
      %v773 = vld [vmem:[%s768 + $0x10] sm:$0xf]
      %v774 = vld [vmem:[%s768 + $0x14] sm:$0xf]
      %v775 = vld [vmem:[%s768 + $0x18] sm:$0xf]
      %v776 = vld [vmem:[%s768 + $0x1c] sm:$0xf]
      %v785 = vunpack.c.l.b16 %v769
      %v786 = vunpack.c.l.b16 %v770
      %v787 = vunpack.c.l.b16 %v771
      %v788 = vunpack.c.l.b16 %v772
      %v789 = vunpack.c.l.b16 %v773
      %v790 = vunpack.c.l.b16 %v774
      %v791 = vunpack.c.l.b16 %v775
      %v792 = vunpack.c.l.b16 %v776
      %v793 = vpack.c.b16 %v786, %v785
      %v794 = vpack.c.b16 %v788, %v787
      %v795 = vpack.c.b16 %v790, %v789
      %v796 = vpack.c.b16 %v792, %v791
      %v802 = vsel %vm474, %v753, 0
      %804 = vmatprep.subr.bf16.mxu0 0
      %805 = vmatpush1.bf16.msra.mxu0 0
      %806 = vmatprep.subr.bf16.mxu0 0
      %807 = vmatpush1.bf16.msra.mxu0 0
      %808 = vmatprep.subr.bf16.mxu0 0
      %809 = vmatpush1.bf16.msra.mxu0 0
      %810 = vmatprep.subr.bf16.mxu0 0
      %811 = vmatpush1.bf16.msra.mxu0 0
      %812 = vmatprep.subr.bf16.mxu0 0
      %813 = vmatpush1.bf16.msra.mxu0 %v796
      %814 = vmatprep.subr.bf16.mxu0 0
      %815 = vmatpush1.bf16.msra.mxu0 %v795
      %816 = vmatprep.subr.bf16.mxu0 0
      %817 = vmatpush1.bf16.msra.mxu0 %v794
      %818 = vmatprep.subr.bf16.mxu0 0
      %819 = vmatpush1.bf16.msra.mxu0 %v793
      %820 = vmatprep.subr.bf16.mxu0 0
      %821 = vmatpush2.bf16.msra.mxu0 0
      %822 = vmatprep.subr.bf16.mxu0 0
      %823 = vmatpush2.bf16.msra.mxu0 0
      %824 = vmatprep.subr.bf16.mxu0 0
      %825 = vmatpush2.bf16.msra.mxu0 0
      %826 = vmatprep.subr.bf16.mxu0 0
      %827 = vmatpush2.bf16.msra.mxu0 0
      %828 = vmatprep.subr.bf16.mxu0 0
      %829 = vmatpush2.bf16.msra.mxu0 0
      %830 = vmatprep.subr.bf16.mxu0 0
      %831 = vmatpush2.bf16.msra.mxu0 0
      %832 = vmatprep.subr.bf16.mxu0 0
      %833 = vmatpush2.bf16.msra.mxu0 0
      %834 = vmatprep.subr.bf16.mxu0 0
      %835 = vmatpush2.bf16.msra.mxu0 0
      %836 = vmatprep.mubr.bf16.mxu0 0
      %837 = vmatmul.mubr.bf16.gmra.mxu0 %v802
      %v838 = vpop.f32.mrf.mxu0
      %v839 = vadd.f32 0.0, %v838
      %v840 = vpop.f32.mrf.mxu0
      %v841 = vpop.f32.mrf.mxu0
      %v842 = vpop.f32.mrf.mxu0
      %843 = vdwg.mxu0
      %v852 = vunpack.c.l.b16 %v760
      %v853 = vunpack.c.l.b16 %v761
      %v854 = vunpack.c.l.b16 %v762
      %v855 = vunpack.c.l.b16 %v763
      %v856 = vunpack.c.l.b16 %v764
      %v857 = vunpack.c.l.b16 %v765
      %v858 = vunpack.c.l.b16 %v766
      %v859 = vunpack.c.l.b16 %v767
      %v860 = vpack.c.b16 %v853, %v852
      %v861 = vpack.c.b16 %v855, %v854
      %v862 = vpack.c.b16 %v857, %v856
      %v863 = vpack.c.b16 %v859, %v858
      %v869 = vsel %vm474, %v757, 0
      %871 = vmatprep.subr.bf16.mxu0 0
      %872 = vmatpush1.bf16.msra.mxu0 0
      %873 = vmatprep.subr.bf16.mxu0 0
      %874 = vmatpush1.bf16.msra.mxu0 0
      %875 = vmatprep.subr.bf16.mxu0 0
      %876 = vmatpush1.bf16.msra.mxu0 0
      %877 = vmatprep.subr.bf16.mxu0 0
      %878 = vmatpush1.bf16.msra.mxu0 0
      %879 = vmatprep.subr.bf16.mxu0 0
      %880 = vmatpush1.bf16.msra.mxu0 %v863
      %881 = vmatprep.subr.bf16.mxu0 0
      %882 = vmatpush1.bf16.msra.mxu0 %v862
      %883 = vmatprep.subr.bf16.mxu0 0
      %884 = vmatpush1.bf16.msra.mxu0 %v861
      %885 = vmatprep.subr.bf16.mxu0 0
      %886 = vmatpush1.bf16.msra.mxu0 %v860
      %887 = vmatprep.subr.bf16.mxu0 0
      %888 = vmatpush2.bf16.msra.mxu0 0
      %889 = vmatprep.subr.bf16.mxu0 0
      %890 = vmatpush2.bf16.msra.mxu0 0
      %891 = vmatprep.subr.bf16.mxu0 0
      %892 = vmatpush2.bf16.msra.mxu0 0
      %893 = vmatprep.subr.bf16.mxu0 0
      %894 = vmatpush2.bf16.msra.mxu0 0
      %895 = vmatprep.subr.bf16.mxu0 0
      %896 = vmatpush2.bf16.msra.mxu0 0
      %897 = vmatprep.subr.bf16.mxu0 0
      %898 = vmatpush2.bf16.msra.mxu0 0
      %899 = vmatprep.subr.bf16.mxu0 0
      %900 = vmatpush2.bf16.msra.mxu0 0
      %901 = vmatprep.subr.bf16.mxu0 0
      %902 = vmatpush2.bf16.msra.mxu0 0
      %903 = vmatprep.mubr.bf16.mxu0 0
      %904 = vmatmul.mubr.bf16.gmra.mxu0 %v869
      %v905 = vpop.f32.mrf.mxu0
      %v906 = vadd.f32 %v839, %v905
      %v907 = vpop.f32.mrf.mxu0
      %v908 = vpop.f32.mrf.mxu0
      %v909 = vpop.f32.mrf.mxu0
      %910 = vdwg.mxu0
      %s911 = scalar_lea.vmem %s4, 64
      %v912 = vld [vmem:[%s911] sm:$0xf]
      %v913 = vld [vmem:[%s911 + $0x4] sm:$0xf]
      %v914 = vld [vmem:[%s911 + $0x8] sm:$0xf]
      %v915 = vld [vmem:[%s911 + $0xc] sm:$0xf]
      %v916 = vld [vmem:[%s911 + $0x10] sm:$0xf]
      %v917 = vld [vmem:[%s911 + $0x14] sm:$0xf]
      %v918 = vld [vmem:[%s911 + $0x18] sm:$0xf]
      %v919 = vld [vmem:[%s911 + $0x1c] sm:$0xf]
      %v928 = vunpack.c.l.b16 %v912
      %v929 = vunpack.c.l.b16 %v913
      %v930 = vunpack.c.l.b16 %v914
      %v931 = vunpack.c.l.b16 %v915
      %v932 = vunpack.c.l.b16 %v916
      %v933 = vunpack.c.l.b16 %v917
      %v934 = vunpack.c.l.b16 %v918
      %v935 = vunpack.c.l.b16 %v919
      %v936 = vpack.c.b16 %v929, %v928
      %v937 = vpack.c.b16 %v931, %v930
      %v938 = vpack.c.b16 %v933, %v932
      %v939 = vpack.c.b16 %v935, %v934
      %v945 = vsel %vm474, %v759, 0
      %947 = vmatprep.subr.bf16.mxu0 0
      %948 = vmatpush1.bf16.msra.mxu0 0
      %949 = vmatprep.subr.bf16.mxu0 0
      %950 = vmatpush1.bf16.msra.mxu0 0
      %951 = vmatprep.subr.bf16.mxu0 0
      %952 = vmatpush1.bf16.msra.mxu0 0
      %953 = vmatprep.subr.bf16.mxu0 0
      %954 = vmatpush1.bf16.msra.mxu0 0
      %955 = vmatprep.subr.bf16.mxu0 0
      %956 = vmatpush1.bf16.msra.mxu0 %v939
      %957 = vmatprep.subr.bf16.mxu0 0
      %958 = vmatpush1.bf16.msra.mxu0 %v938
      %959 = vmatprep.subr.bf16.mxu0 0
      %960 = vmatpush1.bf16.msra.mxu0 %v937
      %961 = vmatprep.subr.bf16.mxu0 0
      %962 = vmatpush1.bf16.msra.mxu0 %v936
      %963 = vmatprep.subr.bf16.mxu0 0
      %964 = vmatpush2.bf16.msra.mxu0 0
      %965 = vmatprep.subr.bf16.mxu0 0
      %966 = vmatpush2.bf16.msra.mxu0 0
      %967 = vmatprep.subr.bf16.mxu0 0
      %968 = vmatpush2.bf16.msra.mxu0 0
      %969 = vmatprep.subr.bf16.mxu0 0
      %970 = vmatpush2.bf16.msra.mxu0 0
      %971 = vmatprep.subr.bf16.mxu0 0
      %972 = vmatpush2.bf16.msra.mxu0 0
      %973 = vmatprep.subr.bf16.mxu0 0
      %974 = vmatpush2.bf16.msra.mxu0 0
      %975 = vmatprep.subr.bf16.mxu0 0
      %976 = vmatpush2.bf16.msra.mxu0 0
      %977 = vmatprep.subr.bf16.mxu0 0
      %978 = vmatpush2.bf16.msra.mxu0 0
      %979 = vmatprep.mubr.bf16.mxu0 0
      %980 = vmatmul.mubr.bf16.gmra.mxu0 %v945
      %v981 = vpop.f32.mrf.mxu0
      %v982 = vadd.f32 0.0, %v981
      %v983 = vpop.f32.mrf.mxu0
      %v984 = vpop.f32.mrf.mxu0
      %v985 = vpop.f32.mrf.mxu0
      %986 = vdwg.mxu0
      %v987 = vadd.f32 %v906, %v982
      %988 = vmatprep.subr.bf16.mxu0 0
      %989 = vmatpush1.bf16.msra.mxu0 0
      %990 = vmatprep.subr.bf16.mxu0 0
      %991 = vmatpush1.bf16.msra.mxu0 0
      %992 = vmatprep.subr.bf16.mxu0 0
      %993 = vmatpush1.bf16.msra.mxu0 0
      %994 = vmatprep.subr.bf16.mxu0 0
      %995 = vmatpush1.bf16.msra.mxu0 0
      %996 = vmatprep.subr.bf16.mxu0 0
      %997 = vmatpush1.bf16.msra.mxu0 %v796
      %998 = vmatprep.subr.bf16.mxu0 0
      %999 = vmatpush1.bf16.msra.mxu0 %v795
      %1000 = vmatprep.subr.bf16.mxu0 0
      %1001 = vmatpush1.bf16.msra.mxu0 %v794
      %1002 = vmatprep.subr.bf16.mxu0 0
      %1003 = vmatpush1.bf16.msra.mxu0 %v793
      %1004 = vmatprep.subr.bf16.mxu0 0
      %1005 = vmatpush2.bf16.msra.mxu0 0
      %1006 = vmatprep.subr.bf16.mxu0 0
      %1007 = vmatpush2.bf16.msra.mxu0 0
      %1008 = vmatprep.subr.bf16.mxu0 0
      %1009 = vmatpush2.bf16.msra.mxu0 0
      %1010 = vmatprep.subr.bf16.mxu0 0
      %1011 = vmatpush2.bf16.msra.mxu0 0
      %1012 = vmatprep.subr.bf16.mxu0 0
      %1013 = vmatpush2.bf16.msra.mxu0 0
      %1014 = vmatprep.subr.bf16.mxu0 0
      %1015 = vmatpush2.bf16.msra.mxu0 0
      %1016 = vmatprep.subr.bf16.mxu0 0
      %1017 = vmatpush2.bf16.msra.mxu0 0
      %1018 = vmatprep.subr.bf16.mxu0 0
      %1019 = vmatpush2.bf16.msra.mxu0 0
      %1020 = vmatprep.mubr.bf16.mxu0 0
      %1021 = vmatmul.mubr.bf16.gmra.mxu0 %v945
      %v1022 = vpop.f32.mrf.mxu0
      %v1023 = vadd.f32 0.0, %v1022
      %v1024 = vpop.f32.mrf.mxu0
      %v1025 = vpop.f32.mrf.mxu0
      %v1026 = vpop.f32.mrf.mxu0
      %1027 = vdwg.mxu0
      %1028 = vmatprep.subr.bf16.mxu0 0
      %1029 = vmatpush1.bf16.msra.mxu0 0
      %1030 = vmatprep.subr.bf16.mxu0 0
      %1031 = vmatpush1.bf16.msra.mxu0 0
      %1032 = vmatprep.subr.bf16.mxu0 0
      %1033 = vmatpush1.bf16.msra.mxu0 0
      %1034 = vmatprep.subr.bf16.mxu0 0
      %1035 = vmatpush1.bf16.msra.mxu0 0
      %1036 = vmatprep.subr.bf16.mxu0 0
      %1037 = vmatpush1.bf16.msra.mxu0 %v863
      %1038 = vmatprep.subr.bf16.mxu0 0
      %1039 = vmatpush1.bf16.msra.mxu0 %v862
      %1040 = vmatprep.subr.bf16.mxu0 0
      %1041 = vmatpush1.bf16.msra.mxu0 %v861
      %1042 = vmatprep.subr.bf16.mxu0 0
      %1043 = vmatpush1.bf16.msra.mxu0 %v860
      %1044 = vmatprep.subr.bf16.mxu0 0
      %1045 = vmatpush2.bf16.msra.mxu0 0
      %1046 = vmatprep.subr.bf16.mxu0 0
      %1047 = vmatpush2.bf16.msra.mxu0 0
      %1048 = vmatprep.subr.bf16.mxu0 0
      %1049 = vmatpush2.bf16.msra.mxu0 0
      %1050 = vmatprep.subr.bf16.mxu0 0
      %1051 = vmatpush2.bf16.msra.mxu0 0
      %1052 = vmatprep.subr.bf16.mxu0 0
      %1053 = vmatpush2.bf16.msra.mxu0 0
      %1054 = vmatprep.subr.bf16.mxu0 0
      %1055 = vmatpush2.bf16.msra.mxu0 0
      %1056 = vmatprep.subr.bf16.mxu0 0
      %1057 = vmatpush2.bf16.msra.mxu0 0
      %1058 = vmatprep.subr.bf16.mxu0 0
      %1059 = vmatpush2.bf16.msra.mxu0 0
      %1060 = vmatprep.mubr.bf16.mxu0 0
      %1061 = vmatmul.mubr.bf16.gmra.mxu0 %v802
      %v1062 = vpop.f32.mrf.mxu0
      %v1063 = vadd.f32 %v1023, %v1062
      %v1064 = vpop.f32.mrf.mxu0
      %v1065 = vpop.f32.mrf.mxu0
      %v1066 = vpop.f32.mrf.mxu0
      %1067 = vdwg.mxu0
      %v1069 = vsel %vm474, %v755, 0
      %1071 = vmatprep.subr.bf16.mxu0 0
      %1072 = vmatpush1.bf16.msra.mxu0 0
      %1073 = vmatprep.subr.bf16.mxu0 0
      %1074 = vmatpush1.bf16.msra.mxu0 0
      %1075 = vmatprep.subr.bf16.mxu0 0
      %1076 = vmatpush1.bf16.msra.mxu0 0
      %1077 = vmatprep.subr.bf16.mxu0 0
      %1078 = vmatpush1.bf16.msra.mxu0 0
      %1079 = vmatprep.subr.bf16.mxu0 0
      %1080 = vmatpush1.bf16.msra.mxu0 %v939
      %1081 = vmatprep.subr.bf16.mxu0 0
      %1082 = vmatpush1.bf16.msra.mxu0 %v938
      %1083 = vmatprep.subr.bf16.mxu0 0
      %1084 = vmatpush1.bf16.msra.mxu0 %v937
      %1085 = vmatprep.subr.bf16.mxu0 0
      %1086 = vmatpush1.bf16.msra.mxu0 %v936
      %1087 = vmatprep.subr.bf16.mxu0 0
      %1088 = vmatpush2.bf16.msra.mxu0 0
      %1089 = vmatprep.subr.bf16.mxu0 0
      %1090 = vmatpush2.bf16.msra.mxu0 0
      %1091 = vmatprep.subr.bf16.mxu0 0
      %1092 = vmatpush2.bf16.msra.mxu0 0
      %1093 = vmatprep.subr.bf16.mxu0 0
      %1094 = vmatpush2.bf16.msra.mxu0 0
      %1095 = vmatprep.subr.bf16.mxu0 0
      %1096 = vmatpush2.bf16.msra.mxu0 0
      %1097 = vmatprep.subr.bf16.mxu0 0
      %1098 = vmatpush2.bf16.msra.mxu0 0
      %1099 = vmatprep.subr.bf16.mxu0 0
      %1100 = vmatpush2.bf16.msra.mxu0 0
      %1101 = vmatprep.subr.bf16.mxu0 0
      %1102 = vmatpush2.bf16.msra.mxu0 0
      %1103 = vmatprep.mubr.bf16.mxu0 0
      %1104 = vmatmul.mubr.bf16.gmra.mxu0 %v1069
      %v1105 = vpop.f32.mrf.mxu0
      %v1106 = vadd.f32 0.0, %v1105
      %v1107 = vpop.f32.mrf.mxu0
      %v1108 = vpop.f32.mrf.mxu0
      %v1109 = vpop.f32.mrf.mxu0
      %1110 = vdwg.mxu0
      %v1111 = vadd.f32 %v1063, %v1106
      %v1112 = vld [vmem:[%s400] sm:$0xf]
      %v1113 = vld [vmem:[%s400 + $0x4] sm:$0x1]
      %v1114 = vld [vmem:[%s405] sm:$0xf]
      %v1115 = vld [vmem:[%s405 + $0x4] sm:$0x1]
      %v1116 = vld [vmem:[%s5] sm:$0xf]
      %v1117 = vld [vmem:[%s5 + $0x4] sm:$0xf]
      %v1118 = vld [vmem:[%s5 + $0x8] sm:$0xf]
      %v1119 = vld [vmem:[%s5 + $0xc] sm:$0xf]
      %v1120 = vld [vmem:[%s5 + $0x10] sm:$0xf]
      %v1121 = vld [vmem:[%s5 + $0x14] sm:$0xf]
      %v1122 = vld [vmem:[%s5 + $0x18] sm:$0xf]
      %v1123 = vld [vmem:[%s5 + $0x1c] sm:$0xf]
      %s1124 = scalar_lea.vmem %s5, 32
      %v1125 = vld [vmem:[%s1124] sm:$0xf]
      %v1126 = vld [vmem:[%s1124 + $0x4] sm:$0xf]
      %v1127 = vld [vmem:[%s1124 + $0x8] sm:$0xf]
      %v1128 = vld [vmem:[%s1124 + $0xc] sm:$0xf]
      %v1129 = vld [vmem:[%s1124 + $0x10] sm:$0xf]
      %v1130 = vld [vmem:[%s1124 + $0x14] sm:$0xf]
      %v1131 = vld [vmem:[%s1124 + $0x18] sm:$0xf]
      %v1132 = vld [vmem:[%s1124 + $0x1c] sm:$0xf]
      %v1141 = vunpack.c.l.b16 %v1125
      %v1142 = vunpack.c.l.b16 %v1126
      %v1143 = vunpack.c.l.b16 %v1127
      %v1144 = vunpack.c.l.b16 %v1128
      %v1145 = vunpack.c.l.b16 %v1129
      %v1146 = vunpack.c.l.b16 %v1130
      %v1147 = vunpack.c.l.b16 %v1131
      %v1148 = vunpack.c.l.b16 %v1132
      %v1149 = vpack.c.b16 %v1142, %v1141
      %v1150 = vpack.c.b16 %v1144, %v1143
      %v1151 = vpack.c.b16 %v1146, %v1145
      %v1152 = vpack.c.b16 %v1148, %v1147
      %v1158 = vsel %vm474, %v1112, 0
      %1160 = vmatprep.subr.bf16.mxu0 0
      %1161 = vmatpush1.bf16.msra.mxu0 0
      %1162 = vmatprep.subr.bf16.mxu0 0
      %1163 = vmatpush1.bf16.msra.mxu0 0
      %1164 = vmatprep.subr.bf16.mxu0 0
      %1165 = vmatpush1.bf16.msra.mxu0 0
      %1166 = vmatprep.subr.bf16.mxu0 0
      %1167 = vmatpush1.bf16.msra.mxu0 0
      %1168 = vmatprep.subr.bf16.mxu0 0
      %1169 = vmatpush1.bf16.msra.mxu0 %v1152
      %1170 = vmatprep.subr.bf16.mxu0 0
      %1171 = vmatpush1.bf16.msra.mxu0 %v1151
      %1172 = vmatprep.subr.bf16.mxu0 0
      %1173 = vmatpush1.bf16.msra.mxu0 %v1150
      %1174 = vmatprep.subr.bf16.mxu0 0
      %1175 = vmatpush1.bf16.msra.mxu0 %v1149
      %1176 = vmatprep.subr.bf16.mxu0 0
      %1177 = vmatpush2.bf16.msra.mxu0 0
      %1178 = vmatprep.subr.bf16.mxu0 0
      %1179 = vmatpush2.bf16.msra.mxu0 0
      %1180 = vmatprep.subr.bf16.mxu0 0
      %1181 = vmatpush2.bf16.msra.mxu0 0
      %1182 = vmatprep.subr.bf16.mxu0 0
      %1183 = vmatpush2.bf16.msra.mxu0 0
      %1184 = vmatprep.subr.bf16.mxu0 0
      %1185 = vmatpush2.bf16.msra.mxu0 0
      %1186 = vmatprep.subr.bf16.mxu0 0
      %1187 = vmatpush2.bf16.msra.mxu0 0
      %1188 = vmatprep.subr.bf16.mxu0 0
      %1189 = vmatpush2.bf16.msra.mxu0 0
      %1190 = vmatprep.subr.bf16.mxu0 0
      %1191 = vmatpush2.bf16.msra.mxu0 0
      %1192 = vmatprep.mubr.bf16.mxu0 0
      %1193 = vmatmul.mubr.bf16.gmra.mxu0 %v1158
      %v1194 = vpop.f32.mrf.mxu0
      %v1195 = vadd.f32 0.0, %v1194
      %v1196 = vpop.f32.mrf.mxu0
      %v1197 = vpop.f32.mrf.mxu0
      %v1198 = vpop.f32.mrf.mxu0
      %1199 = vdwg.mxu0
      %v1208 = vunpack.c.l.b16 %v1116
      %v1209 = vunpack.c.l.b16 %v1117
      %v1210 = vunpack.c.l.b16 %v1118
      %v1211 = vunpack.c.l.b16 %v1119
      %v1212 = vunpack.c.l.b16 %v1120
      %v1213 = vunpack.c.l.b16 %v1121
      %v1214 = vunpack.c.l.b16 %v1122
      %v1215 = vunpack.c.l.b16 %v1123
      %v1216 = vpack.c.b16 %v1209, %v1208
      %v1217 = vpack.c.b16 %v1211, %v1210
      %v1218 = vpack.c.b16 %v1213, %v1212
      %v1219 = vpack.c.b16 %v1215, %v1214
      %v1225 = vsel %vm474, %v1114, 0
      %1227 = vmatprep.subr.bf16.mxu0 0
      %1228 = vmatpush1.bf16.msra.mxu0 0
      %1229 = vmatprep.subr.bf16.mxu0 0
      %1230 = vmatpush1.bf16.msra.mxu0 0
      %1231 = vmatprep.subr.bf16.mxu0 0
      %1232 = vmatpush1.bf16.msra.mxu0 0
      %1233 = vmatprep.subr.bf16.mxu0 0
      %1234 = vmatpush1.bf16.msra.mxu0 0
      %1235 = vmatprep.subr.bf16.mxu0 0
      %1236 = vmatpush1.bf16.msra.mxu0 %v1219
      %1237 = vmatprep.subr.bf16.mxu0 0
      %1238 = vmatpush1.bf16.msra.mxu0 %v1218
      %1239 = vmatprep.subr.bf16.mxu0 0
      %1240 = vmatpush1.bf16.msra.mxu0 %v1217
      %1241 = vmatprep.subr.bf16.mxu0 0
      %1242 = vmatpush1.bf16.msra.mxu0 %v1216
      %1243 = vmatprep.subr.bf16.mxu0 0
      %1244 = vmatpush2.bf16.msra.mxu0 0
      %1245 = vmatprep.subr.bf16.mxu0 0
      %1246 = vmatpush2.bf16.msra.mxu0 0
      %1247 = vmatprep.subr.bf16.mxu0 0
      %1248 = vmatpush2.bf16.msra.mxu0 0
      %1249 = vmatprep.subr.bf16.mxu0 0
      %1250 = vmatpush2.bf16.msra.mxu0 0
      %1251 = vmatprep.subr.bf16.mxu0 0
      %1252 = vmatpush2.bf16.msra.mxu0 0
      %1253 = vmatprep.subr.bf16.mxu0 0
      %1254 = vmatpush2.bf16.msra.mxu0 0
      %1255 = vmatprep.subr.bf16.mxu0 0
      %1256 = vmatpush2.bf16.msra.mxu0 0
      %1257 = vmatprep.subr.bf16.mxu0 0
      %1258 = vmatpush2.bf16.msra.mxu0 0
      %1259 = vmatprep.mubr.bf16.mxu0 0
      %1260 = vmatmul.mubr.bf16.gmra.mxu0 %v1225
      %v1261 = vpop.f32.mrf.mxu0
      %v1262 = vadd.f32 %v1195, %v1261
      %v1263 = vpop.f32.mrf.mxu0
      %v1264 = vpop.f32.mrf.mxu0
      %v1265 = vpop.f32.mrf.mxu0
      %1266 = vdwg.mxu0
      %s1267 = scalar_lea.vmem %s5, 64
      %v1268 = vld [vmem:[%s1267] sm:$0xf]
      %v1269 = vld [vmem:[%s1267 + $0x4] sm:$0xf]
      %v1270 = vld [vmem:[%s1267 + $0x8] sm:$0xf]
      %v1271 = vld [vmem:[%s1267 + $0xc] sm:$0xf]
      %v1272 = vld [vmem:[%s1267 + $0x10] sm:$0xf]
      %v1273 = vld [vmem:[%s1267 + $0x14] sm:$0xf]
      %v1274 = vld [vmem:[%s1267 + $0x18] sm:$0xf]
      %v1275 = vld [vmem:[%s1267 + $0x1c] sm:$0xf]
      %v1278 = vunpack.c.l.b16 %v1114
      %v1279 = vunpack.c.l.b16 %v1115
      %v1280 = vpack.c.b16 %v1279, %v1278
      %v1282 = vshrl.u32 %v1280, 16
      %v1284 = vshll.u32 %v1280, 16
      %v1286 = vrot.slane %v1284, 1
      %v1287 = vor.u32 %v1282, %v1286
      %v1296 = vunpack.c.l.b16 %v1268
      %v1297 = vunpack.c.l.b16 %v1269
      %v1298 = vunpack.c.l.b16 %v1270
      %v1299 = vunpack.c.l.b16 %v1271
      %v1300 = vunpack.c.l.b16 %v1272
      %v1301 = vunpack.c.l.b16 %v1273
      %v1302 = vunpack.c.l.b16 %v1274
      %v1303 = vunpack.c.l.b16 %v1275
      %v1304 = vpack.c.b16 %v1297, %v1296
      %v1305 = vpack.c.b16 %v1299, %v1298
      %v1306 = vpack.c.b16 %v1301, %v1300
      %v1307 = vpack.c.b16 %v1303, %v1302
      %v1313 = vsel %vm474, %v1287, 0
      %1315 = vmatprep.subr.bf16.mxu0 0
      %1316 = vmatpush1.bf16.msra.mxu0 0
      %1317 = vmatprep.subr.bf16.mxu0 0
      %1318 = vmatpush1.bf16.msra.mxu0 0
      %1319 = vmatprep.subr.bf16.mxu0 0
      %1320 = vmatpush1.bf16.msra.mxu0 0
      %1321 = vmatprep.subr.bf16.mxu0 0
      %1322 = vmatpush1.bf16.msra.mxu0 0
      %1323 = vmatprep.subr.bf16.mxu0 0
      %1324 = vmatpush1.bf16.msra.mxu0 %v1307
      %1325 = vmatprep.subr.bf16.mxu0 0
      %1326 = vmatpush1.bf16.msra.mxu0 %v1306
      %1327 = vmatprep.subr.bf16.mxu0 0
      %1328 = vmatpush1.bf16.msra.mxu0 %v1305
      %1329 = vmatprep.subr.bf16.mxu0 0
      %1330 = vmatpush1.bf16.msra.mxu0 %v1304
      %1331 = vmatprep.subr.bf16.mxu0 0
      %1332 = vmatpush2.bf16.msra.mxu0 0
      %1333 = vmatprep.subr.bf16.mxu0 0
      %1334 = vmatpush2.bf16.msra.mxu0 0
      %1335 = vmatprep.subr.bf16.mxu0 0
      %1336 = vmatpush2.bf16.msra.mxu0 0
      %1337 = vmatprep.subr.bf16.mxu0 0
      %1338 = vmatpush2.bf16.msra.mxu0 0
      %1339 = vmatprep.subr.bf16.mxu0 0
      %1340 = vmatpush2.bf16.msra.mxu0 0
      %1341 = vmatprep.subr.bf16.mxu0 0
      %1342 = vmatpush2.bf16.msra.mxu0 0
      %1343 = vmatprep.subr.bf16.mxu0 0
      %1344 = vmatpush2.bf16.msra.mxu0 0
      %1345 = vmatprep.subr.bf16.mxu0 0
      %1346 = vmatpush2.bf16.msra.mxu0 0
      %1347 = vmatprep.mubr.bf16.mxu0 0
      %1348 = vmatmul.mubr.bf16.gmra.mxu0 %v1313
      %v1349 = vpop.f32.mrf.mxu0
      %v1350 = vadd.f32 0.0, %v1349
      %v1351 = vpop.f32.mrf.mxu0
      %v1352 = vpop.f32.mrf.mxu0
      %v1353 = vpop.f32.mrf.mxu0
      %1354 = vdwg.mxu0
      %v1355 = vadd.f32 %v1262, %v1350
      %1356 = vmatprep.subr.bf16.mxu0 0
      %1357 = vmatpush1.bf16.msra.mxu0 0
      %1358 = vmatprep.subr.bf16.mxu0 0
      %1359 = vmatpush1.bf16.msra.mxu0 0
      %1360 = vmatprep.subr.bf16.mxu0 0
      %1361 = vmatpush1.bf16.msra.mxu0 0
      %1362 = vmatprep.subr.bf16.mxu0 0
      %1363 = vmatpush1.bf16.msra.mxu0 0
      %1364 = vmatprep.subr.bf16.mxu0 0
      %1365 = vmatpush1.bf16.msra.mxu0 %v1152
      %1366 = vmatprep.subr.bf16.mxu0 0
      %1367 = vmatpush1.bf16.msra.mxu0 %v1151
      %1368 = vmatprep.subr.bf16.mxu0 0
      %1369 = vmatpush1.bf16.msra.mxu0 %v1150
      %1370 = vmatprep.subr.bf16.mxu0 0
      %1371 = vmatpush1.bf16.msra.mxu0 %v1149
      %1372 = vmatprep.subr.bf16.mxu0 0
      %1373 = vmatpush2.bf16.msra.mxu0 0
      %1374 = vmatprep.subr.bf16.mxu0 0
      %1375 = vmatpush2.bf16.msra.mxu0 0
      %1376 = vmatprep.subr.bf16.mxu0 0
      %1377 = vmatpush2.bf16.msra.mxu0 0
      %1378 = vmatprep.subr.bf16.mxu0 0
      %1379 = vmatpush2.bf16.msra.mxu0 0
      %1380 = vmatprep.subr.bf16.mxu0 0
      %1381 = vmatpush2.bf16.msra.mxu0 0
      %1382 = vmatprep.subr.bf16.mxu0 0
      %1383 = vmatpush2.bf16.msra.mxu0 0
      %1384 = vmatprep.subr.bf16.mxu0 0
      %1385 = vmatpush2.bf16.msra.mxu0 0
      %1386 = vmatprep.subr.bf16.mxu0 0
      %1387 = vmatpush2.bf16.msra.mxu0 0
      %1388 = vmatprep.mubr.bf16.mxu0 0
      %1389 = vmatmul.mubr.bf16.gmra.mxu0 %v1313
      %v1390 = vpop.f32.mrf.mxu0
      %v1391 = vadd.f32 0.0, %v1390
      %v1392 = vpop.f32.mrf.mxu0
      %v1393 = vpop.f32.mrf.mxu0
      %v1394 = vpop.f32.mrf.mxu0
      %1395 = vdwg.mxu0
      %1396 = vmatprep.subr.bf16.mxu0 0
      %1397 = vmatpush1.bf16.msra.mxu0 0
      %1398 = vmatprep.subr.bf16.mxu0 0
      %1399 = vmatpush1.bf16.msra.mxu0 0
      %1400 = vmatprep.subr.bf16.mxu0 0
      %1401 = vmatpush1.bf16.msra.mxu0 0
      %1402 = vmatprep.subr.bf16.mxu0 0
      %1403 = vmatpush1.bf16.msra.mxu0 0
      %1404 = vmatprep.subr.bf16.mxu0 0
      %1405 = vmatpush1.bf16.msra.mxu0 %v1219
      %1406 = vmatprep.subr.bf16.mxu0 0
      %1407 = vmatpush1.bf16.msra.mxu0 %v1218
      %1408 = vmatprep.subr.bf16.mxu0 0
      %1409 = vmatpush1.bf16.msra.mxu0 %v1217
      %1410 = vmatprep.subr.bf16.mxu0 0
      %1411 = vmatpush1.bf16.msra.mxu0 %v1216
      %1412 = vmatprep.subr.bf16.mxu0 0
      %1413 = vmatpush2.bf16.msra.mxu0 0
      %1414 = vmatprep.subr.bf16.mxu0 0
      %1415 = vmatpush2.bf16.msra.mxu0 0
      %1416 = vmatprep.subr.bf16.mxu0 0
      %1417 = vmatpush2.bf16.msra.mxu0 0
      %1418 = vmatprep.subr.bf16.mxu0 0
      %1419 = vmatpush2.bf16.msra.mxu0 0
      %1420 = vmatprep.subr.bf16.mxu0 0
      %1421 = vmatpush2.bf16.msra.mxu0 0
      %1422 = vmatprep.subr.bf16.mxu0 0
      %1423 = vmatpush2.bf16.msra.mxu0 0
      %1424 = vmatprep.subr.bf16.mxu0 0
      %1425 = vmatpush2.bf16.msra.mxu0 0
      %1426 = vmatprep.subr.bf16.mxu0 0
      %1427 = vmatpush2.bf16.msra.mxu0 0
      %1428 = vmatprep.mubr.bf16.mxu0 0
      %1429 = vmatmul.mubr.bf16.gmra.mxu0 %v1158
      %v1430 = vpop.f32.mrf.mxu0
      %v1431 = vadd.f32 %v1391, %v1430
      %v1432 = vpop.f32.mrf.mxu0
      %v1433 = vpop.f32.mrf.mxu0
      %v1434 = vpop.f32.mrf.mxu0
      %1435 = vdwg.mxu0
      %v1438 = vunpack.c.l.b16 %v1112
      %v1439 = vunpack.c.l.b16 %v1113
      %v1440 = vpack.c.b16 %v1439, %v1438
      %v1442 = vshrl.u32 %v1440, 16
      %v1444 = vshll.u32 %v1440, 16
      %v1446 = vrot.slane %v1444, 1
      %v1447 = vor.u32 %v1442, %v1446
      %v1449 = vsel %vm474, %v1447, 0
      %1451 = vmatprep.subr.bf16.mxu0 0
      %1452 = vmatpush1.bf16.msra.mxu0 0
      %1453 = vmatprep.subr.bf16.mxu0 0
      %1454 = vmatpush1.bf16.msra.mxu0 0
      %1455 = vmatprep.subr.bf16.mxu0 0
      %1456 = vmatpush1.bf16.msra.mxu0 0
      %1457 = vmatprep.subr.bf16.mxu0 0
      %1458 = vmatpush1.bf16.msra.mxu0 0
      %1459 = vmatprep.subr.bf16.mxu0 0
      %1460 = vmatpush1.bf16.msra.mxu0 %v1307
      %1461 = vmatprep.subr.bf16.mxu0 0
      %1462 = vmatpush1.bf16.msra.mxu0 %v1306
      %1463 = vmatprep.subr.bf16.mxu0 0
      %1464 = vmatpush1.bf16.msra.mxu0 %v1305
      %1465 = vmatprep.subr.bf16.mxu0 0
      %1466 = vmatpush1.bf16.msra.mxu0 %v1304
      %1467 = vmatprep.subr.bf16.mxu0 0
      %1468 = vmatpush2.bf16.msra.mxu0 0
      %1469 = vmatprep.subr.bf16.mxu0 0
      %1470 = vmatpush2.bf16.msra.mxu0 0
      %1471 = vmatprep.subr.bf16.mxu0 0
      %1472 = vmatpush2.bf16.msra.mxu0 0
      %1473 = vmatprep.subr.bf16.mxu0 0
      %1474 = vmatpush2.bf16.msra.mxu0 0
      %1475 = vmatprep.subr.bf16.mxu0 0
      %1476 = vmatpush2.bf16.msra.mxu0 0
      %1477 = vmatprep.subr.bf16.mxu0 0
      %1478 = vmatpush2.bf16.msra.mxu0 0
      %1479 = vmatprep.subr.bf16.mxu0 0
      %1480 = vmatpush2.bf16.msra.mxu0 0
      %1481 = vmatprep.subr.bf16.mxu0 0
      %1482 = vmatpush2.bf16.msra.mxu0 0
      %1483 = vmatprep.mubr.bf16.mxu0 0
      %1484 = vmatmul.mubr.bf16.gmra.mxu0 %v1449
      %v1485 = vpop.f32.mrf.mxu0
      %v1486 = vadd.f32 0.0, %v1485
      %v1487 = vpop.f32.mrf.mxu0
      %v1488 = vpop.f32.mrf.mxu0
      %v1489 = vpop.f32.mrf.mxu0
      %1490 = vdwg.mxu0
      %v1491 = vadd.f32 %v1431, %v1486
      %v1492 = vadd.f32 %v987, %v1355
      %v1493 = vld [vmem:[%s7] sm:$0x1]
      %v1495 = vlaneseq
      %v1496 = vshrl.u32 %v1495, 7
      %v1497 = vsub.s32 0, %v1496
      %v1498 = vrot.slane %v1493, %v1497
      %v1500 = vadd.f32 %v1492, %v1498
      %v1501 = vadd.f32 %v1111, %v1491
      %v1502 = vadd.f32 %v1501, %v1498
      %v1503 = vsel %vm474, %v1500, 0.0
      %v1504 = vrot.slane %v1503, 4
      %v1505 = vadd.f32 %v1503, %v1504
      %v1506 = vrot.slane %v1505, 2
      %v1507 = vadd.f32 %v1505, %v1506
      %v1508 = vrot.slane %v1507, 1
      %v1509 = vadd.f32 %v1507, %v1508
      %v1510 = vsel %vm474, %v1502, 0.0
      %v1511 = vrot.slane %v1510, 4
      %v1512 = vadd.f32 %v1510, %v1511
      %v1513 = vrot.slane %v1512, 2
      %v1514 = vadd.f32 %v1512, %v1513
      %v1515 = vrot.slane %v1514, 1
      %v1516 = vadd.f32 %v1514, %v1515
      %v1517 = vadd.f32 %v1509, %v1516
      %1518 = vst.msk [vmem:[%s413] sm:$0x1] %vm748, %v1517
      %v1519 = vmul.f32 %v1500, %v1500
      %v1520 = vsel %vm474, %v1519, 0.0
      %v1521 = vrot.slane %v1520, 4
      %v1522 = vadd.f32 %v1520, %v1521
      %v1523 = vrot.slane %v1522, 2
      %v1524 = vadd.f32 %v1522, %v1523
      %v1525 = vrot.slane %v1524, 1
      %v1526 = vadd.f32 %v1524, %v1525
      %v1527 = vmul.f32 %v1502, %v1502
      %v1528 = vsel %vm474, %v1527, 0.0
      %v1529 = vrot.slane %v1528, 4
      %v1530 = vadd.f32 %v1528, %v1529
      %v1531 = vrot.slane %v1530, 2
      %v1532 = vadd.f32 %v1530, %v1531
      %v1533 = vrot.slane %v1532, 1
      %v1534 = vadd.f32 %v1532, %v1533
      %v1535 = vadd.f32 %v1526, %v1534
      %1536 = vst.msk [vmem:[%s416] sm:$0x1] %vm748, %v1535
      %v1537 = vpack.c.bf16 %v1500, %v1500
      %vm1538 = vcmask 519168
      %1539 = vst.msk [vmem:[%s410] sm:$0xf] %vm1538, %v1537
      %v1540 = vpack.c.bf16 %v1502, %v1502
      %s1541 = scalar_lea.vmem %s410, 4
      %1542 = vst.msk [vmem:[%s1541] sm:$0xf] %vm1538, %v1540
      %p1543 = scmp.lt.s32.totalorder %s22, 1
      %s1544 = scalar_select %p1543, %s22, 1
      %s1545 = smul.addr %s1544, 2
      %s1546 = smul.addr %s1545, 4
      %s1547 = scalar_lea.vmem %s8, %s1546
      %p1548 = scmp.lt.s32.totalorder %s22, 1
      %s1549 = scalar_select %p1548, %s22, 1
      %s1550 = scalar_lea.vmem %s9, %s1549
      %p1551 = scmp.lt.s32.totalorder %s22, 1
      %s1552 = scalar_select %p1551, %s22, 1
      %s1553 = scalar_lea.vmem %s10, %s1552
      // Predicated region
      $region53: #{upsample_block_forward.3} parent=51 // pred_check
        %p1554 = pneg %p223
      $region54: #{upsample_block_forward.3} parent=51 // pred_check_branch
        %1556 = sbr.rel (%p1554) target = $region56
      $region55: #{upsample_block_forward.3} parent=51 // pred_region
        _
      $region56: #{upsample_block_forward.3} parent=51 // pred_fallthru
        _
      // Predicated region
      $region57: #{upsample_block_forward.3} parent=51 // pred_check
        %p1557 = pneg %p249
      $region58: #{upsample_block_forward.3} parent=51 // pred_check_branch
        %1559 = sbr.rel (%p1557) target = $region60
      $region59: #{upsample_block_forward.3} parent=51 // pred_region
        _
      $region60: #{upsample_block_forward.3} parent=51 // pred_fallthru
        _
      // Predicated region
      $region61: #{upsample_block_forward.3} parent=51 // pred_check
        %p1560 = pneg %p275
      $region62: #{upsample_block_forward.3} parent=51 // pred_check_branch
        %1562 = sbr.rel (%p1560) target = $region64
      $region63: #{upsample_block_forward.3} parent=51 // pred_region
        _
      $region64: #{upsample_block_forward.3} parent=51 // pred_fallthru
        _
    $region52: #{upsample_block_forward.3} parent=5 // pred_fallthru
      _
    %p1563 = scmp.le.s32.totalorder 2, %s17
    // Predicated region
    $region65: #{upsample_block_forward.3} parent=5 // pred_check
      %p1564 = pneg %p1563
    $region66: #{upsample_block_forward.3} parent=5 // pred_check_branch
      %1566 = sbr.rel (%p1564) target = $region68
    $region67: #{upsample_block_forward.3} parent=5 // pred_region
      %s1567 = ssub.s32 %s17, 2
      // Predicated region
      $region69: #{upsample_block_forward.3} parent=67 // pred_check
        %p1568 = pneg %p229
      $region70: #{upsample_block_forward.3} parent=67 // pred_check_branch
        %1570 = sbr.rel (%p1568) target = $region72
      $region71: #{upsample_block_forward.3} parent=67 // pred_region
        %p1571 = scmp.lt.s32.totalorder %s23, 1
        %s1572 = scalar_select %p1571, %s23, 1
        %s1573 = smul.addr %s1572, 2
        %s1574 = smul.addr %s1573, 4
        %s1575 = scalar_lea.vmem %s8, %s1574
      $region72: #{upsample_block_forward.3} parent=67 // pred_fallthru
        _
      // Predicated region
      $region73: #{upsample_block_forward.3} parent=67 // pred_check
        %p1576 = pneg %p255
      $region74: #{upsample_block_forward.3} parent=67 // pred_check_branch
        %1578 = sbr.rel (%p1576) target = $region76
      $region75: #{upsample_block_forward.3} parent=67 // pred_region
        %p1579 = scmp.lt.s32.totalorder %s23, 1
        %s1580 = scalar_select %p1579, %s23, 1
        %s1581 = scalar_lea.vmem %s9, %s1580
      $region76: #{upsample_block_forward.3} parent=67 // pred_fallthru
        _
      // Predicated region
      $region77: #{upsample_block_forward.3} parent=67 // pred_check
        %p1582 = pneg %p281
      $region78: #{upsample_block_forward.3} parent=67 // pred_check_branch
        %1584 = sbr.rel (%p1582) target = $region80
      $region79: #{upsample_block_forward.3} parent=67 // pred_region
        %p1585 = scmp.lt.s32.totalorder %s23, 1
        %s1586 = scalar_select %p1585, %s23, 1
        %s1587 = scalar_lea.vmem %s10, %s1586
      $region80: #{upsample_block_forward.3} parent=67 // pred_fallthru
        _
    $region68: #{upsample_block_forward.3} parent=5 // pred_fallthru
      _
  $region6: #{upsample_block_forward.3} parent=0 // loop_footer
    %s21 = sadd.s32 1, %s17
  $region7: #{upsample_block_forward.3} parent=0 // loop_footer_branch
    %16 = sbr.rel target = $region3
  $region8: #{upsample_block_forward.3} parent=0 // loop_exit
    _

</llo_original>
